<compile_context>
chip_gen: v7x
topology: tpu7x:2x2x1
jax: 0.10.0
libtpu: 0.0.40
codegen_flags: <defaults>
</compile_context>

<pallas_src>
import jax
import jax.numpy as jnp
import numpy as np
from jax.experimental import pallas as pl
from jax.experimental.pallas import tpu as pltpu

L_IN = 36          # sequence length expected by the classifier (256 * 36//2//2 feats)
CIN_PAD = 32       # input channels padded 21 -> 32 (sublane friendly)
NUM_CLASSES = 5
FC_PAD = 128       # FC output lanes padded 5 -> 128 (lane-dense store / matmul)
B_TILE = 8         # samples per grid step (multiple of 8; raise to 16-32 for bigger
                   # batches — VMEM footprint is only a few MB per block)


# --------------------------------------------------------------------------- #
# In-kernel helpers (operate on batch-stacked (T*B, C) blocks, rows = (t, b))
# --------------------------------------------------------------------------- #
def _pw(x, w_ref, bias):
    """Pointwise conv (k=1) with folded BN + ReLU."""
    y = jnp.dot(x.astype(jnp.bfloat16), w_ref[...],
                preferred_element_type=jnp.float32) + bias
    return jnp.maximum(y, 0.0)


def _conv3(x, w_ref, bias, shift):
    """k=3 / pad=1 conv with folded BN + ReLU on a batch-stacked block.

    Rows are ordered (t, b) with b running over `shift` = B_TILE samples, so the
    temporal +/-1 neighbours sit +/-`shift` rows away, and the zero block prepended /
    appended below implements the "same" padding for every sample at once.
    Three accumulating MXU dots (one per tap) — no deep-K concat temp.
    """
    z = jnp.zeros((shift, x.shape[1]), x.dtype)
    xm = jnp.concatenate([z, x[:-shift]], axis=0)      # tap t-1 (zeros at t == 0)
    xp = jnp.concatenate([x[shift:], z], axis=0)       # tap t+1 (zeros at t == T-1)
    y = (jnp.dot(xm.astype(jnp.bfloat16), w_ref[0], preferred_element_type=jnp.float32)
         + jnp.dot(x.astype(jnp.bfloat16), w_ref[1], preferred_element_type=jnp.float32)
         + jnp.dot(xp.astype(jnp.bfloat16), w_ref[2], preferred_element_type=jnp.float32))
    return jnp.maximum(y + bias, 0.0)


# --------------------------------------------------------------------------- #
# Fused kernel: B_TILE batch elements per grid step, everything resident in VMEM
# --------------------------------------------------------------------------- #
def fused_kernel(x_ref,
                 w1, w2a, w2b, w2c, w3, w4a, w4b, w4c, w5, wfc,
                 bias_ref, o_ref):
    B = B_TILE
    bias = bias_ref[...]                                            # (10, 256) f32
    b1 = bias[0:1, 0:128]
    b2a = bias[1:2, 0:128]
    b2b = bias[2:3, 0:128]
    b2c = bias[3:4, 0:128]
    b3 = bias[4:5, :]
    b4a = bias[5:6, :]
    b4b = bias[6:7, :]
    b4c = bias[7:8, :]
    b5 = bias[8:9, :]
    bfc = bias[9:10, 0:FC_PAD]

    x = x_ref[...]                                                  # (36*B, 32) bf16

    # res1
    h = _pw(x, w1, b1)                                              # (288, 128) f32
    res = h
    # res2 + residual
    h = _pw(h, w2a, b2a)
    h = _conv3(h, w2b, b2b, B)
    h = _pw(h, w2c, b2c) + res
    # res3: stride-2 pointwise conv.  Even time steps are the tile-aligned 8-row
    # chunks [2j*B, 2j*B + B); concatenate them into a dense (18*B, 128) block.
    h = jnp.concatenate([h[2 * j * B:(2 * j + 1) * B] for j in range(L_IN // 2)],
                        axis=0)                                     # (144, 128)
    h = _pw(h, w3, b3)                                              # (144, 256)
    res = h
    # res4 + residual
    h = _pw(h, w4a, b4a)
    h = _conv3(h, w4b, b4b, B)
    h = _pw(h, w4c, b4c) + res
    # res5 (pointwise conv)
    h = _pw(h, w5, b5)                                              # (144, 256)

    # AvgPool1d(2,2) + channel-major flatten + Linear as ONE deep-K matmul:
    # pooled group l = 0.5*(rows of t'=2l + rows of t'=2l+1), lane-concat the 9 groups
    # into (B, 9*256) and hit the host-reordered (2304, FC_PAD) weight once.
    flat = jnp.concatenate(
        [((h[2 * l * B:(2 * l + 1) * B] + h[(2 * l + 1) * B:(2 * l + 2) * B]) * 0.5
          ).astype(jnp.bfloat16)
         for l in range(L_IN // 4)],
        axis=1)                                                     # (B, 2304) bf16
    o_ref[...] = jnp.dot(flat, wfc[...],
                         preferred_element_type=jnp.float32) + bfc  # (B, 128)


# --------------------------------------------------------------------------- #
# Parameters: synthetic deterministic init, BN folded into conv weights (host)
# --------------------------------------------------------------------------- #
def make_params(axis):
    cin = 7 * axis
    keys = iter(jax.random.split(jax.random.PRNGKey(0), 64))

    def nrm(shape, scale):
        return jax.random.normal(next(keys), shape, jnp.float32) * scale

    def bn(c):
        gamma = 1.0 + nrm((c,), 0.05)
        beta = nrm((c,), 0.05)
        mean = nrm((c,), 0.05)
        var = 1.0 + jnp.abs(nrm((c,), 0.05))
        scale = gamma / jnp.sqrt(var + 1e-5)
        shift = beta - mean * scale
        return scale, shift

    def pw(ci, co):
        w = nrm((ci, co), 1.0 / np.sqrt(ci))
        b = nrm((co,), 0.05)
        s, t = bn(co)
        return {'w': w * s[None, :], 'b': (b * s + t).reshape(1, co)}

    def k3(c):
        w = nrm((3, c, c), 1.0 / np.sqrt(3 * c))
        b = nrm((c,), 0.05)
        s, t = bn(c)
        return {'w': w * s[None, None, :], 'b': (b * s + t).reshape(1, c)}

    return {
        'r1': pw(cin, 128),
        'r2a': pw(128, 128), 'r2b': k3(128), 'r2c': pw(128, 128),
        'r3': pw(128, 256),
        'r4a': pw(256, 256), 'r4b': k3(256), 'r4c': pw(256, 256),
        'r5': pw(256, 256),
        'fc': {'w': nrm((256 * 9, NUM_CLASSES), 1.0 / np.sqrt(256 * 9)),
               'b': nrm((1, NUM_CLASSES), 0.05)},
    }


def prepare_kernel_params(p):
    """Host-side packing: pad input channels, reorder/stack FC weight for the single
    deep-K matmul, pack all biases into one (10, 256) operand, cast matmuls to bf16."""
    bf = lambda a: a.astype(jnp.bfloat16)

    cin = p['r1']['w'].shape[0]
    w1 = jnp.pad(p['r1']['w'], ((0, CIN_PAD - cin), (0, 0)))

    # PyTorch flatten is channel-major: flat[c*9 + l].  The kernel's lane-concat
    # ordering is (l, c), so W_stack[l*256 + c, :] = W_fc[c*9 + l, :].
    wfc = p['fc']['w'].reshape(256, 9, NUM_CLASSES).transpose(1, 0, 2)
    wfc = wfc.reshape(9 * 256, NUM_CLASSES)
    wfc = jnp.pad(wfc, ((0, 0), (0, FC_PAD - NUM_CLASSES)))          # (2304, 128)

    biases = jnp.zeros((10, 256), jnp.float32)

    def put(b, row, vec):
        v = vec.reshape(-1)
        return b.at[row, :v.shape[0]].set(v)

    biases = put(biases, 0, p['r1']['b'])
    biases = put(biases, 1, p['r2a']['b'])
    biases = put(biases, 2, p['r2b']['b'])
    biases = put(biases, 3, p['r2c']['b'])
    biases = put(biases, 4, p['r3']['b'])
    biases = put(biases, 5, p['r4a']['b'])
    biases = put(biases, 6, p['r4b']['b'])
    biases = put(biases, 7, p['r4c']['b'])
    biases = put(biases, 8, p['r5']['b'])
    biases = put(biases, 9, p['fc']['b'])

    return (bf(w1),
            bf(p['r2a']['w']), bf(p['r2b']['w']), bf(p['r2c']['w']),
            bf(p['r3']['w']),
            bf(p['r4a']['w']), bf(p['r4b']['w']), bf(p['r4c']['w']),
            bf(p['r5']['w']),
            bf(wfc),
            biases)


def _flops_per_sample():
    m = 0
    m += L_IN * CIN_PAD * 128                     # res1
    m += L_IN * 128 * 128                         # res2a
    m += 3 * L_IN * 128 * 128                     # res2b (k=3)
    m += L_IN * 128 * 128                         # res2c
    m += (L_IN // 2) * 128 * 256                  # res3
    m += (L_IN // 2) * 256 * 256                  # res4a
    m += 3 * (L_IN // 2) * 256 * 256              # res4b (k=3)
    m += (L_IN // 2) * 256 * 256                  # res4c
    m += (L_IN // 2) * 256 * 256                  # res5
    m += (256 * 9) * FC_PAD                       # classifier (deep-K)
    return 2 * m


# --------------------------------------------------------------------------- #
# Fused Pallas forward
# --------------------------------------------------------------------------- #
def forward(x_ncl, kp, b_tile=B_TILE):
    n, cin, l = x_ncl.shape
    assert l == L_IN
    nb = -(-n // b_tile)
    npad = nb * b_tile

    # NCL -> NLC, pad channels 21->32 and batch to a multiple of B_TILE, then lay the
    # rows out per block in (time, sample) order: block i row = t*B_TILE + b.
    x = jnp.transpose(x_ncl, (0, 2, 1)).astype(jnp.float32)
    x = jnp.pad(x, ((0, npad - n), (0, 0), (0, CIN_PAD - cin)))
    x = x.reshape(nb, b_tile, l, CIN_PAD).transpose(0, 2, 1, 3)
    x = x.reshape(nb * l * b_tile, CIN_PAD).astype(jnp.bfloat16)

    def shared_spec(a):
        nd = a.ndim
        return pl.BlockSpec(tuple(a.shape), lambda i, _nd=nd: (0,) * _nd)

    in_specs = [pl.BlockSpec((l * b_tile, CIN_PAD), lambda i: (i, 0))]
    in_specs += [shared_spec(a) for a in kp]

    bytes_accessed = int(x.size) * 2 + int(npad * FC_PAD * 4)
    bytes_accessed += sum(int(np.prod(a.shape)) * a.dtype.itemsize for a in kp)

    out = pl.pallas_call(
        fused_kernel,
        grid=(nb,),
        in_specs=in_specs,
        out_specs=pl.BlockSpec((b_tile, FC_PAD), lambda i: (i, 0)),
        out_shape=jax.ShapeDtypeStruct((npad, FC_PAD), jnp.float32),
        compiler_params=pltpu.CompilerParams(
            dimension_semantics=("parallel",)),          # 2+ steps -> both v7x TCs busy
        cost_estimate=pl.CostEstimate(flops=_flops_per_sample() * npad,
                                      transcendentals=0,
                                      bytes_accessed=bytes_accessed),
    )(x, *kp)
    return out[:n, :NUM_CLASSES]


# --------------------------------------------------------------------------- #
# Pure-JAX reference (same folded params, same bf16 quantization points)
# --------------------------------------------------------------------------- #
def ref_forward(x_ncl, p):
    q = lambda a: a.astype(jnp.bfloat16).astype(jnp.float32)
    hi = jax.lax.Precision.HIGHEST
    x = jnp.transpose(x_ncl, (0, 2, 1)).astype(jnp.float32)
    n = x.shape[0]

    def pw(z, lp):
        y = jnp.einsum('nlc,cd->nld', q(z), q(lp['w']), precision=hi) + lp['b']
        return jnp.maximum(y, 0.0)

    def k3(z, lp):
        zq, wq = q(z), q(lp['w'])
        zp = jnp.pad(zq, ((0, 0), (1, 1), (0, 0)))
        y = (jnp.einsum('nlc,cd->nld', zp[:, :-2], wq[0], precision=hi)
             + jnp.einsum('nlc,cd->nld', zp[:, 1:-1], wq[1], precision=hi)
             + jnp.einsum('nlc,cd->nld', zp[:, 2:], wq[2], precision=hi) + lp['b'])
        return jnp.maximum(y, 0.0)

    h = pw(x, p['r1']); res = h
    h = pw(h, p['r2a']); h = k3(h, p['r2b']); h = pw(h, p['r2c']) + res
    h = pw(h[:, ::2, :], p['r3']); res = h
    h = pw(h, p['r4a']); h = k3(h, p['r4b']); h = pw(h, p['r4c']) + res
    h = pw(h, p['r5'])
    h = h.reshape(n, 9, 2, 256).sum(axis=2) * 0.5                    # AvgPool1d(2,2)
    flat = jnp.transpose(h, (0, 2, 1)).reshape(n, 256 * 9)           # channel-major
    return jnp.dot(q(flat), q(p['fc']['w']), precision=hi) + p['fc']['b']


if __name__ == "__main__":
    AXIS = 3          # Conv1d input channels = 7 * axis = 21
    N = 16            # batch (2 grid steps at B_TILE=8 -> both v7x TensorCores used)

    params = make_params(AXIS)
    kp = prepare_kernel_params(params)
    x = jax.random.normal(jax.random.PRNGKey(0), (N, 7 * AXIS, L_IN), jnp.float32)

    out = jax.jit(forward)(x, kp)
    out = jax.block_until_ready(out)
    assert out.shape == (N, NUM_CLASSES)

    ref = ref_forward(x, params)
    np.testing.assert_allclose(np.asarray(out), np.asarray(ref), rtol=1e-2, atol=1e-2)

    print("KERNEL_OK")
</pallas_src>

<mosaic_0001>
module attributes {stable_mosaic.version = 11 : i64} {
  func.func @fused_kernel(%arg0: i32, %arg1: memref<288x32xbf16, #tpu.memory_space<vmem>>, %arg2: memref<32x128xbf16, #tpu.memory_space<vmem>>, %arg3: memref<128x128xbf16, #tpu.memory_space<vmem>>, %arg4: memref<3x128x128xbf16, #tpu.memory_space<vmem>>, %arg5: memref<128x128xbf16, #tpu.memory_space<vmem>>, %arg6: memref<128x256xbf16, #tpu.memory_space<vmem>>, %arg7: memref<256x256xbf16, #tpu.memory_space<vmem>>, %arg8: memref<3x256x256xbf16, #tpu.memory_space<vmem>>, %arg9: memref<256x256xbf16, #tpu.memory_space<vmem>>, %arg10: memref<256x256xbf16, #tpu.memory_space<vmem>>, %arg11: memref<2304x128xbf16, #tpu.memory_space<vmem>>, %arg12: memref<10x256xf32, #tpu.memory_space<vmem>>, %arg13: memref<8x128xf32, #tpu.memory_space<vmem>>) attributes {dimension_semantics = [#tpu.dimension_semantics<parallel>], iteration_bounds = array<i64: 2>, scalar_prefetch = 0 : i64, scratch_operands = 0 : i64, tpu.core_type = #tpu.core_type<tc>, window_params = [{transform_indices = @transform_0, window_bounds = array<i64: 288, 32>}, {pipeline_mode = #tpu.pipeline_mode<synchronous>, transform_indices = @transform_1, window_bounds = array<i64: 32, 128>}, {pipeline_mode = #tpu.pipeline_mode<synchronous>, transform_indices = @transform_2, window_bounds = array<i64: 128, 128>}, {pipeline_mode = #tpu.pipeline_mode<synchronous>, transform_indices = @transform_3, window_bounds = array<i64: 3, 128, 128>}, {pipeline_mode = #tpu.pipeline_mode<synchronous>, transform_indices = @transform_4, window_bounds = array<i64: 128, 128>}, {pipeline_mode = #tpu.pipeline_mode<synchronous>, transform_indices = @transform_5, window_bounds = array<i64: 128, 256>}, {pipeline_mode = #tpu.pipeline_mode<synchronous>, transform_indices = @transform_6, window_bounds = array<i64: 256, 256>}, {pipeline_mode = #tpu.pipeline_mode<synchronous>, transform_indices = @transform_7, window_bounds = array<i64: 3, 256, 256>}, {pipeline_mode = #tpu.pipeline_mode<synchronous>, transform_indices = @transform_8, window_bounds = array<i64: 256, 256>}, {pipeline_mode = #tpu.pipeline_mode<synchronous>, transform_indices = @transform_9, window_bounds = array<i64: 256, 256>}, {pipeline_mode = #tpu.pipeline_mode<synchronous>, transform_indices = @transform_10, window_bounds = array<i64: 2304, 128>}, {pipeline_mode = #tpu.pipeline_mode<synchronous>, transform_indices = @transform_11, window_bounds = array<i64: 10, 256>}, {transform_indices = @transform_12, window_bounds = array<i64: 8, 128>}]} {
    %c0 = arith.constant 0 : index
    %c0_0 = arith.constant 0 : index
    %0 = vector.load %arg12[%c0, %c0_0] : memref<10x256xf32, #tpu.memory_space<vmem>>, vector<10x256xf32>
    %1 = vector.extract_strided_slice %0 {offsets = [0, 0], sizes = [1, 128], strides = [1, 1]} : vector<10x256xf32> to vector<1x128xf32>
    %2 = vector.extract_strided_slice %0 {offsets = [1, 0], sizes = [1, 128], strides = [1, 1]} : vector<10x256xf32> to vector<1x128xf32>
    %3 = vector.extract_strided_slice %0 {offsets = [2, 0], sizes = [1, 128], strides = [1, 1]} : vector<10x256xf32> to vector<1x128xf32>
    %4 = vector.extract_strided_slice %0 {offsets = [3, 0], sizes = [1, 128], strides = [1, 1]} : vector<10x256xf32> to vector<1x128xf32>
    %5 = vector.extract_strided_slice %0 {offsets = [4, 0], sizes = [1, 256], strides = [1, 1]} : vector<10x256xf32> to vector<1x256xf32>
    %6 = vector.extract_strided_slice %0 {offsets = [5, 0], sizes = [1, 256], strides = [1, 1]} : vector<10x256xf32> to vector<1x256xf32>
    %7 = vector.extract_strided_slice %0 {offsets = [6, 0], sizes = [1, 256], strides = [1, 1]} : vector<10x256xf32> to vector<1x256xf32>
    %8 = vector.extract_strided_slice %0 {offsets = [7, 0], sizes = [1, 256], strides = [1, 1]} : vector<10x256xf32> to vector<1x256xf32>
    %9 = vector.extract_strided_slice %0 {offsets = [8, 0], sizes = [1, 256], strides = [1, 1]} : vector<10x256xf32> to vector<1x256xf32>
    %10 = vector.extract_strided_slice %0 {offsets = [9, 0], sizes = [1, 128], strides = [1, 1]} : vector<10x256xf32> to vector<1x128xf32>
    %c0_1 = arith.constant 0 : index
    %c0_2 = arith.constant 0 : index
    %11 = vector.load %arg1[%c0_1, %c0_2] : memref<288x32xbf16, #tpu.memory_space<vmem>>, vector<288x32xbf16>
    %c0_3 = arith.constant 0 : index
    %c0_4 = arith.constant 0 : index
    %12 = vector.load %arg2[%c0_3, %c0_4] : memref<32x128xbf16, #tpu.memory_space<vmem>>, vector<32x128xbf16>
    %cst = arith.constant dense<0.000000e+00> : vector<288x128xf32>
    %13 = tpu.matmul %11, %12, %cst {dimension_numbers = #tpu.dot_dimension_numbers<[1], [0], [0], [1], [0, 0, 1, 1], [], []>} : vector<288x32xbf16>, vector<32x128xbf16>, vector<288x128xf32> -> vector<288x128xf32>
    %14 = vector.broadcast %1 : vector<1x128xf32> to vector<288x128xf32>
    %15 = arith.addf %13, %14 : vector<288x128xf32>
    %cst_5 = arith.constant 0.000000e+00 : f32
    %16 = vector.broadcast %cst_5 : f32 to vector<288x128xf32>
    %17 = arith.maximumf %15, %16 : vector<288x128xf32>
    %18 = arith.truncf %17 : vector<288x128xf32> to vector<288x128xbf16>
    %c0_6 = arith.constant 0 : index
    %c0_7 = arith.constant 0 : index
    %19 = vector.load %arg3[%c0_6, %c0_7] : memref<128x128xbf16, #tpu.memory_space<vmem>>, vector<128x128xbf16>
    %cst_8 = arith.constant dense<0.000000e+00> : vector<288x128xf32>
    %20 = tpu.matmul %18, %19, %cst_8 {dimension_numbers = #tpu.dot_dimension_numbers<[1], [0], [0], [1], [0, 0, 1, 1], [], []>} : vector<288x128xbf16>, vector<128x128xbf16>, vector<288x128xf32> -> vector<288x128xf32>
    %21 = vector.broadcast %2 : vector<1x128xf32> to vector<288x128xf32>
    %22 = arith.addf %20, %21 : vector<288x128xf32>
    %cst_9 = arith.constant 0.000000e+00 : f32
    %23 = vector.broadcast %cst_9 : f32 to vector<288x128xf32>
    %24 = arith.maximumf %22, %23 : vector<288x128xf32>
    %cst_10 = arith.constant 0.000000e+00 : f32
    %25 = vector.broadcast %cst_10 : f32 to vector<8x128xf32>
    %26 = vector.extract_strided_slice %24 {offsets = [0, 0], sizes = [280, 128], strides = [1, 1]} : vector<288x128xf32> to vector<280x128xf32>
    %27 = tpu.concatenate %25, %26 in 0 : vector<8x128xf32>, vector<280x128xf32> -> vector<288x128xf32>
    %28 = vector.extract_strided_slice %24 {offsets = [8, 0], sizes = [280, 128], strides = [1, 1]} : vector<288x128xf32> to vector<280x128xf32>
    %29 = tpu.concatenate %28, %25 in 0 : vector<280x128xf32>, vector<8x128xf32> -> vector<288x128xf32>
    %30 = arith.truncf %27 : vector<288x128xf32> to vector<288x128xbf16>
    %c0_11 = arith.constant 0 : index
    %c0_12 = arith.constant 0 : index
    %c0_13 = arith.constant 0 : index
    %31 = vector.load %arg4[%c0_11, %c0_12, %c0_13] : memref<3x128x128xbf16, #tpu.memory_space<vmem>>, vector<1x128x128xbf16>
    %32 = vector.shape_cast %31 : vector<1x128x128xbf16> to vector<128x128xbf16>
    %cst_14 = arith.constant dense<0.000000e+00> : vector<288x128xf32>
    %33 = tpu.matmul %30, %32, %cst_14 {dimension_numbers = #tpu.dot_dimension_numbers<[1], [0], [0], [1], [0, 0, 1, 1], [], []>} : vector<288x128xbf16>, vector<128x128xbf16>, vector<288x128xf32> -> vector<288x128xf32>
    %34 = arith.truncf %24 : vector<288x128xf32> to vector<288x128xbf16>
    %c1 = arith.constant 1 : index
    %c0_15 = arith.constant 0 : index
    %c0_16 = arith.constant 0 : index
    %35 = vector.load %arg4[%c1, %c0_15, %c0_16] : memref<3x128x128xbf16, #tpu.memory_space<vmem>>, vector<1x128x128xbf16>
    %36 = vector.shape_cast %35 : vector<1x128x128xbf16> to vector<128x128xbf16>
    %cst_17 = arith.constant dense<0.000000e+00> : vector<288x128xf32>
    %37 = tpu.matmul %34, %36, %cst_17 {dimension_numbers = #tpu.dot_dimension_numbers<[1], [0], [0], [1], [0, 0, 1, 1], [], []>} : vector<288x128xbf16>, vector<128x128xbf16>, vector<288x128xf32> -> vector<288x128xf32>
    %38 = arith.addf %33, %37 : vector<288x128xf32>
    %39 = arith.truncf %29 : vector<288x128xf32> to vector<288x128xbf16>
    %c2 = arith.constant 2 : index
    %c0_18 = arith.constant 0 : index
    %c0_19 = arith.constant 0 : index
    %40 = vector.load %arg4[%c2, %c0_18, %c0_19] : memref<3x128x128xbf16, #tpu.memory_space<vmem>>, vector<1x128x128xbf16>
    %41 = vector.shape_cast %40 : vector<1x128x128xbf16> to vector<128x128xbf16>
    %cst_20 = arith.constant dense<0.000000e+00> : vector<288x128xf32>
    %42 = tpu.matmul %39, %41, %cst_20 {dimension_numbers = #tpu.dot_dimension_numbers<[1], [0], [0], [1], [0, 0, 1, 1], [], []>} : vector<288x128xbf16>, vector<128x128xbf16>, vector<288x128xf32> -> vector<288x128xf32>
    %43 = arith.addf %38, %42 : vector<288x128xf32>
    %44 = vector.broadcast %3 : vector<1x128xf32> to vector<288x128xf32>
    %45 = arith.addf %43, %44 : vector<288x128xf32>
    %cst_21 = arith.constant 0.000000e+00 : f32
    %46 = vector.broadcast %cst_21 : f32 to vector<288x128xf32>
    %47 = arith.maximumf %45, %46 : vector<288x128xf32>
    %48 = arith.truncf %47 : vector<288x128xf32> to vector<288x128xbf16>
    %c0_22 = arith.constant 0 : index
    %c0_23 = arith.constant 0 : index
    %49 = vector.load %arg5[%c0_22, %c0_23] : memref<128x128xbf16, #tpu.memory_space<vmem>>, vector<128x128xbf16>
    %cst_24 = arith.constant dense<0.000000e+00> : vector<288x128xf32>
    %50 = tpu.matmul %48, %49, %cst_24 {dimension_numbers = #tpu.dot_dimension_numbers<[1], [0], [0], [1], [0, 0, 1, 1], [], []>} : vector<288x128xbf16>, vector<128x128xbf16>, vector<288x128xf32> -> vector<288x128xf32>
    %51 = vector.broadcast %4 : vector<1x128xf32> to vector<288x128xf32>
    %52 = arith.addf %50, %51 : vector<288x128xf32>
    %cst_25 = arith.constant 0.000000e+00 : f32
    %53 = vector.broadcast %cst_25 : f32 to vector<288x128xf32>
    %54 = arith.maximumf %52, %53 : vector<288x128xf32>
    %55 = arith.addf %54, %17 : vector<288x128xf32>
    %56 = vector.extract_strided_slice %55 {offsets = [0, 0], sizes = [8, 128], strides = [1, 1]} : vector<288x128xf32> to vector<8x128xf32>
    %57 = vector.extract_strided_slice %55 {offsets = [16, 0], sizes = [8, 128], strides = [1, 1]} : vector<288x128xf32> to vector<8x128xf32>
    %58 = vector.extract_strided_slice %55 {offsets = [32, 0], sizes = [8, 128], strides = [1, 1]} : vector<288x128xf32> to vector<8x128xf32>
    %59 = vector.extract_strided_slice %55 {offsets = [48, 0], sizes = [8, 128], strides = [1, 1]} : vector<288x128xf32> to vector<8x128xf32>
    %60 = vector.extract_strided_slice %55 {offsets = [64, 0], sizes = [8, 128], strides = [1, 1]} : vector<288x128xf32> to vector<8x128xf32>
    %61 = vector.extract_strided_slice %55 {offsets = [80, 0], sizes = [8, 128], strides = [1, 1]} : vector<288x128xf32> to vector<8x128xf32>
    %62 = vector.extract_strided_slice %55 {offsets = [96, 0], sizes = [8, 128], strides = [1, 1]} : vector<288x128xf32> to vector<8x128xf32>
    %63 = vector.extract_strided_slice %55 {offsets = [112, 0], sizes = [8, 128], strides = [1, 1]} : vector<288x128xf32> to vector<8x128xf32>
    %64 = vector.extract_strided_slice %55 {offsets = [128, 0], sizes = [8, 128], strides = [1, 1]} : vector<288x128xf32> to vector<8x128xf32>
    %65 = vector.extract_strided_slice %55 {offsets = [144, 0], sizes = [8, 128], strides = [1, 1]} : vector<288x128xf32> to vector<8x128xf32>
    %66 = vector.extract_strided_slice %55 {offsets = [160, 0], sizes = [8, 128], strides = [1, 1]} : vector<288x128xf32> to vector<8x128xf32>
    %67 = vector.extract_strided_slice %55 {offsets = [176, 0], sizes = [8, 128], strides = [1, 1]} : vector<288x128xf32> to vector<8x128xf32>
    %68 = vector.extract_strided_slice %55 {offsets = [192, 0], sizes = [8, 128], strides = [1, 1]} : vector<288x128xf32> to vector<8x128xf32>
    %69 = vector.extract_strided_slice %55 {offsets = [208, 0], sizes = [8, 128], strides = [1, 1]} : vector<288x128xf32> to vector<8x128xf32>
    %70 = vector.extract_strided_slice %55 {offsets = [224, 0], sizes = [8, 128], strides = [1, 1]} : vector<288x128xf32> to vector<8x128xf32>
    %71 = vector.extract_strided_slice %55 {offsets = [240, 0], sizes = [8, 128], strides = [1, 1]} : vector<288x128xf32> to vector<8x128xf32>
    %72 = vector.extract_strided_slice %55 {offsets = [256, 0], sizes = [8, 128], strides = [1, 1]} : vector<288x128xf32> to vector<8x128xf32>
    %73 = vector.extract_strided_slice %55 {offsets = [272, 0], sizes = [8, 128], strides = [1, 1]} : vector<288x128xf32> to vector<8x128xf32>
    %74 = tpu.concatenate %56, %57, %58, %59, %60, %61, %62, %63, %64, %65, %66, %67, %68, %69, %70, %71 in 0 : vector<8x128xf32>, vector<8x128xf32>, vector<8x128xf32>, vector<8x128xf32>, vector<8x128xf32>, vector<8x128xf32>, vector<8x128xf32>, vector<8x128xf32>, vector<8x128xf32>, vector<8x128xf32>, vector<8x128xf32>, vector<8x128xf32>, vector<8x128xf32>, vector<8x128xf32>, vector<8x128xf32>, vector<8x128xf32> -> vector<128x128xf32>
    %75 = tpu.concatenate %72, %73 in 0 : vector<8x128xf32>, vector<8x128xf32> -> vector<16x128xf32>
    %76 = tpu.concatenate %74, %75 in 0 : vector<128x128xf32>, vector<16x128xf32> -> vector<144x128xf32>
    %77 = arith.truncf %76 : vector<144x128xf32> to vector<144x128xbf16>
    %c0_26 = arith.constant 0 : index
    %c0_27 = arith.constant 0 : index
    %78 = vector.load %arg6[%c0_26, %c0_27] : memref<128x256xbf16, #tpu.memory_space<vmem>>, vector<128x256xbf16>
    %cst_28 = arith.constant dense<0.000000e+00> : vector<144x256xf32>
    %79 = tpu.matmul %77, %78, %cst_28 {dimension_numbers = #tpu.dot_dimension_numbers<[1], [0], [0], [1], [0, 0, 1, 1], [], []>} : vector<144x128xbf16>, vector<128x256xbf16>, vector<144x256xf32> -> vector<144x256xf32>
    %80 = vector.broadcast %5 : vector<1x256xf32> to vector<144x256xf32>
    %81 = arith.addf %79, %80 : vector<144x256xf32>
    %cst_29 = arith.constant 0.000000e+00 : f32
    %82 = vector.broadcast %cst_29 : f32 to vector<144x256xf32>
    %83 = arith.maximumf %81, %82 : vector<144x256xf32>
    %84 = arith.truncf %83 : vector<144x256xf32> to vector<144x256xbf16>
    %c0_30 = arith.constant 0 : index
    %c0_31 = arith.constant 0 : index
    %85 = vector.load %arg7[%c0_30, %c0_31] : memref<256x256xbf16, #tpu.memory_space<vmem>>, vector<256x256xbf16>
    %cst_32 = arith.constant dense<0.000000e+00> : vector<144x256xf32>
    %86 = tpu.matmul %84, %85, %cst_32 {dimension_numbers = #tpu.dot_dimension_numbers<[1], [0], [0], [1], [0, 0, 1, 1], [], []>} : vector<144x256xbf16>, vector<256x256xbf16>, vector<144x256xf32> -> vector<144x256xf32>
    %87 = vector.broadcast %6 : vector<1x256xf32> to vector<144x256xf32>
    %88 = arith.addf %86, %87 : vector<144x256xf32>
    %cst_33 = arith.constant 0.000000e+00 : f32
    %89 = vector.broadcast %cst_33 : f32 to vector<144x256xf32>
    %90 = arith.maximumf %88, %89 : vector<144x256xf32>
    %cst_34 = arith.constant 0.000000e+00 : f32
    %91 = vector.broadcast %cst_34 : f32 to vector<8x256xf32>
    %92 = vector.extract_strided_slice %90 {offsets = [0, 0], sizes = [136, 256], strides = [1, 1]} : vector<144x256xf32> to vector<136x256xf32>
    %93 = tpu.concatenate %91, %92 in 0 : vector<8x256xf32>, vector<136x256xf32> -> vector<144x256xf32>
    %94 = vector.extract_strided_slice %90 {offsets = [8, 0], sizes = [136, 256], strides = [1, 1]} : vector<144x256xf32> to vector<136x256xf32>
    %95 = tpu.concatenate %94, %91 in 0 : vector<136x256xf32>, vector<8x256xf32> -> vector<144x256xf32>
    %96 = arith.truncf %93 : vector<144x256xf32> to vector<144x256xbf16>
    %c0_35 = arith.constant 0 : index
    %c0_36 = arith.constant 0 : index
    %c0_37 = arith.constant 0 : index
    %97 = vector.load %arg8[%c0_35, %c0_36, %c0_37] : memref<3x256x256xbf16, #tpu.memory_space<vmem>>, vector<1x256x256xbf16>
    %98 = vector.shape_cast %97 : vector<1x256x256xbf16> to vector<256x256xbf16>
    %cst_38 = arith.constant dense<0.000000e+00> : vector<144x256xf32>
    %99 = tpu.matmul %96, %98, %cst_38 {dimension_numbers = #tpu.dot_dimension_numbers<[1], [0], [0], [1], [0, 0, 1, 1], [], []>} : vector<144x256xbf16>, vector<256x256xbf16>, vector<144x256xf32> -> vector<144x256xf32>
    %100 = arith.truncf %90 : vector<144x256xf32> to vector<144x256xbf16>
    %c1_39 = arith.constant 1 : index
    %c0_40 = arith.constant 0 : index
    %c0_41 = arith.constant 0 : index
    %101 = vector.load %arg8[%c1_39, %c0_40, %c0_41] : memref<3x256x256xbf16, #tpu.memory_space<vmem>>, vector<1x256x256xbf16>
    %102 = vector.shape_cast %101 : vector<1x256x256xbf16> to vector<256x256xbf16>
    %cst_42 = arith.constant dense<0.000000e+00> : vector<144x256xf32>
    %103 = tpu.matmul %100, %102, %cst_42 {dimension_numbers = #tpu.dot_dimension_numbers<[1], [0], [0], [1], [0, 0, 1, 1], [], []>} : vector<144x256xbf16>, vector<256x256xbf16>, vector<144x256xf32> -> vector<144x256xf32>
    %104 = arith.addf %99, %103 : vector<144x256xf32>
    %105 = arith.truncf %95 : vector<144x256xf32> to vector<144x256xbf16>
    %c2_43 = arith.constant 2 : index
    %c0_44 = arith.constant 0 : index
    %c0_45 = arith.constant 0 : index
    %106 = vector.load %arg8[%c2_43, %c0_44, %c0_45] : memref<3x256x256xbf16, #tpu.memory_space<vmem>>, vector<1x256x256xbf16>
    %107 = vector.shape_cast %106 : vector<1x256x256xbf16> to vector<256x256xbf16>
    %cst_46 = arith.constant dense<0.000000e+00> : vector<144x256xf32>
    %108 = tpu.matmul %105, %107, %cst_46 {dimension_numbers = #tpu.dot_dimension_numbers<[1], [0], [0], [1], [0, 0, 1, 1], [], []>} : vector<144x256xbf16>, vector<256x256xbf16>, vector<144x256xf32> -> vector<144x256xf32>
    %109 = arith.addf %104, %108 : vector<144x256xf32>
    %110 = vector.broadcast %7 : vector<1x256xf32> to vector<144x256xf32>
    %111 = arith.addf %109, %110 : vector<144x256xf32>
    %cst_47 = arith.constant 0.000000e+00 : f32
    %112 = vector.broadcast %cst_47 : f32 to vector<144x256xf32>
    %113 = arith.maximumf %111, %112 : vector<144x256xf32>
    %114 = arith.truncf %113 : vector<144x256xf32> to vector<144x256xbf16>
    %c0_48 = arith.constant 0 : index
    %c0_49 = arith.constant 0 : index
    %115 = vector.load %arg9[%c0_48, %c0_49] : memref<256x256xbf16, #tpu.memory_space<vmem>>, vector<256x256xbf16>
    %cst_50 = arith.constant dense<0.000000e+00> : vector<144x256xf32>
    %116 = tpu.matmul %114, %115, %cst_50 {dimension_numbers = #tpu.dot_dimension_numbers<[1], [0], [0], [1], [0, 0, 1, 1], [], []>} : vector<144x256xbf16>, vector<256x256xbf16>, vector<144x256xf32> -> vector<144x256xf32>
    %117 = vector.broadcast %8 : vector<1x256xf32> to vector<144x256xf32>
    %118 = arith.addf %116, %117 : vector<144x256xf32>
    %cst_51 = arith.constant 0.000000e+00 : f32
    %119 = vector.broadcast %cst_51 : f32 to vector<144x256xf32>
    %120 = arith.maximumf %118, %119 : vector<144x256xf32>
    %121 = arith.addf %120, %83 : vector<144x256xf32>
    %122 = arith.truncf %121 : vector<144x256xf32> to vector<144x256xbf16>
    %c0_52 = arith.constant 0 : index
    %c0_53 = arith.constant 0 : index
    %123 = vector.load %arg10[%c0_52, %c0_53] : memref<256x256xbf16, #tpu.memory_space<vmem>>, vector<256x256xbf16>
    %cst_54 = arith.constant dense<0.000000e+00> : vector<144x256xf32>
    %124 = tpu.matmul %122, %123, %cst_54 {dimension_numbers = #tpu.dot_dimension_numbers<[1], [0], [0], [1], [0, 0, 1, 1], [], []>} : vector<144x256xbf16>, vector<256x256xbf16>, vector<144x256xf32> -> vector<144x256xf32>
    %125 = vector.broadcast %9 : vector<1x256xf32> to vector<144x256xf32>
    %126 = arith.addf %124, %125 : vector<144x256xf32>
    %cst_55 = arith.constant 0.000000e+00 : f32
    %127 = vector.broadcast %cst_55 : f32 to vector<144x256xf32>
    %128 = arith.maximumf %126, %127 : vector<144x256xf32>
    %129 = vector.extract_strided_slice %128 {offsets = [0, 0], sizes = [8, 256], strides = [1, 1]} : vector<144x256xf32> to vector<8x256xf32>
    %130 = vector.extract_strided_slice %128 {offsets = [8, 0], sizes = [8, 256], strides = [1, 1]} : vector<144x256xf32> to vector<8x256xf32>
    %131 = arith.addf %129, %130 : vector<8x256xf32>
    %cst_56 = arith.constant 5.000000e-01 : f32
    %132 = vector.broadcast %cst_56 : f32 to vector<8x256xf32>
    %133 = arith.mulf %131, %132 : vector<8x256xf32>
    %134 = arith.truncf %133 : vector<8x256xf32> to vector<8x256xbf16>
    %135 = vector.extract_strided_slice %128 {offsets = [16, 0], sizes = [8, 256], strides = [1, 1]} : vector<144x256xf32> to vector<8x256xf32>
    %136 = vector.extract_strided_slice %128 {offsets = [24, 0], sizes = [8, 256], strides = [1, 1]} : vector<144x256xf32> to vector<8x256xf32>
    %137 = arith.addf %135, %136 : vector<8x256xf32>
    %cst_57 = arith.constant 5.000000e-01 : f32
    %138 = vector.broadcast %cst_57 : f32 to vector<8x256xf32>
    %139 = arith.mulf %137, %138 : vector<8x256xf32>
    %140 = arith.truncf %139 : vector<8x256xf32> to vector<8x256xbf16>
    %141 = vector.extract_strided_slice %128 {offsets = [32, 0], sizes = [8, 256], strides = [1, 1]} : vector<144x256xf32> to vector<8x256xf32>
    %142 = vector.extract_strided_slice %128 {offsets = [40, 0], sizes = [8, 256], strides = [1, 1]} : vector<144x256xf32> to vector<8x256xf32>
    %143 = arith.addf %141, %142 : vector<8x256xf32>
    %cst_58 = arith.constant 5.000000e-01 : f32
    %144 = vector.broadcast %cst_58 : f32 to vector<8x256xf32>
    %145 = arith.mulf %143, %144 : vector<8x256xf32>
    %146 = arith.truncf %145 : vector<8x256xf32> to vector<8x256xbf16>
    %147 = vector.extract_strided_slice %128 {offsets = [48, 0], sizes = [8, 256], strides = [1, 1]} : vector<144x256xf32> to vector<8x256xf32>
    %148 = vector.extract_strided_slice %128 {offsets = [56, 0], sizes = [8, 256], strides = [1, 1]} : vector<144x256xf32> to vector<8x256xf32>
    %149 = arith.addf %147, %148 : vector<8x256xf32>
    %cst_59 = arith.constant 5.000000e-01 : f32
    %150 = vector.broadcast %cst_59 : f32 to vector<8x256xf32>
    %151 = arith.mulf %149, %150 : vector<8x256xf32>
    %152 = arith.truncf %151 : vector<8x256xf32> to vector<8x256xbf16>
    %153 = vector.extract_strided_slice %128 {offsets = [64, 0], sizes = [8, 256], strides = [1, 1]} : vector<144x256xf32> to vector<8x256xf32>
    %154 = vector.extract_strided_slice %128 {offsets = [72, 0], sizes = [8, 256], strides = [1, 1]} : vector<144x256xf32> to vector<8x256xf32>
    %155 = arith.addf %153, %154 : vector<8x256xf32>
    %cst_60 = arith.constant 5.000000e-01 : f32
    %156 = vector.broadcast %cst_60 : f32 to vector<8x256xf32>
    %157 = arith.mulf %155, %156 : vector<8x256xf32>
    %158 = arith.truncf %157 : vector<8x256xf32> to vector<8x256xbf16>
    %159 = vector.extract_strided_slice %128 {offsets = [80, 0], sizes = [8, 256], strides = [1, 1]} : vector<144x256xf32> to vector<8x256xf32>
    %160 = vector.extract_strided_slice %128 {offsets = [88, 0], sizes = [8, 256], strides = [1, 1]} : vector<144x256xf32> to vector<8x256xf32>
    %161 = arith.addf %159, %160 : vector<8x256xf32>
    %cst_61 = arith.constant 5.000000e-01 : f32
    %162 = vector.broadcast %cst_61 : f32 to vector<8x256xf32>
    %163 = arith.mulf %161, %162 : vector<8x256xf32>
    %164 = arith.truncf %163 : vector<8x256xf32> to vector<8x256xbf16>
    %165 = vector.extract_strided_slice %128 {offsets = [96, 0], sizes = [8, 256], strides = [1, 1]} : vector<144x256xf32> to vector<8x256xf32>
    %166 = vector.extract_strided_slice %128 {offsets = [104, 0], sizes = [8, 256], strides = [1, 1]} : vector<144x256xf32> to vector<8x256xf32>
    %167 = arith.addf %165, %166 : vector<8x256xf32>
    %cst_62 = arith.constant 5.000000e-01 : f32
    %168 = vector.broadcast %cst_62 : f32 to vector<8x256xf32>
    %169 = arith.mulf %167, %168 : vector<8x256xf32>
    %170 = arith.truncf %169 : vector<8x256xf32> to vector<8x256xbf16>
    %171 = vector.extract_strided_slice %128 {offsets = [112, 0], sizes = [8, 256], strides = [1, 1]} : vector<144x256xf32> to vector<8x256xf32>
    %172 = vector.extract_strided_slice %128 {offsets = [120, 0], sizes = [8, 256], strides = [1, 1]} : vector<144x256xf32> to vector<8x256xf32>
    %173 = arith.addf %171, %172 : vector<8x256xf32>
    %cst_63 = arith.constant 5.000000e-01 : f32
    %174 = vector.broadcast %cst_63 : f32 to vector<8x256xf32>
    %175 = arith.mulf %173, %174 : vector<8x256xf32>
    %176 = arith.truncf %175 : vector<8x256xf32> to vector<8x256xbf16>
    %177 = vector.extract_strided_slice %128 {offsets = [128, 0], sizes = [8, 256], strides = [1, 1]} : vector<144x256xf32> to vector<8x256xf32>
    %178 = vector.extract_strided_slice %128 {offsets = [136, 0], sizes = [8, 256], strides = [1, 1]} : vector<144x256xf32> to vector<8x256xf32>
    %179 = arith.addf %177, %178 : vector<8x256xf32>
    %cst_64 = arith.constant 5.000000e-01 : f32
    %180 = vector.broadcast %cst_64 : f32 to vector<8x256xf32>
    %181 = arith.mulf %179, %180 : vector<8x256xf32>
    %182 = arith.truncf %181 : vector<8x256xf32> to vector<8x256xbf16>
    %183 = tpu.concatenate %134, %140, %146, %152, %158, %164, %170, %176, %182 in 1 : vector<8x256xbf16>, vector<8x256xbf16>, vector<8x256xbf16>, vector<8x256xbf16>, vector<8x256xbf16>, vector<8x256xbf16>, vector<8x256xbf16>, vector<8x256xbf16>, vector<8x256xbf16> -> vector<8x2304xbf16>
    %c0_65 = arith.constant 0 : index
    %c0_66 = arith.constant 0 : index
    %184 = vector.load %arg11[%c0_65, %c0_66] : memref<2304x128xbf16, #tpu.memory_space<vmem>>, vector<2304x128xbf16>
    %cst_67 = arith.constant dense<0.000000e+00> : vector<8x128xf32>
    %185 = tpu.matmul %183, %184, %cst_67 {dimension_numbers = #tpu.dot_dimension_numbers<[1], [0], [0], [1], [0, 0, 1, 1], [], []>} : vector<8x2304xbf16>, vector<2304x128xbf16>, vector<8x128xf32> -> vector<8x128xf32>
    %186 = vector.broadcast %10 : vector<1x128xf32> to vector<8x128xf32>
    %187 = arith.addf %185, %186 : vector<8x128xf32>
    %c0_68 = arith.constant 0 : index
    %c0_69 = arith.constant 0 : index
    %188 = vector.load %arg13[%c0_68, %c0_69] : memref<8x128xf32, #tpu.memory_space<vmem>>, vector<8x128xf32>
    tpu.vector_store %arg13[%c0_68, %c0_69], %187 {strides = array<i32>} : memref<8x128xf32, #tpu.memory_space<vmem>>, vector<8x128xf32>,
    return
  }
  func.func @transform_0(%arg0: i32) -> (i32, i32) {
    %c0_i32 = arith.constant 0 : i32
    %c0_i32_0 = arith.constant 0 : i32
    return %arg0, %c0_i32 : i32, i32
  }
  func.func @transform_1(%arg0: i32) -> (i32, i32) {
    %c0_i32 = arith.constant 0 : i32
    %c0_i32_0 = arith.constant 0 : i32
    %c0_i32_1 = arith.constant 0 : i32
    return %c0_i32, %c0_i32_0 : i32, i32
  }
  func.func @transform_2(%arg0: i32) -> (i32, i32) {
    %c0_i32 = arith.constant 0 : i32
    %c0_i32_0 = arith.constant 0 : i32
    %c0_i32_1 = arith.constant 0 : i32
    return %c0_i32, %c0_i32_0 : i32, i32
  }
  func.func @transform_3(%arg0: i32) -> (i32, i32, i32) {
    %c0_i32 = arith.constant 0 : i32
    %c0_i32_0 = arith.constant 0 : i32
    %c0_i32_1 = arith.constant 0 : i32
    %c0_i32_2 = arith.constant 0 : i32
    return %c0_i32, %c0_i32_0, %c0_i32_1 : i32, i32, i32
  }
  func.func @transform_4(%arg0: i32) -> (i32, i32) {
    %c0_i32 = arith.constant 0 : i32
    %c0_i32_0 = arith.constant 0 : i32
    %c0_i32_1 = arith.constant 0 : i32
    return %c0_i32, %c0_i32_0 : i32, i32
  }
  func.func @transform_5(%arg0: i32) -> (i32, i32) {
    %c0_i32 = arith.constant 0 : i32
    %c0_i32_0 = arith.constant 0 : i32
    %c0_i32_1 = arith.constant 0 : i32
    return %c0_i32, %c0_i32_0 : i32, i32
  }
  func.func @transform_6(%arg0: i32) -> (i32, i32) {
    %c0_i32 = arith.constant 0 : i32
    %c0_i32_0 = arith.constant 0 : i32
    %c0_i32_1 = arith.constant 0 : i32
    return %c0_i32, %c0_i32_0 : i32, i32
  }
  func.func @transform_7(%arg0: i32) -> (i32, i32, i32) {
    %c0_i32 = arith.constant 0 : i32
    %c0_i32_0 = arith.constant 0 : i32
    %c0_i32_1 = arith.constant 0 : i32
    %c0_i32_2 = arith.constant 0 : i32
    return %c0_i32, %c0_i32_0, %c0_i32_1 : i32, i32, i32
  }
  func.func @transform_8(%arg0: i32) -> (i32, i32) {
    %c0_i32 = arith.constant 0 : i32
    %c0_i32_0 = arith.constant 0 : i32
    %c0_i32_1 = arith.constant 0 : i32
    return %c0_i32, %c0_i32_0 : i32, i32
  }
  func.func @transform_9(%arg0: i32) -> (i32, i32) {
    %c0_i32 = arith.constant 0 : i32
    %c0_i32_0 = arith.constant 0 : i32
    %c0_i32_1 = arith.constant 0 : i32
    return %c0_i32, %c0_i32_0 : i32, i32
  }
  func.func @transform_10(%arg0: i32) -> (i32, i32) {
    %c0_i32 = arith.constant 0 : i32
    %c0_i32_0 = arith.constant 0 : i32
    %c0_i32_1 = arith.constant 0 : i32
    return %c0_i32, %c0_i32_0 : i32, i32
  }
  func.func @transform_11(%arg0: i32) -> (i32, i32) {
    %c0_i32 = arith.constant 0 : i32
    %c0_i32_0 = arith.constant 0 : i32
    %c0_i32_1 = arith.constant 0 : i32
    return %c0_i32, %c0_i32_0 : i32, i32
  }
  func.func @transform_12(%arg0: i32) -> (i32, i32) {
    %c0_i32 = arith.constant 0 : i32
    %c0_i32_0 = arith.constant 0 : i32
    return %arg0, %c0_i32 : i32, i32
  }
}

</mosaic_0001>

<llo_original>
// kernel: forward.1
$region0: #{forward.1}
  #allocation0 [shape = 'u32[]', space=smem, size = 0x4, offset = 0x4, fixed_abs, tag = 'smem constant byte address 0x4 - core index']
  #allocation1 [shape = 'u32[144,128]{1,0:T(1,128)}', space=vmem, size = 0x12000, scoped, tag = 'internal scratch']
  %s0 = inlined_call_operand.vmem [shape: bf16[576,32], index: 0, kind: input, shape index: {}]
  %s1 = inlined_call_operand.hbm [shape: bf16[32,128], index: 1, kind: input, shape index: {}]
  %s2 = inlined_call_operand.vmem [shape: bf16[128,128], index: 2, kind: input, shape index: {}]
  %s3 = inlined_call_operand.hbm [shape: bf16[3,128,128], index: 3, kind: input, shape index: {}]
  %s4 = inlined_call_operand.hbm [shape: bf16[128,128], index: 4, kind: input, shape index: {}]
  %s5 = inlined_call_operand.hbm [shape: bf16[128,256], index: 5, kind: input, shape index: {}]
  %s6 = inlined_call_operand.vmem [shape: bf16[256,256], index: 6, kind: input, shape index: {}]
  %s7 = inlined_call_operand.hbm [shape: bf16[3,256,256], index: 7, kind: input, shape index: {}]
  %s8 = inlined_call_operand.hbm [shape: bf16[256,256], index: 8, kind: input, shape index: {}]
  %s9 = inlined_call_operand.hbm [shape: bf16[256,256], index: 9, kind: input, shape index: {}]
  %s10 = inlined_call_operand.vmem [shape: bf16[2304,128], index: 10, kind: input, shape index: {}]
  %s11 = inlined_call_operand.vmem [shape: f32[10,256], index: 11, kind: input, shape index: {}]
  %s12 = inlined_call_operand.vmem [shape: f32[16,128], index: 12, kind: output, shape index: {}]
  %s13 = sld [smem:[#allocation0]]
  $region109: #{forward.1} parent=0
    _
  %s15 = ssub.s32 1, %s13
  %s16 = scalar_select 0, %s15, %s13
  $region1: #{forward.1} parent=0
    #allocation2 [shape = 'u8[8192]{0}', space=vmem, size = 0x2000, scoped, tag = 'input window, operand 1, single buffered']
    #allocation3 [shape = 's32[2]{0}', space=sflag, size = 0x8, scoped, tag = 'scoped memory for forward.1']
    #allocation4 [shape = 'u8[98304]{0}', space=vmem, size = 0x18000, scoped, tag = 'input window, operand 3, single buffered']
    #allocation5 [shape = 's32[1]{0}', space=sflag, size = 0x4, scoped, tag = 'scoped memory for forward.1']
    #allocation6 [shape = 'u8[32768]{0}', space=vmem, size = 0x8000, scoped, tag = 'input window, operand 4, single buffered']
    #allocation7 [shape = 'u8[65536]{0}', space=vmem, size = 0x10000, scoped, tag = 'input window, operand 5, single buffered']
    #allocation8 [shape = 's32[1]{0}', space=sflag, size = 0x4, scoped, tag = 'scoped memory for forward.1']
    #allocation9 [shape = 'u8[393216]{0}', space=vmem, size = 0x60000, scoped, tag = 'input window, operand 7, single buffered']
    #allocation10 [shape = 'u8[131072]{0}', space=vmem, size = 0x20000, scoped, tag = 'input window, operand 8, single buffered']
    #allocation11 [shape = 's32[1]{0}', space=sflag, size = 0x4, scoped, tag = 'scoped memory for forward.1']
    #allocation12 [shape = 'u8[131072]{0}', space=vmem, size = 0x20000, scoped, tag = 'input window, operand 9, single buffered']
    %17 = vsyncpa [#allocation3], 0
    %18 = vsyncpa [#allocation5], 0
    %19 = vsyncpa [#allocation8], 0
    %20 = vsyncpa [#allocation11], 0
    loop: start=0, step=1, limit=4
    $region2: #{forward.1} parent=1 // loop_pre_header
      _
    $region3: #{forward.1} parent=1 // loop_header
      %s22 = sphi 0, %s26
      %p23 = scmp.ge.s32.totalorder %s22, 4
      %s32 = sphi 0, %s34
      %s35 = sphi 0, %s32
      %s36 = sphi 0, %s35
      %s52 = sphi 0, %s36
      %s56 = sphi 0, %s56
      %s58 = sphi 0, %s56
      %s59 = sphi 0, %s58
      %s73 = sphi 0, %s59
      %s77 = sphi 0, %s77
      %s79 = sphi 0, %s77
      %s80 = sphi 0, %s79
      %s94 = sphi 0, %s80
      %s98 = sphi 0, %s98
      %s100 = sphi 0, %s98
      %s101 = sphi 0, %s100
      %s115 = sphi 0, %s101
      %s119 = sphi 0, %s119
      %s121 = sphi 0, %s119
      %s122 = sphi 0, %s121
      %s136 = sphi 0, %s122
      %s140 = sphi 0, %s140
      %s142 = sphi 0, %s140
      %s143 = sphi 0, %s142
      %s157 = sphi 0, %s143
      %s161 = sphi 0, %s161
      %s163 = sphi 0, %s161
      %s164 = sphi 0, %s163
      %s178 = sphi 0, %s164
      %s182 = sphi 0, %s182
      %s184 = sphi 0, %s182
      %s185 = sphi 0, %s184
      %s199 = sphi 0, %s185
      %s203 = sphi 0, %s203
      %s205 = sphi 0, %s203
      %s206 = sphi 0, %s205
      %s220 = sphi 0, %s206
      %s224 = sphi 0, %s224
      %s226 = sphi 0, %s224
      %s227 = sphi 0, %s226
      %s241 = sphi 0, %s227
      %s245 = sphi 0, %s245
      %s247 = sphi 0, %s245
      %s248 = sphi 0, %s247
      %s262 = sphi 0, %s248
      %s266 = sphi 0, %s266
      %s268 = sphi 0, %s266
      %s269 = sphi 0, %s268
      %s283 = sphi 0, %s269
      %s289 = sphi 0, %s291
      %s292 = sphi 0, %s289
      %s293 = sphi 0, %s292
      %s309 = sphi 0, %s293
    $region4: #{forward.1} parent=1 // loop_header_branch
      %25 = sbr.rel (%p23) target = $region8
    $region5: #{forward.1} parent=1 // loop_body
      %s27 = ssub.s32 %s22, 1
      %s28 = ssub.s32 %s22, 2
      %s29 = sadd.s32 %s22, 1
      %s30 = ssub.s32 %s22, %s29
      %p31 = scmp.eq.s32.totalorder %s30, 0
      %s33 = sadd.s32 %s32, 1
      %s34 = scalar_select %p31, %s32, %s33
      %p37 = pneg %p31
      %p38 = scmp.eq.s32.totalorder %s22, 1
      %p39 = por %p37, %p38
      %p40 = scmp.ne.s32.totalorder %s32, %s35
      %p41 = scmp.eq.s32.totalorder %s22, 0
      %p42 = por %p40, %p41
      %p43 = scmp.ne.s32.totalorder %s32, %s35
      %p44 = scmp.eq.s32.totalorder %s27, 1
      %p45 = por %p43, %p44
      %p46 = scmp.ne.s32.totalorder %s35, %s36
      %p47 = scmp.eq.s32.totalorder %s27, 0
      %p48 = por %p46, %p47
      %p49 = scmp.ne.s32.totalorder %s35, %s36
      %p50 = scmp.eq.s32.totalorder %s28, 1
      %p51 = por %p49, %p50
      %p53 = scmp.ne.s32.totalorder %s36, %s52
      %p54 = scmp.eq.s32.totalorder %s28, 0
      %p55 = por %p53, %p54
      %s57 = sadd.s32 %s56, 1
      %p60 = scmp.eq.s32.totalorder %s22, 1
      %p61 = scmp.ne.s32.totalorder %s56, %s58
      %p62 = scmp.eq.s32.totalorder %s22, 0
      %p63 = por %p61, %p62
      %p64 = scmp.ne.s32.totalorder %s56, %s58
      %p65 = scmp.eq.s32.totalorder %s27, 1
      %p66 = por %p64, %p65
      %p67 = scmp.ne.s32.totalorder %s58, %s59
      %p68 = scmp.eq.s32.totalorder %s27, 0
      %p69 = por %p67, %p68
      %p70 = scmp.ne.s32.totalorder %s58, %s59
      %p71 = scmp.eq.s32.totalorder %s28, 1
      %p72 = por %p70, %p71
      %p74 = scmp.ne.s32.totalorder %s59, %s73
      %p75 = scmp.eq.s32.totalorder %s28, 0
      %p76 = por %p74, %p75
      %s78 = sadd.s32 %s77, 1
      %p81 = scmp.eq.s32.totalorder %s22, 1
      %p82 = scmp.ne.s32.totalorder %s77, %s79
      %p83 = scmp.eq.s32.totalorder %s22, 0
      %p84 = por %p82, %p83
      %p85 = scmp.ne.s32.totalorder %s77, %s79
      %p86 = scmp.eq.s32.totalorder %s27, 1
      %p87 = por %p85, %p86
      %p88 = scmp.ne.s32.totalorder %s79, %s80
      %p89 = scmp.eq.s32.totalorder %s27, 0
      %p90 = por %p88, %p89
      %p91 = scmp.ne.s32.totalorder %s79, %s80
      %p92 = scmp.eq.s32.totalorder %s28, 1
      %p93 = por %p91, %p92
      %p95 = scmp.ne.s32.totalorder %s80, %s94
      %p96 = scmp.eq.s32.totalorder %s28, 0
      %p97 = por %p95, %p96
      %s99 = sadd.s32 %s98, 1
      %p102 = scmp.eq.s32.totalorder %s22, 1
      %p103 = scmp.ne.s32.totalorder %s98, %s100
      %p104 = scmp.eq.s32.totalorder %s22, 0
      %p105 = por %p103, %p104
      %p106 = scmp.ne.s32.totalorder %s98, %s100
      %p107 = scmp.eq.s32.totalorder %s27, 1
      %p108 = por %p106, %p107
      %p109 = scmp.ne.s32.totalorder %s100, %s101
      %p110 = scmp.eq.s32.totalorder %s27, 0
      %p111 = por %p109, %p110
      %p112 = scmp.ne.s32.totalorder %s100, %s101
      %p113 = scmp.eq.s32.totalorder %s28, 1
      %p114 = por %p112, %p113
      %p116 = scmp.ne.s32.totalorder %s101, %s115
      %p117 = scmp.eq.s32.totalorder %s28, 0
      %p118 = por %p116, %p117
      %s120 = sadd.s32 %s119, 1
      %p123 = scmp.eq.s32.totalorder %s22, 1
      %p124 = scmp.ne.s32.totalorder %s119, %s121
      %p125 = scmp.eq.s32.totalorder %s22, 0
      %p126 = por %p124, %p125
      %p127 = scmp.ne.s32.totalorder %s119, %s121
      %p128 = scmp.eq.s32.totalorder %s27, 1
      %p129 = por %p127, %p128
      %p130 = scmp.ne.s32.totalorder %s121, %s122
      %p131 = scmp.eq.s32.totalorder %s27, 0
      %p132 = por %p130, %p131
      %p133 = scmp.ne.s32.totalorder %s121, %s122
      %p134 = scmp.eq.s32.totalorder %s28, 1
      %p135 = por %p133, %p134
      %p137 = scmp.ne.s32.totalorder %s122, %s136
      %p138 = scmp.eq.s32.totalorder %s28, 0
      %p139 = por %p137, %p138
      %s141 = sadd.s32 %s140, 1
      %p144 = scmp.eq.s32.totalorder %s22, 1
      %p145 = scmp.ne.s32.totalorder %s140, %s142
      %p146 = scmp.eq.s32.totalorder %s22, 0
      %p147 = por %p145, %p146
      %p148 = scmp.ne.s32.totalorder %s140, %s142
      %p149 = scmp.eq.s32.totalorder %s27, 1
      %p150 = por %p148, %p149
      %p151 = scmp.ne.s32.totalorder %s142, %s143
      %p152 = scmp.eq.s32.totalorder %s27, 0
      %p153 = por %p151, %p152
      %p154 = scmp.ne.s32.totalorder %s142, %s143
      %p155 = scmp.eq.s32.totalorder %s28, 1
      %p156 = por %p154, %p155
      %p158 = scmp.ne.s32.totalorder %s143, %s157
      %p159 = scmp.eq.s32.totalorder %s28, 0
      %p160 = por %p158, %p159
      %s162 = sadd.s32 %s161, 1
      %p165 = scmp.eq.s32.totalorder %s22, 1
      %p166 = scmp.ne.s32.totalorder %s161, %s163
      %p167 = scmp.eq.s32.totalorder %s22, 0
      %p168 = por %p166, %p167
      %p169 = scmp.ne.s32.totalorder %s161, %s163
      %p170 = scmp.eq.s32.totalorder %s27, 1
      %p171 = por %p169, %p170
      %p172 = scmp.ne.s32.totalorder %s163, %s164
      %p173 = scmp.eq.s32.totalorder %s27, 0
      %p174 = por %p172, %p173
      %p175 = scmp.ne.s32.totalorder %s163, %s164
      %p176 = scmp.eq.s32.totalorder %s28, 1
      %p177 = por %p175, %p176
      %p179 = scmp.ne.s32.totalorder %s164, %s178
      %p180 = scmp.eq.s32.totalorder %s28, 0
      %p181 = por %p179, %p180
      %s183 = sadd.s32 %s182, 1
      %p186 = scmp.eq.s32.totalorder %s22, 1
      %p187 = scmp.ne.s32.totalorder %s182, %s184
      %p188 = scmp.eq.s32.totalorder %s22, 0
      %p189 = por %p187, %p188
      %p190 = scmp.ne.s32.totalorder %s182, %s184
      %p191 = scmp.eq.s32.totalorder %s27, 1
      %p192 = por %p190, %p191
      %p193 = scmp.ne.s32.totalorder %s184, %s185
      %p194 = scmp.eq.s32.totalorder %s27, 0
      %p195 = por %p193, %p194
      %p196 = scmp.ne.s32.totalorder %s184, %s185
      %p197 = scmp.eq.s32.totalorder %s28, 1
      %p198 = por %p196, %p197
      %p200 = scmp.ne.s32.totalorder %s185, %s199
      %p201 = scmp.eq.s32.totalorder %s28, 0
      %p202 = por %p200, %p201
      %s204 = sadd.s32 %s203, 1
      %p207 = scmp.eq.s32.totalorder %s22, 1
      %p208 = scmp.ne.s32.totalorder %s203, %s205
      %p209 = scmp.eq.s32.totalorder %s22, 0
      %p210 = por %p208, %p209
      %p211 = scmp.ne.s32.totalorder %s203, %s205
      %p212 = scmp.eq.s32.totalorder %s27, 1
      %p213 = por %p211, %p212
      %p214 = scmp.ne.s32.totalorder %s205, %s206
      %p215 = scmp.eq.s32.totalorder %s27, 0
      %p216 = por %p214, %p215
      %p217 = scmp.ne.s32.totalorder %s205, %s206
      %p218 = scmp.eq.s32.totalorder %s28, 1
      %p219 = por %p217, %p218
      %p221 = scmp.ne.s32.totalorder %s206, %s220
      %p222 = scmp.eq.s32.totalorder %s28, 0
      %p223 = por %p221, %p222
      %s225 = sadd.s32 %s224, 1
      %p228 = scmp.eq.s32.totalorder %s22, 1
      %p229 = scmp.ne.s32.totalorder %s224, %s226
      %p230 = scmp.eq.s32.totalorder %s22, 0
      %p231 = por %p229, %p230
      %p232 = scmp.ne.s32.totalorder %s224, %s226
      %p233 = scmp.eq.s32.totalorder %s27, 1
      %p234 = por %p232, %p233
      %p235 = scmp.ne.s32.totalorder %s226, %s227
      %p236 = scmp.eq.s32.totalorder %s27, 0
      %p237 = por %p235, %p236
      %p238 = scmp.ne.s32.totalorder %s226, %s227
      %p239 = scmp.eq.s32.totalorder %s28, 1
      %p240 = por %p238, %p239
      %p242 = scmp.ne.s32.totalorder %s227, %s241
      %p243 = scmp.eq.s32.totalorder %s28, 0
      %p244 = por %p242, %p243
      %s246 = sadd.s32 %s245, 1
      %p249 = scmp.eq.s32.totalorder %s22, 1
      %p250 = scmp.ne.s32.totalorder %s245, %s247
      %p251 = scmp.eq.s32.totalorder %s22, 0
      %p252 = por %p250, %p251
      %p253 = scmp.ne.s32.totalorder %s245, %s247
      %p254 = scmp.eq.s32.totalorder %s27, 1
      %p255 = por %p253, %p254
      %p256 = scmp.ne.s32.totalorder %s247, %s248
      %p257 = scmp.eq.s32.totalorder %s27, 0
      %p258 = por %p256, %p257
      %p259 = scmp.ne.s32.totalorder %s247, %s248
      %p260 = scmp.eq.s32.totalorder %s28, 1
      %p261 = por %p259, %p260
      %p263 = scmp.ne.s32.totalorder %s248, %s262
      %p264 = scmp.eq.s32.totalorder %s28, 0
      %p265 = por %p263, %p264
      %s267 = sadd.s32 %s266, 1
      %p270 = scmp.eq.s32.totalorder %s22, 1
      %p271 = scmp.ne.s32.totalorder %s266, %s268
      %p272 = scmp.eq.s32.totalorder %s22, 0
      %p273 = por %p271, %p272
      %p274 = scmp.ne.s32.totalorder %s266, %s268
      %p275 = scmp.eq.s32.totalorder %s27, 1
      %p276 = por %p274, %p275
      %p277 = scmp.ne.s32.totalorder %s268, %s269
      %p278 = scmp.eq.s32.totalorder %s27, 0
      %p279 = por %p277, %p278
      %p280 = scmp.ne.s32.totalorder %s268, %s269
      %p281 = scmp.eq.s32.totalorder %s28, 1
      %p282 = por %p280, %p281
      %p284 = scmp.ne.s32.totalorder %s269, %s283
      %p285 = scmp.eq.s32.totalorder %s28, 0
      %p286 = por %p284, %p285
      %s287 = ssub.s32 %s22, %s29
      %p288 = scmp.eq.s32.totalorder %s287, 0
      %s290 = sadd.s32 %s289, 1
      %s291 = scalar_select %p288, %s289, %s290
      %p294 = pneg %p288
      %p295 = scmp.eq.s32.totalorder %s22, 1
      %p296 = por %p294, %p295
      %p297 = scmp.ne.s32.totalorder %s289, %s292
      %p298 = scmp.eq.s32.totalorder %s22, 0
      %p299 = por %p297, %p298
      %p300 = scmp.ne.s32.totalorder %s289, %s292
      %p301 = scmp.eq.s32.totalorder %s27, 1
      %p302 = por %p300, %p301
      %p303 = scmp.ne.s32.totalorder %s292, %s293
      %p304 = scmp.eq.s32.totalorder %s27, 0
      %p305 = por %p303, %p304
      %p306 = scmp.ne.s32.totalorder %s292, %s293
      %p307 = scmp.eq.s32.totalorder %s28, 1
      %p308 = por %p306, %p307
      %p310 = scmp.ne.s32.totalorder %s293, %s309
      %p311 = scmp.eq.s32.totalorder %s28, 0
      %p312 = por %p310, %p311
      %p313 = scmp.le.s32.totalorder 1, %s22
      %p314 = scmp.lt.s32.totalorder %s22, 3
      %p315 = pnand %p313, %p314
      %p316 = pneg %p315
      // Predicated region
      $region9: #{forward.1} parent=5 // pred_check
        _
      $region10: #{forward.1} parent=5 // pred_check_branch
        %318 = sbr.rel (%p315) target = $region12
      $region11: #{forward.1} parent=5 // pred_region
        %s319 = ssub.s32 %s22, 1
        // Predicated region
        $region13: #{forward.1} parent=11 // pred_check
          %p320 = pneg %p69
        $region14: #{forward.1} parent=11 // pred_check_branch
          %322 = sbr.rel (%p320) target = $region16
        $region15: #{forward.1} parent=11 // pred_region
          %s324 = ssub.s32 256, 256
          %325 = vsyncadd [#allocation3], %s324
          %s326 = sshll.u32 [#allocation2], 4
          %s327 = int_to_ptr.vmem [resolvable:$true] %s326
          %332 = dma.hbm_to_vmem [thread:$0]  %s1, 256, %s327, [#allocation3], 64, 64, 4
        $region16: #{forward.1} parent=11 // pred_fallthru
          _
        // Predicated region
        $region17: #{forward.1} parent=11 // pred_check
          %p333 = pneg %p90
        $region18: #{forward.1} parent=11 // pred_check_branch
          %335 = sbr.rel (%p333) target = $region20
        $region19: #{forward.1} parent=11 // pred_region
          _
        $region20: #{forward.1} parent=11 // pred_fallthru
          _
        // Predicated region
        $region21: #{forward.1} parent=11 // pred_check
          %p336 = pneg %p111
        $region22: #{forward.1} parent=11 // pred_check_branch
          %338 = sbr.rel (%p336) target = $region24
        $region23: #{forward.1} parent=11 // pred_region
          %s340 = ssub.s32 3072, 3072
          %341 = vsyncadd [#allocation5], %s340
          %s342 = sshll.u32 [#allocation4], 4
          %s343 = int_to_ptr.vmem [resolvable:$true] %s342
          %348 = dma.hbm_to_vmem [thread:$0]  %s3, 3072, %s343, [#allocation5], 64, 64, 4
        $region24: #{forward.1} parent=11 // pred_fallthru
          _
        // Predicated region
        $region25: #{forward.1} parent=11 // pred_check
          %p349 = pneg %p132
        $region26: #{forward.1} parent=11 // pred_check_branch
          %351 = sbr.rel (%p349) target = $region28
        $region27: #{forward.1} parent=11 // pred_region
          %s353 = ssub.s32 1024, 1024
          %354 = vsyncadd [#allocation5], %s353
          %s355 = sshll.u32 [#allocation6], 4
          %s356 = int_to_ptr.vmem [resolvable:$true] %s355
          %361 = dma.hbm_to_vmem [thread:$0]  %s4, 1024, %s356, [#allocation5], 64, 64, 4
        $region28: #{forward.1} parent=11 // pred_fallthru
          _
        // Predicated region
        $region29: #{forward.1} parent=11 // pred_check
          %p362 = pneg %p153
        $region30: #{forward.1} parent=11 // pred_check_branch
          %364 = sbr.rel (%p362) target = $region32
        $region31: #{forward.1} parent=11 // pred_region
          %s366 = ssub.s32 2048, 2048
          %367 = vsyncadd [#allocation8], %s366
          %s368 = sshll.u32 [#allocation7], 4
          %s369 = int_to_ptr.vmem [resolvable:$true] %s368
          %374 = dma.hbm_to_vmem [thread:$0]  %s5, 2048, %s369, [#allocation8], 128, 128, 8
        $region32: #{forward.1} parent=11 // pred_fallthru
          _
        // Predicated region
        $region33: #{forward.1} parent=11 // pred_check
          %p375 = pneg %p174
        $region34: #{forward.1} parent=11 // pred_check_branch
          %377 = sbr.rel (%p375) target = $region36
        $region35: #{forward.1} parent=11 // pred_region
          _
        $region36: #{forward.1} parent=11 // pred_fallthru
          _
        // Predicated region
        $region37: #{forward.1} parent=11 // pred_check
          %p378 = pneg %p195
        $region38: #{forward.1} parent=11 // pred_check_branch
          %380 = sbr.rel (%p378) target = $region40
        $region39: #{forward.1} parent=11 // pred_region
          %s382 = ssub.s32 12288, 12288
          %383 = vsyncadd [#allocation8], %s382
          %s384 = sshll.u32 [#allocation9], 4
          %s385 = int_to_ptr.vmem [resolvable:$true] %s384
          %390 = dma.hbm_to_vmem [thread:$0]  %s7, 12288, %s385, [#allocation8], 128, 128, 8
        $region40: #{forward.1} parent=11 // pred_fallthru
          _
        // Predicated region
        $region41: #{forward.1} parent=11 // pred_check
          %p391 = pneg %p216
        $region42: #{forward.1} parent=11 // pred_check_branch
          %393 = sbr.rel (%p391) target = $region44
        $region43: #{forward.1} parent=11 // pred_region
          %s395 = ssub.s32 4096, 4096
          %396 = vsyncadd [#allocation11], %s395
          %s397 = sshll.u32 [#allocation10], 4
          %s398 = int_to_ptr.vmem [resolvable:$true] %s397
          %403 = dma.hbm_to_vmem [thread:$0]  %s8, 4096, %s398, [#allocation11], 128, 128, 8
        $region44: #{forward.1} parent=11 // pred_fallthru
          _
        // Predicated region
        $region45: #{forward.1} parent=11 // pred_check
          %p404 = pneg %p237
        $region46: #{forward.1} parent=11 // pred_check_branch
          %406 = sbr.rel (%p404) target = $region48
        $region47: #{forward.1} parent=11 // pred_region
          %s408 = ssub.s32 4096, 4096
          %409 = vsyncadd [#allocation11], %s408
          %s410 = sshll.u32 [#allocation12], 4
          %s411 = int_to_ptr.vmem [resolvable:$true] %s410
          %416 = dma.hbm_to_vmem [thread:$0]  %s9, 4096, %s411, [#allocation11], 128, 128, 8
        $region48: #{forward.1} parent=11 // pred_fallthru
          _
        // Predicated region
        $region49: #{forward.1} parent=11 // pred_check
          %p417 = pneg %p258
        $region50: #{forward.1} parent=11 // pred_check_branch
          %419 = sbr.rel (%p417) target = $region52
        $region51: #{forward.1} parent=11 // pred_region
          _
        $region52: #{forward.1} parent=11 // pred_fallthru
          _
        // Predicated region
        $region53: #{forward.1} parent=11 // pred_check
          %p420 = pneg %p279
        $region54: #{forward.1} parent=11 // pred_check_branch
          %422 = sbr.rel (%p420) target = $region56
        $region55: #{forward.1} parent=11 // pred_region
          _
        $region56: #{forward.1} parent=11 // pred_fallthru
          _
      $region12: #{forward.1} parent=5 // pred_fallthru
        _
      %p423 = scmp.lt.s32.totalorder %s22, 2
      // Predicated region
      $region57: #{forward.1} parent=5 // pred_check
        %p424 = pneg %p423
      $region58: #{forward.1} parent=5 // pred_check_branch
        %426 = sbr.rel (%p424) target = $region60
      $region59: #{forward.1} parent=5 // pred_region
        // Predicated region
        $region61: #{forward.1} parent=59 // pred_check
          %p427 = pneg %p42
        $region62: #{forward.1} parent=59 // pred_check_branch
          %429 = sbr.rel (%p427) target = $region64
        $region63: #{forward.1} parent=59 // pred_region
          %s430 = smul.u32 36, %s22
          %p431 = scmp.lt.s32.totalorder %s430, 71
          %s432 = scalar_select %p431, %s430, 71
          %s433 = smul.addr %s432, 4
          %s434 = scalar_lea.vmem %s0, %s433
          %s435 = smul.u32 36, %s22
        $region64: #{forward.1} parent=59 // pred_fallthru
          _
      $region60: #{forward.1} parent=5 // pred_fallthru
        _
      %p436 = scmp.le.s32.totalorder 1, %s22
      %p437 = scmp.lt.s32.totalorder %s22, 3
      %p438 = pnand %p436, %p437
      %p439 = pneg %p438
      // Predicated region
      $region65: #{forward.1} parent=5 // pred_check
        _
      $region66: #{forward.1} parent=5 // pred_check_branch
        %441 = sbr.rel (%p438) target = $region68
      $region67: #{forward.1} parent=5 // pred_region
        %s442 = ssub.s32 %s22, 1
        // Predicated region
        $region69: #{forward.1} parent=67 // pred_check
          %p443 = pneg %p69
        $region70: #{forward.1} parent=67 // pred_check_branch
          %445 = sbr.rel (%p443) target = $region72
        $region71: #{forward.1} parent=67 // pred_region
          %446 = dma.done [#allocation3], 256
        $region72: #{forward.1} parent=67 // pred_fallthru
          _
        // Predicated region
        $region73: #{forward.1} parent=67 // pred_check
          %p447 = pneg %p111
        $region74: #{forward.1} parent=67 // pred_check_branch
          %449 = sbr.rel (%p447) target = $region76
        $region75: #{forward.1} parent=67 // pred_region
          %450 = dma.done [#allocation5], 3072
        $region76: #{forward.1} parent=67 // pred_fallthru
          _
        // Predicated region
        $region77: #{forward.1} parent=67 // pred_check
          %p451 = pneg %p132
        $region78: #{forward.1} parent=67 // pred_check_branch
          %453 = sbr.rel (%p451) target = $region80
        $region79: #{forward.1} parent=67 // pred_region
          %454 = dma.done [#allocation5], 1024
        $region80: #{forward.1} parent=67 // pred_fallthru
          _
        // Predicated region
        $region81: #{forward.1} parent=67 // pred_check
          %p455 = pneg %p153
        $region82: #{forward.1} parent=67 // pred_check_branch
          %457 = sbr.rel (%p455) target = $region84
        $region83: #{forward.1} parent=67 // pred_region
          %458 = dma.done [#allocation8], 2048
        $region84: #{forward.1} parent=67 // pred_fallthru
          _
        // Predicated region
        $region85: #{forward.1} parent=67 // pred_check
          %p459 = pneg %p195
        $region86: #{forward.1} parent=67 // pred_check_branch
          %461 = sbr.rel (%p459) target = $region88
        $region87: #{forward.1} parent=67 // pred_region
          %462 = dma.done [#allocation8], 12288
        $region88: #{forward.1} parent=67 // pred_fallthru
          _
        // Predicated region
        $region89: #{forward.1} parent=67 // pred_check
          %p463 = pneg %p216
        $region90: #{forward.1} parent=67 // pred_check_branch
          %465 = sbr.rel (%p463) target = $region92
        $region91: #{forward.1} parent=67 // pred_region
          %466 = dma.done [#allocation11], 4096
        $region92: #{forward.1} parent=67 // pred_fallthru
          _
        // Predicated region
        $region93: #{forward.1} parent=67 // pred_check
          %p467 = pneg %p237
        $region94: #{forward.1} parent=67 // pred_check_branch
          %469 = sbr.rel (%p467) target = $region96
        $region95: #{forward.1} parent=67 // pred_region
          %470 = dma.done [#allocation11], 4096
        $region96: #{forward.1} parent=67 // pred_fallthru
          _
        %s471 = smul.u32 36, %s27
        %p472 = scmp.lt.s32.totalorder %s471, 71
        %s473 = scalar_select %p472, %s471, 71
        %s474 = smul.addr %s473, 4
        %s475 = scalar_lea.vmem %s0, %s474
        %p476 = pneg %p48
        %p477 = pneg %p45
        %p478 = pneg %p69
        %p479 = pneg %p66
        %p480 = pneg %p90
        %p481 = pneg %p87
        %p482 = pneg %p111
        %p483 = pneg %p108
        %p484 = pneg %p132
        %p485 = pneg %p129
        %p486 = pneg %p153
        %p487 = pneg %p150
        %p488 = pneg %p174
        %p489 = pneg %p171
        %p490 = pneg %p195
        %p491 = pneg %p192
        %p492 = pneg %p216
        %p493 = pneg %p213
        %p494 = pneg %p237
        %p495 = pneg %p234
        %p496 = pneg %p258
        %p497 = pneg %p255
        %p498 = pneg %p279
        %p499 = pneg %p276
        %p500 = pneg %p305
        %p501 = pneg %p302
        %p502 = scmp.lt.s32.totalorder %s27, 1
        %s503 = scalar_select %p502, %s27, 1
        %s504 = smul.addr %s503, 8
        %s505 = scalar_lea.vmem %s12, %s504
        %s506 = smul.u32 36, %s27
        %p507 = scmp.lt.s32.totalorder %s506, 71
        %s508 = scalar_select %p507, %s506, 71
        %s509 = smul.addr %s508, 4
        %s510 = scalar_lea.vmem %s0, %s509
        %s511 = smul.u32 36, %s27
        %p512 = scmp.lt.s32.totalorder %s27, 1
        %s513 = scalar_select %p512, %s27, 1
        %s514 = smul.addr %s513, 8
        %s515 = scalar_lea.vmem %s12, %s514
        %v517 = vld [vmem:[%s11] sm:$0xff]
        %v518 = vld [vmem:[%s11 + $0x8] sm:$0xff]
        %v519 = vld [vmem:[%s11 + $0x10] sm:$0x3]
        %v520 = vld [vmem:[%s11 + $0x18] sm:$0x3]
        %v521 = vld [vmem:[%s510] sm:$0xf]
        %v522 = vld [vmem:[%s510 + $0x4] sm:$0xf]
        %v523 = vld [vmem:[%s510 + $0x8] sm:$0xf]
        %v524 = vld [vmem:[%s510 + $0xc] sm:$0xf]
        %v525 = vld [vmem:[%s510 + $0x10] sm:$0xf]
        %v526 = vld [vmem:[%s510 + $0x14] sm:$0xf]
        %v527 = vld [vmem:[%s510 + $0x18] sm:$0xf]
        %v528 = vld [vmem:[%s510 + $0x1c] sm:$0xf]
        %v529 = vld [vmem:[%s510 + $0x20] sm:$0xf]
        %v530 = vld [vmem:[%s510 + $0x24] sm:$0xf]
        %v531 = vld [vmem:[%s510 + $0x28] sm:$0xf]
        %v532 = vld [vmem:[%s510 + $0x2c] sm:$0xf]
        %v533 = vld [vmem:[%s510 + $0x30] sm:$0xf]
        %v534 = vld [vmem:[%s510 + $0x34] sm:$0xf]
        %v535 = vld [vmem:[%s510 + $0x38] sm:$0xf]
        %v536 = vld [vmem:[%s510 + $0x3c] sm:$0xf]
        %v537 = vld [vmem:[%s510 + $0x40] sm:$0xf]
        %v538 = vld [vmem:[%s510 + $0x44] sm:$0xf]
        %v539 = vld [vmem:[%s510 + $0x48] sm:$0xf]
        %v540 = vld [vmem:[%s510 + $0x4c] sm:$0xf]
        %v541 = vld [vmem:[%s510 + $0x50] sm:$0xf]
        %v542 = vld [vmem:[%s510 + $0x54] sm:$0xf]
        %v543 = vld [vmem:[%s510 + $0x58] sm:$0xf]
        %v544 = vld [vmem:[%s510 + $0x5c] sm:$0xf]
        %v545 = vld [vmem:[%s510 + $0x60] sm:$0xf]
        %v546 = vld [vmem:[%s510 + $0x64] sm:$0xf]
        %v547 = vld [vmem:[%s510 + $0x68] sm:$0xf]
        %v548 = vld [vmem:[%s510 + $0x6c] sm:$0xf]
        %v549 = vld [vmem:[%s510 + $0x70] sm:$0xf]
        %v550 = vld [vmem:[%s510 + $0x74] sm:$0xf]
        %v551 = vld [vmem:[%s510 + $0x78] sm:$0xf]
        %v552 = vld [vmem:[%s510 + $0x7c] sm:$0xf]
        %v553 = vld [vmem:[%s510 + $0x80] sm:$0xf]
        %v554 = vld [vmem:[%s510 + $0x84] sm:$0xf]
        %v555 = vld [vmem:[%s510 + $0x88] sm:$0xf]
        %v556 = vld [vmem:[%s510 + $0x8c] sm:$0xf]
        %v557 = vld [vmem:[#allocation2] sm:$0xf]
        %v558 = vld [vmem:[#allocation2 + $0x4] sm:$0xf]
        %v559 = vld [vmem:[#allocation2 + $0x8] sm:$0xf]
        %v560 = vld [vmem:[#allocation2 + $0xc] sm:$0xf]
        %v561 = vlaneseq
        %v562 = vshrl.u32 %v561, 7
        %v563 = vsub.s32 0, %v562
        %v564 = vrot.slane %v517, %v563
        %v601 = vunpack.c.l.b16 %v521
        %v602 = vunpack.c.l.b16 %v522
        %v603 = vunpack.c.l.b16 %v523
        %v604 = vunpack.c.l.b16 %v524
        %v605 = vunpack.c.l.b16 %v525
        %v606 = vunpack.c.l.b16 %v526
        %v607 = vunpack.c.l.b16 %v527
        %v608 = vunpack.c.l.b16 %v528
        %v609 = vunpack.c.l.b16 %v529
        %v610 = vunpack.c.l.b16 %v530
        %v611 = vunpack.c.l.b16 %v531
        %v612 = vunpack.c.l.b16 %v532
        %v613 = vunpack.c.l.b16 %v533
        %v614 = vunpack.c.l.b16 %v534
        %v615 = vunpack.c.l.b16 %v535
        %v616 = vunpack.c.l.b16 %v536
        %v617 = vunpack.c.l.b16 %v537
        %v618 = vunpack.c.l.b16 %v538
        %v619 = vunpack.c.l.b16 %v539
        %v620 = vunpack.c.l.b16 %v540
        %v621 = vunpack.c.l.b16 %v541
        %v622 = vunpack.c.l.b16 %v542
        %v623 = vunpack.c.l.b16 %v543
        %v624 = vunpack.c.l.b16 %v544
        %v625 = vunpack.c.l.b16 %v545
        %v626 = vunpack.c.l.b16 %v546
        %v627 = vunpack.c.l.b16 %v547
        %v628 = vunpack.c.l.b16 %v548
        %v629 = vunpack.c.l.b16 %v549
        %v630 = vunpack.c.l.b16 %v550
        %v631 = vunpack.c.l.b16 %v551
        %v632 = vunpack.c.l.b16 %v552
        %v633 = vunpack.c.l.b16 %v553
        %v634 = vunpack.c.l.b16 %v554
        %v635 = vunpack.c.l.b16 %v555
        %v636 = vunpack.c.l.b16 %v556
        %v637 = vpack.c.b16 %v602, %v601
        %v638 = vpack.c.b16 %v604, %v603
        %v639 = vpack.c.b16 %v606, %v605
        %v640 = vpack.c.b16 %v608, %v607
        %v641 = vpack.c.b16 %v610, %v609
        %v642 = vpack.c.b16 %v612, %v611
        %v643 = vpack.c.b16 %v614, %v613
        %v644 = vpack.c.b16 %v616, %v615
        %v645 = vpack.c.b16 %v618, %v617
        %v646 = vpack.c.b16 %v620, %v619
        %v647 = vpack.c.b16 %v622, %v621
        %v648 = vpack.c.b16 %v624, %v623
        %v649 = vpack.c.b16 %v626, %v625
        %v650 = vpack.c.b16 %v628, %v627
        %v651 = vpack.c.b16 %v630, %v629
        %v652 = vpack.c.b16 %v632, %v631
        %v653 = vpack.c.b16 %v634, %v633
        %v654 = vpack.c.b16 %v636, %v635
        %v659 = vunpack.c.l.b16 %v557
        %v660 = vunpack.c.l.b16 %v558
        %v661 = vunpack.c.l.b16 %v559
        %v662 = vunpack.c.l.b16 %v560
        %v663 = vpack.c.b16 %v660, %v659
        %v664 = vpack.c.b16 %v662, %v661
        %vm667 = vcmask 261120
        %v669 = vsel %vm667, %v637, 0
        %v672 = vsel %vm667, %v638, 0
        %v675 = vsel %vm667, %v639, 0
        %v678 = vsel %vm667, %v640, 0
        %v681 = vsel %vm667, %v641, 0
        %v684 = vsel %vm667, %v642, 0
        %v687 = vsel %vm667, %v643, 0
        %v690 = vsel %vm667, %v644, 0
        %v693 = vsel %vm667, %v645, 0
        %v696 = vsel %vm667, %v646, 0
        %v699 = vsel %vm667, %v647, 0
        %v702 = vsel %vm667, %v648, 0
        %v705 = vsel %vm667, %v649, 0
        %v708 = vsel %vm667, %v650, 0
        %v711 = vsel %vm667, %v651, 0
        %v714 = vsel %vm667, %v652, 0
        %v717 = vsel %vm667, %v653, 0
        %v720 = vsel %vm667, %v654, 0
        %722 = vmatprep.subr.bf16.mxu0 0
        %723 = vmatpush1.bf16.msra.mxu0 %v663
        %724 = vmatprep.subr.bf16.mxu0 0
        %725 = vmatpush1.bf16.msra.mxu0 %v664
        %726 = vmatprep.subr.bf16.mxu0 0
        %727 = vmatpush1.bf16.msra.mxu0 0
        %728 = vmatprep.subr.bf16.mxu0 0
        %729 = vmatpush1.bf16.msra.mxu0 0
        %730 = vmatprep.subr.bf16.mxu0 0
        %731 = vmatpush1.bf16.msra.mxu0 0
        %732 = vmatprep.subr.bf16.mxu0 0
        %733 = vmatpush1.bf16.msra.mxu0 0
        %734 = vmatprep.subr.bf16.mxu0 0
        %735 = vmatpush1.bf16.msra.mxu0 0
        %736 = vmatprep.subr.bf16.mxu0 0
        %737 = vmatpush1.bf16.msra.mxu0 0
        %738 = vmatprep.subr.bf16.mxu0 0
        %739 = vmatpush1.bf16.msra.mxu0 0
        %740 = vmatprep.subr.bf16.mxu0 0
        %741 = vmatpush1.bf16.msra.mxu0 0
        %742 = vmatprep.subr.bf16.mxu0 0
        %743 = vmatpush1.bf16.msra.mxu0 0
        %744 = vmatprep.subr.bf16.mxu0 0
        %745 = vmatpush1.bf16.msra.mxu0 0
        %746 = vmatprep.subr.bf16.mxu0 0
        %747 = vmatpush1.bf16.msra.mxu0 0
        %748 = vmatprep.subr.bf16.mxu0 0
        %749 = vmatpush1.bf16.msra.mxu0 0
        %750 = vmatprep.subr.bf16.mxu0 0
        %751 = vmatpush1.bf16.msra.mxu0 0
        %752 = vmatprep.subr.bf16.mxu0 0
        %753 = vmatpush1.bf16.msra.mxu0 0
        %754 = vmatprep.mubr.bf16.mxu0 0
        %755 = vmatmul.mubr.bf16.gmra.mrb[0].mxu0 %v669
        %v756 = vpop.f32.mrb[0].mxu0
        %v757 = vadd.f32 %v564, %v756
        %v758 = vpop.f32.mrb[0].mxu0
        %v759 = vpop.f32.mrb[0].mxu0
        %v760 = vadd.f32 %v564, %v759
        %v761 = vpop.f32.mrb[0].mxu0
        %762 = vmatprep.mubr.bf16.mxu0 0
        %763 = vmatmul.mubr.bf16.gmra.mrb[0].mxu0 %v672
        %v764 = vpop.f32.mrb[0].mxu0
        %v765 = vadd.f32 %v564, %v764
        %v766 = vpop.f32.mrb[0].mxu0
        %v767 = vpop.f32.mrb[0].mxu0
        %v768 = vadd.f32 %v564, %v767
        %v769 = vpop.f32.mrb[0].mxu0
        %770 = vmatprep.mubr.bf16.mxu0 0
        %771 = vmatmul.mubr.bf16.gmra.mrb[0].mxu0 %v675
        %v772 = vpop.f32.mrb[0].mxu0
        %v773 = vadd.f32 %v564, %v772
        %v774 = vpop.f32.mrb[0].mxu0
        %v775 = vpop.f32.mrb[0].mxu0
        %v776 = vadd.f32 %v564, %v775
        %v777 = vpop.f32.mrb[0].mxu0
        %778 = vmatprep.mubr.bf16.mxu0 0
        %779 = vmatmul.mubr.bf16.gmra.mrb[0].mxu0 %v678
        %v780 = vpop.f32.mrb[0].mxu0
        %v781 = vadd.f32 %v564, %v780
        %v782 = vpop.f32.mrb[0].mxu0
        %v783 = vpop.f32.mrb[0].mxu0
        %v784 = vadd.f32 %v564, %v783
        %v785 = vpop.f32.mrb[0].mxu0
        %786 = vmatprep.mubr.bf16.mxu0 0
        %787 = vmatmul.mubr.bf16.gmra.mrb[0].mxu0 %v681
        %v788 = vpop.f32.mrb[0].mxu0
        %v789 = vadd.f32 %v564, %v788
        %v790 = vpop.f32.mrb[0].mxu0
        %v791 = vpop.f32.mrb[0].mxu0
        %v792 = vadd.f32 %v564, %v791
        %v793 = vpop.f32.mrb[0].mxu0
        %794 = vmatprep.mubr.bf16.mxu0 0
        %795 = vmatmul.mubr.bf16.gmra.mrb[0].mxu0 %v684
        %v796 = vpop.f32.mrb[0].mxu0
        %v797 = vadd.f32 %v564, %v796
        %v798 = vpop.f32.mrb[0].mxu0
        %v799 = vpop.f32.mrb[0].mxu0
        %v800 = vadd.f32 %v564, %v799
        %v801 = vpop.f32.mrb[0].mxu0
        %802 = vmatprep.mubr.bf16.mxu0 0
        %803 = vmatmul.mubr.bf16.gmra.mrb[0].mxu0 %v687
        %v804 = vpop.f32.mrb[0].mxu0
        %v805 = vadd.f32 %v564, %v804
        %v806 = vpop.f32.mrb[0].mxu0
        %v807 = vpop.f32.mrb[0].mxu0
        %v808 = vadd.f32 %v564, %v807
        %v809 = vpop.f32.mrb[0].mxu0
        %810 = vmatprep.mubr.bf16.mxu0 0
        %811 = vmatmul.mubr.bf16.gmra.mrb[0].mxu0 %v690
        %v812 = vpop.f32.mrb[0].mxu0
        %v813 = vadd.f32 %v564, %v812
        %v814 = vpop.f32.mrb[0].mxu0
        %v815 = vpop.f32.mrb[0].mxu0
        %v816 = vadd.f32 %v564, %v815
        %v817 = vpop.f32.mrb[0].mxu0
        %818 = vmatprep.mubr.bf16.mxu0 0
        %819 = vmatmul.mubr.bf16.gmra.mrb[0].mxu0 %v693
        %v820 = vpop.f32.mrb[0].mxu0
        %v821 = vadd.f32 %v564, %v820
        %v822 = vpop.f32.mrb[0].mxu0
        %v823 = vpop.f32.mrb[0].mxu0
        %v824 = vadd.f32 %v564, %v823
        %v825 = vpop.f32.mrb[0].mxu0
        %826 = vmatprep.mubr.bf16.mxu0 0
        %827 = vmatmul.mubr.bf16.gmra.mrb[0].mxu0 %v696
        %v828 = vpop.f32.mrb[0].mxu0
        %v829 = vadd.f32 %v564, %v828
        %v830 = vpop.f32.mrb[0].mxu0
        %v831 = vpop.f32.mrb[0].mxu0
        %v832 = vadd.f32 %v564, %v831
        %v833 = vpop.f32.mrb[0].mxu0
        %834 = vmatprep.mubr.bf16.mxu0 0
        %835 = vmatmul.mubr.bf16.gmra.mrb[0].mxu0 %v699
        %v836 = vpop.f32.mrb[0].mxu0
        %v837 = vadd.f32 %v564, %v836
        %v838 = vpop.f32.mrb[0].mxu0
        %v839 = vpop.f32.mrb[0].mxu0
        %v840 = vadd.f32 %v564, %v839
        %v841 = vpop.f32.mrb[0].mxu0
        %842 = vmatprep.mubr.bf16.mxu0 0
        %843 = vmatmul.mubr.bf16.gmra.mrb[0].mxu0 %v702
        %v844 = vpop.f32.mrb[0].mxu0
        %v845 = vadd.f32 %v564, %v844
        %v846 = vpop.f32.mrb[0].mxu0
        %v847 = vpop.f32.mrb[0].mxu0
        %v848 = vadd.f32 %v564, %v847
        %v849 = vpop.f32.mrb[0].mxu0
        %850 = vmatprep.mubr.bf16.mxu0 0
        %851 = vmatmul.mubr.bf16.gmra.mrb[0].mxu0 %v705
        %v852 = vpop.f32.mrb[0].mxu0
        %v853 = vadd.f32 %v564, %v852
        %v854 = vpop.f32.mrb[0].mxu0
        %v855 = vpop.f32.mrb[0].mxu0
        %v856 = vadd.f32 %v564, %v855
        %v857 = vpop.f32.mrb[0].mxu0
        %858 = vmatprep.mubr.bf16.mxu0 0
        %859 = vmatmul.mubr.bf16.gmra.mrb[0].mxu0 %v708
        %v860 = vpop.f32.mrb[0].mxu0
        %v861 = vadd.f32 %v564, %v860
        %v862 = vpop.f32.mrb[0].mxu0
        %v863 = vpop.f32.mrb[0].mxu0
        %v864 = vadd.f32 %v564, %v863
        %v865 = vpop.f32.mrb[0].mxu0
        %866 = vmatprep.mubr.bf16.mxu0 0
        %867 = vmatmul.mubr.bf16.gmra.mrb[0].mxu0 %v711
        %v868 = vpop.f32.mrb[0].mxu0
        %v869 = vadd.f32 %v564, %v868
        %v870 = vpop.f32.mrb[0].mxu0
        %v871 = vpop.f32.mrb[0].mxu0
        %v872 = vadd.f32 %v564, %v871
        %v873 = vpop.f32.mrb[0].mxu0
        %874 = vmatprep.mubr.bf16.mxu0 0
        %875 = vmatmul.mubr.bf16.gmra.mrb[0].mxu0 %v714
        %v876 = vpop.f32.mrb[0].mxu0
        %v877 = vadd.f32 %v564, %v876
        %v878 = vpop.f32.mrb[0].mxu0
        %v879 = vpop.f32.mrb[0].mxu0
        %v880 = vadd.f32 %v564, %v879
        %v881 = vpop.f32.mrb[0].mxu0
        %882 = vmatprep.mubr.bf16.mxu0 0
        %883 = vmatmul.mubr.bf16.gmra.mrb[0].mxu0 %v717
        %v884 = vpop.f32.mrb[0].mxu0
        %v885 = vadd.f32 %v564, %v884
        %v886 = vpop.f32.mrb[0].mxu0
        %v887 = vpop.f32.mrb[0].mxu0
        %v888 = vadd.f32 %v564, %v887
        %v889 = vpop.f32.mrb[0].mxu0
        %890 = vmatprep.mubr.bf16.mxu0 0
        %891 = vmatmul.mubr.bf16.gmra.mrb[0].mxu0 %v720
        %v892 = vpop.f32.mrb[0].mxu0
        %v893 = vadd.f32 %v564, %v892
        %v894 = vpop.f32.mrb[0].mxu0
        %v895 = vpop.f32.mrb[0].mxu0
        %v896 = vadd.f32 %v564, %v895
        %v897 = vpop.f32.mrb[0].mxu0
        %898 = vdwg.mxu0
        %v899 = vmax.f32 %v757, 0.0
        %v900 = vmax.f32 %v760, 0.0
        %v901 = vmax.f32 %v765, 0.0
        %v902 = vmax.f32 %v768, 0.0
        %v903 = vmax.f32 %v773, 0.0
        %v904 = vmax.f32 %v776, 0.0
        %v905 = vmax.f32 %v781, 0.0
        %v906 = vmax.f32 %v784, 0.0
        %v907 = vmax.f32 %v789, 0.0
        %v908 = vmax.f32 %v792, 0.0
        %v909 = vmax.f32 %v797, 0.0
        %v910 = vmax.f32 %v800, 0.0
        %v911 = vmax.f32 %v805, 0.0
        %v912 = vmax.f32 %v808, 0.0
        %v913 = vmax.f32 %v813, 0.0
        %v914 = vmax.f32 %v816, 0.0
        %v915 = vmax.f32 %v821, 0.0
        %v916 = vmax.f32 %v824, 0.0
        %v917 = vmax.f32 %v829, 0.0
        %v918 = vmax.f32 %v832, 0.0
        %v919 = vmax.f32 %v837, 0.0
        %v920 = vmax.f32 %v840, 0.0
        %v921 = vmax.f32 %v845, 0.0
        %v922 = vmax.f32 %v848, 0.0
        %v923 = vmax.f32 %v853, 0.0
        %v924 = vmax.f32 %v856, 0.0
        %v925 = vmax.f32 %v861, 0.0
        %v926 = vmax.f32 %v864, 0.0
        %v927 = vmax.f32 %v869, 0.0
        %v928 = vmax.f32 %v872, 0.0
        %v929 = vmax.f32 %v877, 0.0
        %v930 = vmax.f32 %v880, 0.0
        %v931 = vmax.f32 %v885, 0.0
        %v932 = vmax.f32 %v888, 0.0
        %v933 = vmax.f32 %v893, 0.0
        %v934 = vmax.f32 %v896, 0.0
        %v935 = vpack.c.bf16 %v900, %v899
        %v936 = vpack.c.bf16 %v902, %v901
        %v937 = vpack.c.bf16 %v904, %v903
        %v938 = vpack.c.bf16 %v906, %v905
        %v939 = vpack.c.bf16 %v908, %v907
        %v940 = vpack.c.bf16 %v910, %v909
        %v941 = vpack.c.bf16 %v912, %v911
        %v942 = vpack.c.bf16 %v914, %v913
        %v943 = vpack.c.bf16 %v916, %v915
        %v944 = vpack.c.bf16 %v918, %v917
        %v945 = vpack.c.bf16 %v920, %v919
        %v946 = vpack.c.bf16 %v922, %v921
        %v947 = vpack.c.bf16 %v924, %v923
        %v948 = vpack.c.bf16 %v926, %v925
        %v949 = vpack.c.bf16 %v928, %v927
        %v950 = vpack.c.bf16 %v930, %v929
        %v951 = vpack.c.bf16 %v932, %v931
        %v952 = vpack.c.bf16 %v934, %v933
        %v953 = vld [vmem:[%s2] sm:$0xf]
        %v954 = vld [vmem:[%s2 + $0x4] sm:$0xf]
        %v955 = vld [vmem:[%s2 + $0x8] sm:$0xf]
        %v956 = vld [vmem:[%s2 + $0xc] sm:$0xf]
        %v957 = vld [vmem:[%s2 + $0x10] sm:$0xf]
        %v958 = vld [vmem:[%s2 + $0x14] sm:$0xf]
        %v959 = vld [vmem:[%s2 + $0x18] sm:$0xf]
        %v960 = vld [vmem:[%s2 + $0x1c] sm:$0xf]
        %v961 = vld [vmem:[%s2 + $0x20] sm:$0xf]
        %v962 = vld [vmem:[%s2 + $0x24] sm:$0xf]
        %v963 = vld [vmem:[%s2 + $0x28] sm:$0xf]
        %v964 = vld [vmem:[%s2 + $0x2c] sm:$0xf]
        %v965 = vld [vmem:[%s2 + $0x30] sm:$0xf]
        %v966 = vld [vmem:[%s2 + $0x34] sm:$0xf]
        %v967 = vld [vmem:[%s2 + $0x38] sm:$0xf]
        %v968 = vld [vmem:[%s2 + $0x3c] sm:$0xf]
        %v969 = vlaneseq
        %v970 = vshrl.u32 %v969, 7
        %v971 = vsub.s32 1, %v970
        %v972 = vrot.slane %v517, %v971
        %v989 = vunpack.c.l.b16 %v953
        %v990 = vunpack.c.l.b16 %v954
        %v991 = vunpack.c.l.b16 %v955
        %v992 = vunpack.c.l.b16 %v956
        %v993 = vunpack.c.l.b16 %v957
        %v994 = vunpack.c.l.b16 %v958
        %v995 = vunpack.c.l.b16 %v959
        %v996 = vunpack.c.l.b16 %v960
        %v997 = vunpack.c.l.b16 %v961
        %v998 = vunpack.c.l.b16 %v962
        %v999 = vunpack.c.l.b16 %v963
        %v1000 = vunpack.c.l.b16 %v964
        %v1001 = vunpack.c.l.b16 %v965
        %v1002 = vunpack.c.l.b16 %v966
        %v1003 = vunpack.c.l.b16 %v967
        %v1004 = vunpack.c.l.b16 %v968
        %v1005 = vpack.c.b16 %v990, %v989
        %v1006 = vpack.c.b16 %v992, %v991
        %v1007 = vpack.c.b16 %v994, %v993
        %v1008 = vpack.c.b16 %v996, %v995
        %v1009 = vpack.c.b16 %v998, %v997
        %v1010 = vpack.c.b16 %v1000, %v999
        %v1011 = vpack.c.b16 %v1002, %v1001
        %v1012 = vpack.c.b16 %v1004, %v1003
        %1021 = vmatprep.subr.bf16.mxu0 0
        %1022 = vmatpush1.bf16.msra.mxu0 %v1005
        %1023 = vmatprep.subr.bf16.mxu0 0
        %1024 = vmatpush1.bf16.msra.mxu0 %v1006
        %1025 = vmatprep.subr.bf16.mxu0 0
        %1026 = vmatpush1.bf16.msra.mxu0 %v1007
        %1027 = vmatprep.subr.bf16.mxu0 0
        %1028 = vmatpush1.bf16.msra.mxu0 %v1008
        %1029 = vmatprep.subr.bf16.mxu0 0
        %1030 = vmatpush1.bf16.msra.mxu0 %v1009
        %1031 = vmatprep.subr.bf16.mxu0 0
        %1032 = vmatpush1.bf16.msra.mxu0 %v1010
        %1033 = vmatprep.subr.bf16.mxu0 0
        %1034 = vmatpush1.bf16.msra.mxu0 %v1011
        %1035 = vmatprep.subr.bf16.mxu0 0
        %1036 = vmatpush1.bf16.msra.mxu0 %v1012
        %1037 = vmatprep.subr.bf16.mxu0 0
        %1038 = vmatpush1.bf16.msra.mxu0 0
        %1039 = vmatprep.subr.bf16.mxu0 0
        %1040 = vmatpush1.bf16.msra.mxu0 0
        %1041 = vmatprep.subr.bf16.mxu0 0
        %1042 = vmatpush1.bf16.msra.mxu0 0
        %1043 = vmatprep.subr.bf16.mxu0 0
        %1044 = vmatpush1.bf16.msra.mxu0 0
        %1045 = vmatprep.subr.bf16.mxu0 0
        %1046 = vmatpush1.bf16.msra.mxu0 0
        %1047 = vmatprep.subr.bf16.mxu0 0
        %1048 = vmatpush1.bf16.msra.mxu0 0
        %1049 = vmatprep.subr.bf16.mxu0 0
        %1050 = vmatpush1.bf16.msra.mxu0 0
        %1051 = vmatprep.subr.bf16.mxu0 0
        %1052 = vmatpush1.bf16.msra.mxu0 0
        %1053 = vmatprep.mubr.bf16.mxu0 0
        %1054 = vmatmul.mubr.bf16.gmra.mrb[0].mxu0 %v935
        %v1055 = vpop.f32.mrb[0].mxu0
        %v1056 = vadd.f32 %v972, %v1055
        %v1057 = vpop.f32.mrb[0].mxu0
        %v1058 = vpop.f32.mrb[0].mxu0
        %v1059 = vadd.f32 %v972, %v1058
        %v1060 = vpop.f32.mrb[0].mxu0
        %1061 = vmatprep.mubr.bf16.mxu0 0
        %1062 = vmatmul.mubr.bf16.gmra.mrb[0].mxu0 %v936
        %v1063 = vpop.f32.mrb[0].mxu0
        %v1064 = vadd.f32 %v972, %v1063
        %v1065 = vpop.f32.mrb[0].mxu0
        %v1066 = vpop.f32.mrb[0].mxu0
        %v1067 = vadd.f32 %v972, %v1066
        %v1068 = vpop.f32.mrb[0].mxu0
        %1069 = vmatprep.mubr.bf16.mxu0 0
        %1070 = vmatmul.mubr.bf16.gmra.mrb[0].mxu0 %v937
        %v1071 = vpop.f32.mrb[0].mxu0
        %v1072 = vadd.f32 %v972, %v1071
        %v1073 = vpop.f32.mrb[0].mxu0
        %v1074 = vpop.f32.mrb[0].mxu0
        %v1075 = vadd.f32 %v972, %v1074
        %v1076 = vpop.f32.mrb[0].mxu0
        %1077 = vmatprep.mubr.bf16.mxu0 0
        %1078 = vmatmul.mubr.bf16.gmra.mrb[0].mxu0 %v938
        %v1079 = vpop.f32.mrb[0].mxu0
        %v1080 = vadd.f32 %v972, %v1079
        %v1081 = vpop.f32.mrb[0].mxu0
        %v1082 = vpop.f32.mrb[0].mxu0
        %v1083 = vadd.f32 %v972, %v1082
        %v1084 = vpop.f32.mrb[0].mxu0
        %1085 = vmatprep.mubr.bf16.mxu0 0
        %1086 = vmatmul.mubr.bf16.gmra.mrb[0].mxu0 %v939
        %v1087 = vpop.f32.mrb[0].mxu0
        %v1088 = vadd.f32 %v972, %v1087
        %v1089 = vpop.f32.mrb[0].mxu0
        %v1090 = vpop.f32.mrb[0].mxu0
        %v1091 = vadd.f32 %v972, %v1090
        %v1092 = vpop.f32.mrb[0].mxu0
        %1093 = vmatprep.mubr.bf16.mxu0 0
        %1094 = vmatmul.mubr.bf16.gmra.mrb[0].mxu0 %v940
        %v1095 = vpop.f32.mrb[0].mxu0
        %v1096 = vadd.f32 %v972, %v1095
        %v1097 = vpop.f32.mrb[0].mxu0
        %v1098 = vpop.f32.mrb[0].mxu0
        %v1099 = vadd.f32 %v972, %v1098
        %v1100 = vpop.f32.mrb[0].mxu0
        %1101 = vmatprep.mubr.bf16.mxu0 0
        %1102 = vmatmul.mubr.bf16.gmra.mrb[0].mxu0 %v941
        %v1103 = vpop.f32.mrb[0].mxu0
        %v1104 = vadd.f32 %v972, %v1103
        %v1105 = vpop.f32.mrb[0].mxu0
        %v1106 = vpop.f32.mrb[0].mxu0
        %v1107 = vadd.f32 %v972, %v1106
        %v1108 = vpop.f32.mrb[0].mxu0
        %1109 = vmatprep.mubr.bf16.mxu0 0
        %1110 = vmatmul.mubr.bf16.gmra.mrb[0].mxu0 %v942
        %v1111 = vpop.f32.mrb[0].mxu0
        %v1112 = vadd.f32 %v972, %v1111
        %v1113 = vpop.f32.mrb[0].mxu0
        %v1114 = vpop.f32.mrb[0].mxu0
        %v1115 = vadd.f32 %v972, %v1114
        %v1116 = vpop.f32.mrb[0].mxu0
        %1117 = vmatprep.mubr.bf16.mxu0 0
        %1118 = vmatmul.mubr.bf16.gmra.mrb[0].mxu0 %v943
        %v1119 = vpop.f32.mrb[0].mxu0
        %v1120 = vadd.f32 %v972, %v1119
        %v1121 = vpop.f32.mrb[0].mxu0
        %v1122 = vpop.f32.mrb[0].mxu0
        %v1123 = vadd.f32 %v972, %v1122
        %v1124 = vpop.f32.mrb[0].mxu0
        %1125 = vmatprep.mubr.bf16.mxu0 0
        %1126 = vmatmul.mubr.bf16.gmra.mrb[0].mxu0 %v944
        %v1127 = vpop.f32.mrb[0].mxu0
        %v1128 = vadd.f32 %v972, %v1127
        %v1129 = vpop.f32.mrb[0].mxu0
        %v1130 = vpop.f32.mrb[0].mxu0
        %v1131 = vadd.f32 %v972, %v1130
        %v1132 = vpop.f32.mrb[0].mxu0
        %1133 = vmatprep.mubr.bf16.mxu0 0
        %1134 = vmatmul.mubr.bf16.gmra.mrb[0].mxu0 %v945
        %v1135 = vpop.f32.mrb[0].mxu0
        %v1136 = vadd.f32 %v972, %v1135
        %v1137 = vpop.f32.mrb[0].mxu0
        %v1138 = vpop.f32.mrb[0].mxu0
        %v1139 = vadd.f32 %v972, %v1138
        %v1140 = vpop.f32.mrb[0].mxu0
        %1141 = vmatprep.mubr.bf16.mxu0 0
        %1142 = vmatmul.mubr.bf16.gmra.mrb[0].mxu0 %v946
        %v1143 = vpop.f32.mrb[0].mxu0
        %v1144 = vadd.f32 %v972, %v1143
        %v1145 = vpop.f32.mrb[0].mxu0
        %v1146 = vpop.f32.mrb[0].mxu0
        %v1147 = vadd.f32 %v972, %v1146
        %v1148 = vpop.f32.mrb[0].mxu0
        %1149 = vmatprep.mubr.bf16.mxu0 0
        %1150 = vmatmul.mubr.bf16.gmra.mrb[0].mxu0 %v947
        %v1151 = vpop.f32.mrb[0].mxu0
        %v1152 = vadd.f32 %v972, %v1151
        %v1153 = vpop.f32.mrb[0].mxu0
        %v1154 = vpop.f32.mrb[0].mxu0
        %v1155 = vadd.f32 %v972, %v1154
        %v1156 = vpop.f32.mrb[0].mxu0
        %1157 = vmatprep.mubr.bf16.mxu0 0
        %1158 = vmatmul.mubr.bf16.gmra.mrb[0].mxu0 %v948
        %v1159 = vpop.f32.mrb[0].mxu0
        %v1160 = vadd.f32 %v972, %v1159
        %v1161 = vpop.f32.mrb[0].mxu0
        %v1162 = vpop.f32.mrb[0].mxu0
        %v1163 = vadd.f32 %v972, %v1162
        %v1164 = vpop.f32.mrb[0].mxu0
        %1165 = vmatprep.mubr.bf16.mxu0 0
        %1166 = vmatmul.mubr.bf16.gmra.mrb[0].mxu0 %v949
        %v1167 = vpop.f32.mrb[0].mxu0
        %v1168 = vadd.f32 %v972, %v1167
        %v1169 = vpop.f32.mrb[0].mxu0
        %v1170 = vpop.f32.mrb[0].mxu0
        %v1171 = vadd.f32 %v972, %v1170
        %v1172 = vpop.f32.mrb[0].mxu0
        %1173 = vmatprep.mubr.bf16.mxu0 0
        %1174 = vmatmul.mubr.bf16.gmra.mrb[0].mxu0 %v950
        %v1175 = vpop.f32.mrb[0].mxu0
        %v1176 = vadd.f32 %v972, %v1175
        %v1177 = vpop.f32.mrb[0].mxu0
        %v1178 = vpop.f32.mrb[0].mxu0
        %v1179 = vadd.f32 %v972, %v1178
        %v1180 = vpop.f32.mrb[0].mxu0
        %1181 = vmatprep.mubr.bf16.mxu0 0
        %1182 = vmatmul.mubr.bf16.gmra.mrb[0].mxu0 %v951
        %v1183 = vpop.f32.mrb[0].mxu0
        %v1184 = vadd.f32 %v972, %v1183
        %v1185 = vpop.f32.mrb[0].mxu0
        %v1186 = vpop.f32.mrb[0].mxu0
        %v1187 = vadd.f32 %v972, %v1186
        %v1188 = vpop.f32.mrb[0].mxu0
        %1189 = vmatprep.mubr.bf16.mxu0 0
        %1190 = vmatmul.mubr.bf16.gmra.mrb[0].mxu0 %v952
        %v1191 = vpop.f32.mrb[0].mxu0
        %v1192 = vadd.f32 %v972, %v1191
        %v1193 = vpop.f32.mrb[0].mxu0
        %v1194 = vpop.f32.mrb[0].mxu0
        %v1195 = vadd.f32 %v972, %v1194
        %v1196 = vpop.f32.mrb[0].mxu0
        %1197 = vdwg.mxu0
        %v1198 = vmax.f32 %v1056, 0.0
        %v1199 = vmax.f32 %v1059, 0.0
        %v1200 = vmax.f32 %v1064, 0.0
        %v1201 = vmax.f32 %v1067, 0.0
        %v1202 = vmax.f32 %v1072, 0.0
        %v1203 = vmax.f32 %v1075, 0.0
        %v1204 = vmax.f32 %v1080, 0.0
        %v1205 = vmax.f32 %v1083, 0.0
        %v1206 = vmax.f32 %v1088, 0.0
        %v1207 = vmax.f32 %v1091, 0.0
        %v1208 = vmax.f32 %v1096, 0.0
        %v1209 = vmax.f32 %v1099, 0.0
        %v1210 = vmax.f32 %v1104, 0.0
        %v1211 = vmax.f32 %v1107, 0.0
        %v1212 = vmax.f32 %v1112, 0.0
        %v1213 = vmax.f32 %v1115, 0.0
        %v1214 = vmax.f32 %v1120, 0.0
        %v1215 = vmax.f32 %v1123, 0.0
        %v1216 = vmax.f32 %v1128, 0.0
        %v1217 = vmax.f32 %v1131, 0.0
        %v1218 = vmax.f32 %v1136, 0.0
        %v1219 = vmax.f32 %v1139, 0.0
        %v1220 = vmax.f32 %v1144, 0.0
        %v1221 = vmax.f32 %v1147, 0.0
        %v1222 = vmax.f32 %v1152, 0.0
        %v1223 = vmax.f32 %v1155, 0.0
        %v1224 = vmax.f32 %v1160, 0.0
        %v1225 = vmax.f32 %v1163, 0.0
        %v1226 = vmax.f32 %v1168, 0.0
        %v1227 = vmax.f32 %v1171, 0.0
        %v1228 = vmax.f32 %v1176, 0.0
        %v1229 = vmax.f32 %v1179, 0.0
        %v1230 = vmax.f32 %v1184, 0.0
        %v1231 = vmax.f32 %v1187, 0.0
        %v1232 = vmax.f32 %v1192, 0.0
        %v1233 = vmax.f32 %v1195, 0.0
        %v1234 = vpack.c.bf16 %v1198, 0.0
        %v1235 = vpack.c.bf16 %v1200, %v1199
        %v1236 = vpack.c.bf16 %v1202, %v1201
        %v1237 = vpack.c.bf16 %v1204, %v1203
        %v1238 = vpack.c.bf16 %v1206, %v1205
        %v1239 = vpack.c.bf16 %v1208, %v1207
        %v1240 = vpack.c.bf16 %v1210, %v1209
        %v1241 = vpack.c.bf16 %v1212, %v1211
        %v1242 = vpack.c.bf16 %v1214, %v1213
        %v1243 = vpack.c.bf16 %v1216, %v1215
        %v1244 = vpack.c.bf16 %v1218, %v1217
        %v1245 = vpack.c.bf16 %v1220, %v1219
        %v1246 = vpack.c.bf16 %v1222, %v1221
        %v1247 = vpack.c.bf16 %v1224, %v1223
        %v1248 = vpack.c.bf16 %v1226, %v1225
        %v1249 = vpack.c.bf16 %v1228, %v1227
        %v1250 = vpack.c.bf16 %v1230, %v1229
        %v1251 = vpack.c.bf16 %v1232, %v1231
        %v1252 = vld [vmem:[#allocation4] sm:$0xf]
        %v1253 = vld [vmem:[#allocation4 + $0x4] sm:$0xf]
        %v1254 = vld [vmem:[#allocation4 + $0x8] sm:$0xf]
        %v1255 = vld [vmem:[#allocation4 + $0xc] sm:$0xf]
        %v1256 = vld [vmem:[#allocation4 + $0x10] sm:$0xf]
        %v1257 = vld [vmem:[#allocation4 + $0x14] sm:$0xf]
        %v1258 = vld [vmem:[#allocation4 + $0x18] sm:$0xf]
        %v1259 = vld [vmem:[#allocation4 + $0x1c] sm:$0xf]
        %v1260 = vld [vmem:[#allocation4 + $0x20] sm:$0xf]
        %v1261 = vld [vmem:[#allocation4 + $0x24] sm:$0xf]
        %v1262 = vld [vmem:[#allocation4 + $0x28] sm:$0xf]
        %v1263 = vld [vmem:[#allocation4 + $0x2c] sm:$0xf]
        %v1264 = vld [vmem:[#allocation4 + $0x30] sm:$0xf]
        %v1265 = vld [vmem:[#allocation4 + $0x34] sm:$0xf]
        %v1266 = vld [vmem:[#allocation4 + $0x38] sm:$0xf]
        %v1267 = vld [vmem:[#allocation4 + $0x3c] sm:$0xf]
        %v1268 = vpack.c.bf16 %v1199, %v1198
        %v1269 = vpack.c.bf16 %v1201, %v1200
        %v1270 = vpack.c.bf16 %v1203, %v1202
        %v1271 = vpack.c.bf16 %v1205, %v1204
        %v1272 = vpack.c.bf16 %v1207, %v1206
        %v1273 = vpack.c.bf16 %v1209, %v1208
        %v1274 = vpack.c.bf16 %v1211, %v1210
        %v1275 = vpack.c.bf16 %v1213, %v1212
        %v1276 = vpack.c.bf16 %v1215, %v1214
        %v1277 = vpack.c.bf16 %v1217, %v1216
        %v1278 = vpack.c.bf16 %v1219, %v1218
        %v1279 = vpack.c.bf16 %v1221, %v1220
        %v1280 = vpack.c.bf16 %v1223, %v1222
        %v1281 = vpack.c.bf16 %v1225, %v1224
        %v1282 = vpack.c.bf16 %v1227, %v1226
        %v1283 = vpack.c.bf16 %v1229, %v1228
        %v1284 = vpack.c.bf16 %v1231, %v1230
        %v1285 = vpack.c.bf16 %v1233, %v1232
        %s1286 = scalar_lea.vmem [#allocation4], 64
        %v1287 = vld [vmem:[%s1286] sm:$0xf]
        %v1288 = vld [vmem:[%s1286 + $0x4] sm:$0xf]
        %v1289 = vld [vmem:[%s1286 + $0x8] sm:$0xf]
        %v1290 = vld [vmem:[%s1286 + $0xc] sm:$0xf]
        %v1291 = vld [vmem:[%s1286 + $0x10] sm:$0xf]
        %v1292 = vld [vmem:[%s1286 + $0x14] sm:$0xf]
        %v1293 = vld [vmem:[%s1286 + $0x18] sm:$0xf]
        %v1294 = vld [vmem:[%s1286 + $0x1c] sm:$0xf]
        %v1295 = vld [vmem:[%s1286 + $0x20] sm:$0xf]
        %v1296 = vld [vmem:[%s1286 + $0x24] sm:$0xf]
        %v1297 = vld [vmem:[%s1286 + $0x28] sm:$0xf]
        %v1298 = vld [vmem:[%s1286 + $0x2c] sm:$0xf]
        %v1299 = vld [vmem:[%s1286 + $0x30] sm:$0xf]
        %v1300 = vld [vmem:[%s1286 + $0x34] sm:$0xf]
        %v1301 = vld [vmem:[%s1286 + $0x38] sm:$0xf]
        %v1302 = vld [vmem:[%s1286 + $0x3c] sm:$0xf]
        %v1319 = vunpack.c.l.b16 %v1287
        %v1320 = vunpack.c.l.b16 %v1288
        %v1321 = vunpack.c.l.b16 %v1289
        %v1322 = vunpack.c.l.b16 %v1290
        %v1323 = vunpack.c.l.b16 %v1291
        %v1324 = vunpack.c.l.b16 %v1292
        %v1325 = vunpack.c.l.b16 %v1293
        %v1326 = vunpack.c.l.b16 %v1294
        %v1327 = vunpack.c.l.b16 %v1295
        %v1328 = vunpack.c.l.b16 %v1296
        %v1329 = vunpack.c.l.b16 %v1297
        %v1330 = vunpack.c.l.b16 %v1298
        %v1331 = vunpack.c.l.b16 %v1299
        %v1332 = vunpack.c.l.b16 %v1300
        %v1333 = vunpack.c.l.b16 %v1301
        %v1334 = vunpack.c.l.b16 %v1302
        %v1335 = vpack.c.b16 %v1320, %v1319
        %v1336 = vpack.c.b16 %v1322, %v1321
        %v1337 = vpack.c.b16 %v1324, %v1323
        %v1338 = vpack.c.b16 %v1326, %v1325
        %v1339 = vpack.c.b16 %v1328, %v1327
        %v1340 = vpack.c.b16 %v1330, %v1329
        %v1341 = vpack.c.b16 %v1332, %v1331
        %v1342 = vpack.c.b16 %v1334, %v1333
        %1351 = vmatprep.subr.bf16.mxu0 0
        %1352 = vmatpush1.bf16.msra.mxu0 %v1335
        %1353 = vmatprep.subr.bf16.mxu0 0
        %1354 = vmatpush1.bf16.msra.mxu0 %v1336
        %1355 = vmatprep.subr.bf16.mxu0 0
        %1356 = vmatpush1.bf16.msra.mxu0 %v1337
        %1357 = vmatprep.subr.bf16.mxu0 0
        %1358 = vmatpush1.bf16.msra.mxu0 %v1338
        %1359 = vmatprep.subr.bf16.mxu0 0
        %1360 = vmatpush1.bf16.msra.mxu0 %v1339
        %1361 = vmatprep.subr.bf16.mxu0 0
        %1362 = vmatpush1.bf16.msra.mxu0 %v1340
        %1363 = vmatprep.subr.bf16.mxu0 0
        %1364 = vmatpush1.bf16.msra.mxu0 %v1341
        %1365 = vmatprep.subr.bf16.mxu0 0
        %1366 = vmatpush1.bf16.msra.mxu0 %v1342
        %1367 = vmatprep.subr.bf16.mxu0 0
        %1368 = vmatpush1.bf16.msra.mxu0 0
        %1369 = vmatprep.subr.bf16.mxu0 0
        %1370 = vmatpush1.bf16.msra.mxu0 0
        %1371 = vmatprep.subr.bf16.mxu0 0
        %1372 = vmatpush1.bf16.msra.mxu0 0
        %1373 = vmatprep.subr.bf16.mxu0 0
        %1374 = vmatpush1.bf16.msra.mxu0 0
        %1375 = vmatprep.subr.bf16.mxu0 0
        %1376 = vmatpush1.bf16.msra.mxu0 0
        %1377 = vmatprep.subr.bf16.mxu0 0
        %1378 = vmatpush1.bf16.msra.mxu0 0
        %1379 = vmatprep.subr.bf16.mxu0 0
        %1380 = vmatpush1.bf16.msra.mxu0 0
        %1381 = vmatprep.subr.bf16.mxu0 0
        %1382 = vmatpush1.bf16.msra.mxu0 0
        %1383 = vmatprep.mubr.bf16.mxu0 0
        %1384 = vmatmul.mubr.bf16.gmra.mrb[0].mxu0 %v1268
        %v1385 = vpop.f32.mrb[0].mxu0
        %v1386 = vadd.f32 0.0, %v1385
        %v1387 = vpop.f32.mrb[0].mxu0
        %v1388 = vpop.f32.mrb[0].mxu0
        %v1389 = vadd.f32 0.0, %v1388
        %v1390 = vpop.f32.mrb[0].mxu0
        %1391 = vmatprep.mubr.bf16.mxu0 0
        %1392 = vmatmul.mubr.bf16.gmra.mrb[0].mxu0 %v1269
        %v1393 = vpop.f32.mrb[0].mxu0
        %v1394 = vadd.f32 0.0, %v1393
        %v1395 = vpop.f32.mrb[0].mxu0
        %v1396 = vpop.f32.mrb[0].mxu0
        %v1397 = vadd.f32 0.0, %v1396
        %v1398 = vpop.f32.mrb[0].mxu0
        %1399 = vmatprep.mubr.bf16.mxu0 0
        %1400 = vmatmul.mubr.bf16.gmra.mrb[0].mxu0 %v1270
        %v1401 = vpop.f32.mrb[0].mxu0
        %v1402 = vadd.f32 0.0, %v1401
        %v1403 = vpop.f32.mrb[0].mxu0
        %v1404 = vpop.f32.mrb[0].mxu0
        %v1405 = vadd.f32 0.0, %v1404
        %v1406 = vpop.f32.mrb[0].mxu0
        %1407 = vmatprep.mubr.bf16.mxu0 0
        %1408 = vmatmul.mubr.bf16.gmra.mrb[0].mxu0 %v1271
        %v1409 = vpop.f32.mrb[0].mxu0
        %v1410 = vadd.f32 0.0, %v1409
        %v1411 = vpop.f32.mrb[0].mxu0
        %v1412 = vpop.f32.mrb[0].mxu0
        %v1413 = vadd.f32 0.0, %v1412
        %v1414 = vpop.f32.mrb[0].mxu0
        %1415 = vmatprep.mubr.bf16.mxu0 0
        %1416 = vmatmul.mubr.bf16.gmra.mrb[0].mxu0 %v1272
        %v1417 = vpop.f32.mrb[0].mxu0
        %v1418 = vadd.f32 0.0, %v1417
        %v1419 = vpop.f32.mrb[0].mxu0
        %v1420 = vpop.f32.mrb[0].mxu0
        %v1421 = vadd.f32 0.0, %v1420
        %v1422 = vpop.f32.mrb[0].mxu0
        %1423 = vmatprep.mubr.bf16.mxu0 0
        %1424 = vmatmul.mubr.bf16.gmra.mrb[0].mxu0 %v1273
        %v1425 = vpop.f32.mrb[0].mxu0
        %v1426 = vadd.f32 0.0, %v1425
        %v1427 = vpop.f32.mrb[0].mxu0
        %v1428 = vpop.f32.mrb[0].mxu0
        %v1429 = vadd.f32 0.0, %v1428
        %v1430 = vpop.f32.mrb[0].mxu0
        %1431 = vmatprep.mubr.bf16.mxu0 0
        %1432 = vmatmul.mubr.bf16.gmra.mrb[0].mxu0 %v1274
        %v1433 = vpop.f32.mrb[0].mxu0
        %v1434 = vadd.f32 0.0, %v1433
        %v1435 = vpop.f32.mrb[0].mxu0
        %v1436 = vpop.f32.mrb[0].mxu0
        %v1437 = vadd.f32 0.0, %v1436
        %v1438 = vpop.f32.mrb[0].mxu0
        %1439 = vmatprep.mubr.bf16.mxu0 0
        %1440 = vmatmul.mubr.bf16.gmra.mrb[0].mxu0 %v1275
        %v1441 = vpop.f32.mrb[0].mxu0
        %v1442 = vadd.f32 0.0, %v1441
        %v1443 = vpop.f32.mrb[0].mxu0
        %v1444 = vpop.f32.mrb[0].mxu0
        %v1445 = vadd.f32 0.0, %v1444
        %v1446 = vpop.f32.mrb[0].mxu0
        %1447 = vmatprep.mubr.bf16.mxu0 0
        %1448 = vmatmul.mubr.bf16.gmra.mrb[0].mxu0 %v1276
        %v1449 = vpop.f32.mrb[0].mxu0
        %v1450 = vadd.f32 0.0, %v1449
        %v1451 = vpop.f32.mrb[0].mxu0
        %v1452 = vpop.f32.mrb[0].mxu0
        %v1453 = vadd.f32 0.0, %v1452
        %v1454 = vpop.f32.mrb[0].mxu0
        %1455 = vmatprep.mubr.bf16.mxu0 0
        %1456 = vmatmul.mubr.bf16.gmra.mrb[0].mxu0 %v1277
        %v1457 = vpop.f32.mrb[0].mxu0
        %v1458 = vadd.f32 0.0, %v1457
        %v1459 = vpop.f32.mrb[0].mxu0
        %v1460 = vpop.f32.mrb[0].mxu0
        %v1461 = vadd.f32 0.0, %v1460
        %v1462 = vpop.f32.mrb[0].mxu0
        %1463 = vmatprep.mubr.bf16.mxu0 0
        %1464 = vmatmul.mubr.bf16.gmra.mrb[0].mxu0 %v1278
        %v1465 = vpop.f32.mrb[0].mxu0
        %v1466 = vadd.f32 0.0, %v1465
        %v1467 = vpop.f32.mrb[0].mxu0
        %v1468 = vpop.f32.mrb[0].mxu0
        %v1469 = vadd.f32 0.0, %v1468
        %v1470 = vpop.f32.mrb[0].mxu0
        %1471 = vmatprep.mubr.bf16.mxu0 0
        %1472 = vmatmul.mubr.bf16.gmra.mrb[0].mxu0 %v1279
        %v1473 = vpop.f32.mrb[0].mxu0
        %v1474 = vadd.f32 0.0, %v1473
        %v1475 = vpop.f32.mrb[0].mxu0
        %v1476 = vpop.f32.mrb[0].mxu0
        %v1477 = vadd.f32 0.0, %v1476
        %v1478 = vpop.f32.mrb[0].mxu0
        %1479 = vmatprep.mubr.bf16.mxu0 0
        %1480 = vmatmul.mubr.bf16.gmra.mrb[0].mxu0 %v1280
        %v1481 = vpop.f32.mrb[0].mxu0
        %v1482 = vadd.f32 0.0, %v1481
        %v1483 = vpop.f32.mrb[0].mxu0
        %v1484 = vpop.f32.mrb[0].mxu0
        %v1485 = vadd.f32 0.0, %v1484
        %v1486 = vpop.f32.mrb[0].mxu0
        %1487 = vmatprep.mubr.bf16.mxu0 0
        %1488 = vmatmul.mubr.bf16.gmra.mrb[0].mxu0 %v1281
        %v1489 = vpop.f32.mrb[0].mxu0
        %v1490 = vadd.f32 0.0, %v1489
        %v1491 = vpop.f32.mrb[0].mxu0
        %v1492 = vpop.f32.mrb[0].mxu0
        %v1493 = vadd.f32 0.0, %v1492
        %v1494 = vpop.f32.mrb[0].mxu0
        %1495 = vmatprep.mubr.bf16.mxu0 0
        %1496 = vmatmul.mubr.bf16.gmra.mrb[0].mxu0 %v1282
        %v1497 = vpop.f32.mrb[0].mxu0
        %v1498 = vadd.f32 0.0, %v1497
        %v1499 = vpop.f32.mrb[0].mxu0
        %v1500 = vpop.f32.mrb[0].mxu0
        %v1501 = vadd.f32 0.0, %v1500
        %v1502 = vpop.f32.mrb[0].mxu0
        %1503 = vmatprep.mubr.bf16.mxu0 0
        %1504 = vmatmul.mubr.bf16.gmra.mrb[0].mxu0 %v1283
        %v1505 = vpop.f32.mrb[0].mxu0
        %v1506 = vadd.f32 0.0, %v1505
        %v1507 = vpop.f32.mrb[0].mxu0
        %v1508 = vpop.f32.mrb[0].mxu0
        %v1509 = vadd.f32 0.0, %v1508
        %v1510 = vpop.f32.mrb[0].mxu0
        %1511 = vmatprep.mubr.bf16.mxu0 0
        %1512 = vmatmul.mubr.bf16.gmra.mrb[0].mxu0 %v1284
        %v1513 = vpop.f32.mrb[0].mxu0
        %v1514 = vadd.f32 0.0, %v1513
        %v1515 = vpop.f32.mrb[0].mxu0
        %v1516 = vpop.f32.mrb[0].mxu0
        %v1517 = vadd.f32 0.0, %v1516
        %v1518 = vpop.f32.mrb[0].mxu0
        %1519 = vmatprep.mubr.bf16.mxu0 0
        %1520 = vmatmul.mubr.bf16.gmra.mrb[0].mxu0 %v1285
        %v1521 = vpop.f32.mrb[0].mxu0
        %v1522 = vadd.f32 0.0, %v1521
        %v1523 = vpop.f32.mrb[0].mxu0
        %v1524 = vpop.f32.mrb[0].mxu0
        %v1525 = vadd.f32 0.0, %v1524
        %v1526 = vpop.f32.mrb[0].mxu0
        %1527 = vdwg.mxu0
        %v1544 = vunpack.c.l.b16 %v1252
        %v1545 = vunpack.c.l.b16 %v1253
        %v1546 = vunpack.c.l.b16 %v1254
        %v1547 = vunpack.c.l.b16 %v1255
        %v1548 = vunpack.c.l.b16 %v1256
        %v1549 = vunpack.c.l.b16 %v1257
        %v1550 = vunpack.c.l.b16 %v1258
        %v1551 = vunpack.c.l.b16 %v1259
        %v1552 = vunpack.c.l.b16 %v1260
        %v1553 = vunpack.c.l.b16 %v1261
        %v1554 = vunpack.c.l.b16 %v1262
        %v1555 = vunpack.c.l.b16 %v1263
        %v1556 = vunpack.c.l.b16 %v1264
        %v1557 = vunpack.c.l.b16 %v1265
        %v1558 = vunpack.c.l.b16 %v1266
        %v1559 = vunpack.c.l.b16 %v1267
        %v1560 = vpack.c.b16 %v1545, %v1544
        %v1561 = vpack.c.b16 %v1547, %v1546
        %v1562 = vpack.c.b16 %v1549, %v1548
        %v1563 = vpack.c.b16 %v1551, %v1550
        %v1564 = vpack.c.b16 %v1553, %v1552
        %v1565 = vpack.c.b16 %v1555, %v1554
        %v1566 = vpack.c.b16 %v1557, %v1556
        %v1567 = vpack.c.b16 %v1559, %v1558
        %1576 = vmatprep.subr.bf16.mxu0 0
        %1577 = vmatpush1.bf16.msra.mxu0 %v1560
        %1578 = vmatprep.subr.bf16.mxu0 0
        %1579 = vmatpush1.bf16.msra.mxu0 %v1561
        %1580 = vmatprep.subr.bf16.mxu0 0
        %1581 = vmatpush1.bf16.msra.mxu0 %v1562
        %1582 = vmatprep.subr.bf16.mxu0 0
        %1583 = vmatpush1.bf16.msra.mxu0 %v1563
        %1584 = vmatprep.subr.bf16.mxu0 0
        %1585 = vmatpush1.bf16.msra.mxu0 %v1564
        %1586 = vmatprep.subr.bf16.mxu0 0
        %1587 = vmatpush1.bf16.msra.mxu0 %v1565
        %1588 = vmatprep.subr.bf16.mxu0 0
        %1589 = vmatpush1.bf16.msra.mxu0 %v1566
        %1590 = vmatprep.subr.bf16.mxu0 0
        %1591 = vmatpush1.bf16.msra.mxu0 %v1567
        %1592 = vmatprep.subr.bf16.mxu0 0
        %1593 = vmatpush1.bf16.msra.mxu0 0
        %1594 = vmatprep.subr.bf16.mxu0 0
        %1595 = vmatpush1.bf16.msra.mxu0 0
        %1596 = vmatprep.subr.bf16.mxu0 0
        %1597 = vmatpush1.bf16.msra.mxu0 0
        %1598 = vmatprep.subr.bf16.mxu0 0
        %1599 = vmatpush1.bf16.msra.mxu0 0
        %1600 = vmatprep.subr.bf16.mxu0 0
        %1601 = vmatpush1.bf16.msra.mxu0 0
        %1602 = vmatprep.subr.bf16.mxu0 0
        %1603 = vmatpush1.bf16.msra.mxu0 0
        %1604 = vmatprep.subr.bf16.mxu0 0
        %1605 = vmatpush1.bf16.msra.mxu0 0
        %1606 = vmatprep.subr.bf16.mxu0 0
        %1607 = vmatpush1.bf16.msra.mxu0 0
        %1608 = vmatprep.mubr.bf16.mxu0 0
        %1609 = vmatmul.mubr.bf16.gmra.mrb[0].mxu0 %v1234
        %v1610 = vpop.f32.mrb[0].mxu0
        %v1611 = vadd.f32 %v1386, %v1610
        %v1612 = vpop.f32.mrb[0].mxu0
        %v1613 = vpop.f32.mrb[0].mxu0
        %v1614 = vadd.f32 %v1389, %v1613
        %v1615 = vpop.f32.mrb[0].mxu0
        %1616 = vmatprep.mubr.bf16.mxu0 0
        %1617 = vmatmul.mubr.bf16.gmra.mrb[0].mxu0 %v1235
        %v1618 = vpop.f32.mrb[0].mxu0
        %v1619 = vadd.f32 %v1394, %v1618
        %v1620 = vpop.f32.mrb[0].mxu0
        %v1621 = vpop.f32.mrb[0].mxu0
        %v1622 = vadd.f32 %v1397, %v1621
        %v1623 = vpop.f32.mrb[0].mxu0
        %1624 = vmatprep.mubr.bf16.mxu0 0
        %1625 = vmatmul.mubr.bf16.gmra.mrb[0].mxu0 %v1236
        %v1626 = vpop.f32.mrb[0].mxu0
        %v1627 = vadd.f32 %v1402, %v1626
        %v1628 = vpop.f32.mrb[0].mxu0
        %v1629 = vpop.f32.mrb[0].mxu0
        %v1630 = vadd.f32 %v1405, %v1629
        %v1631 = vpop.f32.mrb[0].mxu0
        %1632 = vmatprep.mubr.bf16.mxu0 0
        %1633 = vmatmul.mubr.bf16.gmra.mrb[0].mxu0 %v1237
        %v1634 = vpop.f32.mrb[0].mxu0
        %v1635 = vadd.f32 %v1410, %v1634
        %v1636 = vpop.f32.mrb[0].mxu0
        %v1637 = vpop.f32.mrb[0].mxu0
        %v1638 = vadd.f32 %v1413, %v1637
        %v1639 = vpop.f32.mrb[0].mxu0
        %1640 = vmatprep.mubr.bf16.mxu0 0
        %1641 = vmatmul.mubr.bf16.gmra.mrb[0].mxu0 %v1238
        %v1642 = vpop.f32.mrb[0].mxu0
        %v1643 = vadd.f32 %v1418, %v1642
        %v1644 = vpop.f32.mrb[0].mxu0
        %v1645 = vpop.f32.mrb[0].mxu0
        %v1646 = vadd.f32 %v1421, %v1645
        %v1647 = vpop.f32.mrb[0].mxu0
        %1648 = vmatprep.mubr.bf16.mxu0 0
        %1649 = vmatmul.mubr.bf16.gmra.mrb[0].mxu0 %v1239
        %v1650 = vpop.f32.mrb[0].mxu0
        %v1651 = vadd.f32 %v1426, %v1650
        %v1652 = vpop.f32.mrb[0].mxu0
        %v1653 = vpop.f32.mrb[0].mxu0
        %v1654 = vadd.f32 %v1429, %v1653
        %v1655 = vpop.f32.mrb[0].mxu0
        %1656 = vmatprep.mubr.bf16.mxu0 0
        %1657 = vmatmul.mubr.bf16.gmra.mrb[0].mxu0 %v1240
        %v1658 = vpop.f32.mrb[0].mxu0
        %v1659 = vadd.f32 %v1434, %v1658
        %v1660 = vpop.f32.mrb[0].mxu0
        %v1661 = vpop.f32.mrb[0].mxu0
        %v1662 = vadd.f32 %v1437, %v1661
        %v1663 = vpop.f32.mrb[0].mxu0
        %1664 = vmatprep.mubr.bf16.mxu0 0
        %1665 = vmatmul.mubr.bf16.gmra.mrb[0].mxu0 %v1241
        %v1666 = vpop.f32.mrb[0].mxu0
        %v1667 = vadd.f32 %v1442, %v1666
        %v1668 = vpop.f32.mrb[0].mxu0
        %v1669 = vpop.f32.mrb[0].mxu0
        %v1670 = vadd.f32 %v1445, %v1669
        %v1671 = vpop.f32.mrb[0].mxu0
        %1672 = vmatprep.mubr.bf16.mxu0 0
        %1673 = vmatmul.mubr.bf16.gmra.mrb[0].mxu0 %v1242
        %v1674 = vpop.f32.mrb[0].mxu0
        %v1675 = vadd.f32 %v1450, %v1674
        %v1676 = vpop.f32.mrb[0].mxu0
        %v1677 = vpop.f32.mrb[0].mxu0
        %v1678 = vadd.f32 %v1453, %v1677
        %v1679 = vpop.f32.mrb[0].mxu0
        %1680 = vmatprep.mubr.bf16.mxu0 0
        %1681 = vmatmul.mubr.bf16.gmra.mrb[0].mxu0 %v1243
        %v1682 = vpop.f32.mrb[0].mxu0
        %v1683 = vadd.f32 %v1458, %v1682
        %v1684 = vpop.f32.mrb[0].mxu0
        %v1685 = vpop.f32.mrb[0].mxu0
        %v1686 = vadd.f32 %v1461, %v1685
        %v1687 = vpop.f32.mrb[0].mxu0
        %1688 = vmatprep.mubr.bf16.mxu0 0
        %1689 = vmatmul.mubr.bf16.gmra.mrb[0].mxu0 %v1244
        %v1690 = vpop.f32.mrb[0].mxu0
        %v1691 = vadd.f32 %v1466, %v1690
        %v1692 = vpop.f32.mrb[0].mxu0
        %v1693 = vpop.f32.mrb[0].mxu0
        %v1694 = vadd.f32 %v1469, %v1693
        %v1695 = vpop.f32.mrb[0].mxu0
        %1696 = vmatprep.mubr.bf16.mxu0 0
        %1697 = vmatmul.mubr.bf16.gmra.mrb[0].mxu0 %v1245
        %v1698 = vpop.f32.mrb[0].mxu0
        %v1699 = vadd.f32 %v1474, %v1698
        %v1700 = vpop.f32.mrb[0].mxu0
        %v1701 = vpop.f32.mrb[0].mxu0
        %v1702 = vadd.f32 %v1477, %v1701
        %v1703 = vpop.f32.mrb[0].mxu0
        %1704 = vmatprep.mubr.bf16.mxu0 0
        %1705 = vmatmul.mubr.bf16.gmra.mrb[0].mxu0 %v1246
        %v1706 = vpop.f32.mrb[0].mxu0
        %v1707 = vadd.f32 %v1482, %v1706
        %v1708 = vpop.f32.mrb[0].mxu0
        %v1709 = vpop.f32.mrb[0].mxu0
        %v1710 = vadd.f32 %v1485, %v1709
        %v1711 = vpop.f32.mrb[0].mxu0
        %1712 = vmatprep.mubr.bf16.mxu0 0
        %1713 = vmatmul.mubr.bf16.gmra.mrb[0].mxu0 %v1247
        %v1714 = vpop.f32.mrb[0].mxu0
        %v1715 = vadd.f32 %v1490, %v1714
        %v1716 = vpop.f32.mrb[0].mxu0
        %v1717 = vpop.f32.mrb[0].mxu0
        %v1718 = vadd.f32 %v1493, %v1717
        %v1719 = vpop.f32.mrb[0].mxu0
        %1720 = vmatprep.mubr.bf16.mxu0 0
        %1721 = vmatmul.mubr.bf16.gmra.mrb[0].mxu0 %v1248
        %v1722 = vpop.f32.mrb[0].mxu0
        %v1723 = vadd.f32 %v1498, %v1722
        %v1724 = vpop.f32.mrb[0].mxu0
        %v1725 = vpop.f32.mrb[0].mxu0
        %v1726 = vadd.f32 %v1501, %v1725
        %v1727 = vpop.f32.mrb[0].mxu0
        %1728 = vmatprep.mubr.bf16.mxu0 0
        %1729 = vmatmul.mubr.bf16.gmra.mrb[0].mxu0 %v1249
        %v1730 = vpop.f32.mrb[0].mxu0
        %v1731 = vadd.f32 %v1506, %v1730
        %v1732 = vpop.f32.mrb[0].mxu0
        %v1733 = vpop.f32.mrb[0].mxu0
        %v1734 = vadd.f32 %v1509, %v1733
        %v1735 = vpop.f32.mrb[0].mxu0
        %1736 = vmatprep.mubr.bf16.mxu0 0
        %1737 = vmatmul.mubr.bf16.gmra.mrb[0].mxu0 %v1250
        %v1738 = vpop.f32.mrb[0].mxu0
        %v1739 = vadd.f32 %v1514, %v1738
        %v1740 = vpop.f32.mrb[0].mxu0
        %v1741 = vpop.f32.mrb[0].mxu0
        %v1742 = vadd.f32 %v1517, %v1741
        %v1743 = vpop.f32.mrb[0].mxu0
        %1744 = vmatprep.mubr.bf16.mxu0 0
        %1745 = vmatmul.mubr.bf16.gmra.mrb[0].mxu0 %v1251
        %v1746 = vpop.f32.mrb[0].mxu0
        %v1747 = vadd.f32 %v1522, %v1746
        %v1748 = vpop.f32.mrb[0].mxu0
        %v1749 = vpop.f32.mrb[0].mxu0
        %v1750 = vadd.f32 %v1525, %v1749
        %v1751 = vpop.f32.mrb[0].mxu0
        %1752 = vdwg.mxu0
        %v1753 = vpack.c.bf16 0.0, %v1233
        %s1754 = scalar_lea.vmem [#allocation4], 128
        %v1755 = vld [vmem:[%s1754] sm:$0xf]
        %v1756 = vld [vmem:[%s1754 + $0x4] sm:$0xf]
        %v1757 = vld [vmem:[%s1754 + $0x8] sm:$0xf]
        %v1758 = vld [vmem:[%s1754 + $0xc] sm:$0xf]
        %v1759 = vld [vmem:[%s1754 + $0x10] sm:$0xf]
        %v1760 = vld [vmem:[%s1754 + $0x14] sm:$0xf]
        %v1761 = vld [vmem:[%s1754 + $0x18] sm:$0xf]
        %v1762 = vld [vmem:[%s1754 + $0x1c] sm:$0xf]
        %v1763 = vld [vmem:[%s1754 + $0x20] sm:$0xf]
        %v1764 = vld [vmem:[%s1754 + $0x24] sm:$0xf]
        %v1765 = vld [vmem:[%s1754 + $0x28] sm:$0xf]
        %v1766 = vld [vmem:[%s1754 + $0x2c] sm:$0xf]
        %v1767 = vld [vmem:[%s1754 + $0x30] sm:$0xf]
        %v1768 = vld [vmem:[%s1754 + $0x34] sm:$0xf]
        %v1769 = vld [vmem:[%s1754 + $0x38] sm:$0xf]
        %v1770 = vld [vmem:[%s1754 + $0x3c] sm:$0xf]
        %v1787 = vunpack.c.l.b16 %v1755
        %v1788 = vunpack.c.l.b16 %v1756
        %v1789 = vunpack.c.l.b16 %v1757
        %v1790 = vunpack.c.l.b16 %v1758
        %v1791 = vunpack.c.l.b16 %v1759
        %v1792 = vunpack.c.l.b16 %v1760
        %v1793 = vunpack.c.l.b16 %v1761
        %v1794 = vunpack.c.l.b16 %v1762
        %v1795 = vunpack.c.l.b16 %v1763
        %v1796 = vunpack.c.l.b16 %v1764
        %v1797 = vunpack.c.l.b16 %v1765
        %v1798 = vunpack.c.l.b16 %v1766
        %v1799 = vunpack.c.l.b16 %v1767
        %v1800 = vunpack.c.l.b16 %v1768
        %v1801 = vunpack.c.l.b16 %v1769
        %v1802 = vunpack.c.l.b16 %v1770
        %v1803 = vpack.c.b16 %v1788, %v1787
        %v1804 = vpack.c.b16 %v1790, %v1789
        %v1805 = vpack.c.b16 %v1792, %v1791
        %v1806 = vpack.c.b16 %v1794, %v1793
        %v1807 = vpack.c.b16 %v1796, %v1795
        %v1808 = vpack.c.b16 %v1798, %v1797
        %v1809 = vpack.c.b16 %v1800, %v1799
        %v1810 = vpack.c.b16 %v1802, %v1801
        %1819 = vmatprep.subr.bf16.mxu0 0
        %1820 = vmatpush1.bf16.msra.mxu0 %v1803
        %1821 = vmatprep.subr.bf16.mxu0 0
        %1822 = vmatpush1.bf16.msra.mxu0 %v1804
        %1823 = vmatprep.subr.bf16.mxu0 0
        %1824 = vmatpush1.bf16.msra.mxu0 %v1805
        %1825 = vmatprep.subr.bf16.mxu0 0
        %1826 = vmatpush1.bf16.msra.mxu0 %v1806
        %1827 = vmatprep.subr.bf16.mxu0 0
        %1828 = vmatpush1.bf16.msra.mxu0 %v1807
        %1829 = vmatprep.subr.bf16.mxu0 0
        %1830 = vmatpush1.bf16.msra.mxu0 %v1808
        %1831 = vmatprep.subr.bf16.mxu0 0
        %1832 = vmatpush1.bf16.msra.mxu0 %v1809
        %1833 = vmatprep.subr.bf16.mxu0 0
        %1834 = vmatpush1.bf16.msra.mxu0 %v1810
        %1835 = vmatprep.subr.bf16.mxu0 0
        %1836 = vmatpush1.bf16.msra.mxu0 0
        %1837 = vmatprep.subr.bf16.mxu0 0
        %1838 = vmatpush1.bf16.msra.mxu0 0
        %1839 = vmatprep.subr.bf16.mxu0 0
        %1840 = vmatpush1.bf16.msra.mxu0 0
        %1841 = vmatprep.subr.bf16.mxu0 0
        %1842 = vmatpush1.bf16.msra.mxu0 0
        %1843 = vmatprep.subr.bf16.mxu0 0
        %1844 = vmatpush1.bf16.msra.mxu0 0
        %1845 = vmatprep.subr.bf16.mxu0 0
        %1846 = vmatpush1.bf16.msra.mxu0 0
        %1847 = vmatprep.subr.bf16.mxu0 0
        %1848 = vmatpush1.bf16.msra.mxu0 0
        %1849 = vmatprep.subr.bf16.mxu0 0
        %1850 = vmatpush1.bf16.msra.mxu0 0
        %1851 = vmatprep.mubr.bf16.mxu0 0
        %1852 = vmatmul.mubr.bf16.gmra.mrb[0].mxu0 %v1235
        %v1853 = vpop.f32.mrb[0].mxu0
        %v1854 = vadd.f32 0.0, %v1853
        %v1855 = vpop.f32.mrb[0].mxu0
        %v1856 = vpop.f32.mrb[0].mxu0
        %v1857 = vadd.f32 0.0, %v1856
        %v1858 = vpop.f32.mrb[0].mxu0
        %1859 = vmatprep.mubr.bf16.mxu0 0
        %1860 = vmatmul.mubr.bf16.gmra.mrb[0].mxu0 %v1236
        %v1861 = vpop.f32.mrb[0].mxu0
        %v1862 = vadd.f32 0.0, %v1861
        %v1863 = vpop.f32.mrb[0].mxu0
        %v1864 = vpop.f32.mrb[0].mxu0
        %v1865 = vadd.f32 0.0, %v1864
        %v1866 = vpop.f32.mrb[0].mxu0
        %1867 = vmatprep.mubr.bf16.mxu0 0
        %1868 = vmatmul.mubr.bf16.gmra.mrb[0].mxu0 %v1237
        %v1869 = vpop.f32.mrb[0].mxu0
        %v1870 = vadd.f32 0.0, %v1869
        %v1871 = vpop.f32.mrb[0].mxu0
        %v1872 = vpop.f32.mrb[0].mxu0
        %v1873 = vadd.f32 0.0, %v1872
        %v1874 = vpop.f32.mrb[0].mxu0
        %1875 = vmatprep.mubr.bf16.mxu0 0
        %1876 = vmatmul.mubr.bf16.gmra.mrb[0].mxu0 %v1238
        %v1877 = vpop.f32.mrb[0].mxu0
        %v1878 = vadd.f32 0.0, %v1877
        %v1879 = vpop.f32.mrb[0].mxu0
        %v1880 = vpop.f32.mrb[0].mxu0
        %v1881 = vadd.f32 0.0, %v1880
        %v1882 = vpop.f32.mrb[0].mxu0
        %1883 = vmatprep.mubr.bf16.mxu0 0
        %1884 = vmatmul.mubr.bf16.gmra.mrb[0].mxu0 %v1239
        %v1885 = vpop.f32.mrb[0].mxu0
        %v1886 = vadd.f32 0.0, %v1885
        %v1887 = vpop.f32.mrb[0].mxu0
        %v1888 = vpop.f32.mrb[0].mxu0
        %v1889 = vadd.f32 0.0, %v1888
        %v1890 = vpop.f32.mrb[0].mxu0
        %1891 = vmatprep.mubr.bf16.mxu0 0
        %1892 = vmatmul.mubr.bf16.gmra.mrb[0].mxu0 %v1240
        %v1893 = vpop.f32.mrb[0].mxu0
        %v1894 = vadd.f32 0.0, %v1893
        %v1895 = vpop.f32.mrb[0].mxu0
        %v1896 = vpop.f32.mrb[0].mxu0
        %v1897 = vadd.f32 0.0, %v1896
        %v1898 = vpop.f32.mrb[0].mxu0
        %1899 = vmatprep.mubr.bf16.mxu0 0
        %1900 = vmatmul.mubr.bf16.gmra.mrb[0].mxu0 %v1241
        %v1901 = vpop.f32.mrb[0].mxu0
        %v1902 = vadd.f32 0.0, %v1901
        %v1903 = vpop.f32.mrb[0].mxu0
        %v1904 = vpop.f32.mrb[0].mxu0
        %v1905 = vadd.f32 0.0, %v1904
        %v1906 = vpop.f32.mrb[0].mxu0
        %1907 = vmatprep.mubr.bf16.mxu0 0
        %1908 = vmatmul.mubr.bf16.gmra.mrb[0].mxu0 %v1242
        %v1909 = vpop.f32.mrb[0].mxu0
        %v1910 = vadd.f32 0.0, %v1909
        %v1911 = vpop.f32.mrb[0].mxu0
        %v1912 = vpop.f32.mrb[0].mxu0
        %v1913 = vadd.f32 0.0, %v1912
        %v1914 = vpop.f32.mrb[0].mxu0
        %1915 = vmatprep.mubr.bf16.mxu0 0
        %1916 = vmatmul.mubr.bf16.gmra.mrb[0].mxu0 %v1243
        %v1917 = vpop.f32.mrb[0].mxu0
        %v1918 = vadd.f32 0.0, %v1917
        %v1919 = vpop.f32.mrb[0].mxu0
        %v1920 = vpop.f32.mrb[0].mxu0
        %v1921 = vadd.f32 0.0, %v1920
        %v1922 = vpop.f32.mrb[0].mxu0
        %1923 = vmatprep.mubr.bf16.mxu0 0
        %1924 = vmatmul.mubr.bf16.gmra.mrb[0].mxu0 %v1244
        %v1925 = vpop.f32.mrb[0].mxu0
        %v1926 = vadd.f32 0.0, %v1925
        %v1927 = vpop.f32.mrb[0].mxu0
        %v1928 = vpop.f32.mrb[0].mxu0
        %v1929 = vadd.f32 0.0, %v1928
        %v1930 = vpop.f32.mrb[0].mxu0
        %1931 = vmatprep.mubr.bf16.mxu0 0
        %1932 = vmatmul.mubr.bf16.gmra.mrb[0].mxu0 %v1245
        %v1933 = vpop.f32.mrb[0].mxu0
        %v1934 = vadd.f32 0.0, %v1933
        %v1935 = vpop.f32.mrb[0].mxu0
        %v1936 = vpop.f32.mrb[0].mxu0
        %v1937 = vadd.f32 0.0, %v1936
        %v1938 = vpop.f32.mrb[0].mxu0
        %1939 = vmatprep.mubr.bf16.mxu0 0
        %1940 = vmatmul.mubr.bf16.gmra.mrb[0].mxu0 %v1246
        %v1941 = vpop.f32.mrb[0].mxu0
        %v1942 = vadd.f32 0.0, %v1941
        %v1943 = vpop.f32.mrb[0].mxu0
        %v1944 = vpop.f32.mrb[0].mxu0
        %v1945 = vadd.f32 0.0, %v1944
        %v1946 = vpop.f32.mrb[0].mxu0
        %1947 = vmatprep.mubr.bf16.mxu0 0
        %1948 = vmatmul.mubr.bf16.gmra.mrb[0].mxu0 %v1247
        %v1949 = vpop.f32.mrb[0].mxu0
        %v1950 = vadd.f32 0.0, %v1949
        %v1951 = vpop.f32.mrb[0].mxu0
        %v1952 = vpop.f32.mrb[0].mxu0
        %v1953 = vadd.f32 0.0, %v1952
        %v1954 = vpop.f32.mrb[0].mxu0
        %1955 = vmatprep.mubr.bf16.mxu0 0
        %1956 = vmatmul.mubr.bf16.gmra.mrb[0].mxu0 %v1248
        %v1957 = vpop.f32.mrb[0].mxu0
        %v1958 = vadd.f32 0.0, %v1957
        %v1959 = vpop.f32.mrb[0].mxu0
        %v1960 = vpop.f32.mrb[0].mxu0
        %v1961 = vadd.f32 0.0, %v1960
        %v1962 = vpop.f32.mrb[0].mxu0
        %1963 = vmatprep.mubr.bf16.mxu0 0
        %1964 = vmatmul.mubr.bf16.gmra.mrb[0].mxu0 %v1249
        %v1965 = vpop.f32.mrb[0].mxu0
        %v1966 = vadd.f32 0.0, %v1965
        %v1967 = vpop.f32.mrb[0].mxu0
        %v1968 = vpop.f32.mrb[0].mxu0
        %v1969 = vadd.f32 0.0, %v1968
        %v1970 = vpop.f32.mrb[0].mxu0
        %1971 = vmatprep.mubr.bf16.mxu0 0
        %1972 = vmatmul.mubr.bf16.gmra.mrb[0].mxu0 %v1250
        %v1973 = vpop.f32.mrb[0].mxu0
        %v1974 = vadd.f32 0.0, %v1973
        %v1975 = vpop.f32.mrb[0].mxu0
        %v1976 = vpop.f32.mrb[0].mxu0
        %v1977 = vadd.f32 0.0, %v1976
        %v1978 = vpop.f32.mrb[0].mxu0
        %1979 = vmatprep.mubr.bf16.mxu0 0
        %1980 = vmatmul.mubr.bf16.gmra.mrb[0].mxu0 %v1251
        %v1981 = vpop.f32.mrb[0].mxu0
        %v1982 = vadd.f32 0.0, %v1981
        %v1983 = vpop.f32.mrb[0].mxu0
        %v1984 = vpop.f32.mrb[0].mxu0
        %v1985 = vadd.f32 0.0, %v1984
        %v1986 = vpop.f32.mrb[0].mxu0
        %1987 = vmatprep.mubr.bf16.mxu0 0
        %1988 = vmatmul.mubr.bf16.gmra.mrb[0].mxu0 %v1753
        %v1989 = vpop.f32.mrb[0].mxu0
        %v1990 = vadd.f32 0.0, %v1989
        %v1991 = vpop.f32.mrb[0].mxu0
        %v1992 = vpop.f32.mrb[0].mxu0
        %v1993 = vadd.f32 0.0, %v1992
        %v1994 = vpop.f32.mrb[0].mxu0
        %1995 = vdwg.mxu0
        %v1996 = vadd.f32 %v1611, %v1854
        %v1997 = vadd.f32 %v1614, %v1857
        %v1998 = vadd.f32 %v1619, %v1862
        %v1999 = vadd.f32 %v1622, %v1865
        %v2000 = vadd.f32 %v1627, %v1870
        %v2001 = vadd.f32 %v1630, %v1873
        %v2002 = vadd.f32 %v1635, %v1878
        %v2003 = vadd.f32 %v1638, %v1881
        %v2004 = vadd.f32 %v1643, %v1886
        %v2005 = vadd.f32 %v1646, %v1889
        %v2006 = vadd.f32 %v1651, %v1894
        %v2007 = vadd.f32 %v1654, %v1897
        %v2008 = vadd.f32 %v1659, %v1902
        %v2009 = vadd.f32 %v1662, %v1905
        %v2010 = vadd.f32 %v1667, %v1910
        %v2011 = vadd.f32 %v1670, %v1913
        %v2012 = vadd.f32 %v1675, %v1918
        %v2013 = vadd.f32 %v1678, %v1921
        %v2014 = vadd.f32 %v1683, %v1926
        %v2015 = vadd.f32 %v1686, %v1929
        %v2016 = vadd.f32 %v1691, %v1934
        %v2017 = vadd.f32 %v1694, %v1937
        %v2018 = vadd.f32 %v1699, %v1942
        %v2019 = vadd.f32 %v1702, %v1945
        %v2020 = vadd.f32 %v1707, %v1950
        %v2021 = vadd.f32 %v1710, %v1953
        %v2022 = vadd.f32 %v1715, %v1958
        %v2023 = vadd.f32 %v1718, %v1961
        %v2024 = vadd.f32 %v1723, %v1966
        %v2025 = vadd.f32 %v1726, %v1969
        %v2026 = vadd.f32 %v1731, %v1974
        %v2027 = vadd.f32 %v1734, %v1977
        %v2028 = vadd.f32 %v1739, %v1982
        %v2029 = vadd.f32 %v1742, %v1985
        %v2030 = vadd.f32 %v1747, %v1990
        %v2031 = vadd.f32 %v1750, %v1993
        %v2032 = vlaneseq
        %v2033 = vshrl.u32 %v2032, 7
        %v2034 = vsub.s32 2, %v2033
        %v2035 = vrot.slane %v517, %v2034
        %v2036 = vadd.f32 %v1996, %v2035
        %v2037 = vadd.f32 %v1997, %v2035
        %v2038 = vadd.f32 %v1998, %v2035
        %v2039 = vadd.f32 %v1999, %v2035
        %v2040 = vadd.f32 %v2000, %v2035
        %v2041 = vadd.f32 %v2001, %v2035
        %v2042 = vadd.f32 %v2002, %v2035
        %v2043 = vadd.f32 %v2003, %v2035
        %v2044 = vadd.f32 %v2004, %v2035
        %v2045 = vadd.f32 %v2005, %v2035
        %v2046 = vadd.f32 %v2006, %v2035
        %v2047 = vadd.f32 %v2007, %v2035
        %v2048 = vadd.f32 %v2008, %v2035
        %v2049 = vadd.f32 %v2009, %v2035
        %v2050 = vadd.f32 %v2010, %v2035
        %v2051 = vadd.f32 %v2011, %v2035
        %v2052 = vadd.f32 %v2012, %v2035
        %v2053 = vadd.f32 %v2013, %v2035
        %v2054 = vadd.f32 %v2014, %v2035
        %v2055 = vadd.f32 %v2015, %v2035
        %v2056 = vadd.f32 %v2016, %v2035
        %v2057 = vadd.f32 %v2017, %v2035
        %v2058 = vadd.f32 %v2018, %v2035
        %v2059 = vadd.f32 %v2019, %v2035
        %v2060 = vadd.f32 %v2020, %v2035
        %v2061 = vadd.f32 %v2021, %v2035
        %v2062 = vadd.f32 %v2022, %v2035
        %v2063 = vadd.f32 %v2023, %v2035
        %v2064 = vadd.f32 %v2024, %v2035
        %v2065 = vadd.f32 %v2025, %v2035
        %v2066 = vadd.f32 %v2026, %v2035
        %v2067 = vadd.f32 %v2027, %v2035
        %v2068 = vadd.f32 %v2028, %v2035
        %v2069 = vadd.f32 %v2029, %v2035
        %v2070 = vadd.f32 %v2030, %v2035
        %v2071 = vadd.f32 %v2031, %v2035
        %v2072 = vmax.f32 %v2036, 0.0
        %v2073 = vmax.f32 %v2037, 0.0
        %v2074 = vmax.f32 %v2038, 0.0
        %v2075 = vmax.f32 %v2039, 0.0
        %v2076 = vmax.f32 %v2040, 0.0
        %v2077 = vmax.f32 %v2041, 0.0
        %v2078 = vmax.f32 %v2042, 0.0
        %v2079 = vmax.f32 %v2043, 0.0
        %v2080 = vmax.f32 %v2044, 0.0
        %v2081 = vmax.f32 %v2045, 0.0
        %v2082 = vmax.f32 %v2046, 0.0
        %v2083 = vmax.f32 %v2047, 0.0
        %v2084 = vmax.f32 %v2048, 0.0
        %v2085 = vmax.f32 %v2049, 0.0
        %v2086 = vmax.f32 %v2050, 0.0
        %v2087 = vmax.f32 %v2051, 0.0
        %v2088 = vmax.f32 %v2052, 0.0
        %v2089 = vmax.f32 %v2053, 0.0
        %v2090 = vmax.f32 %v2054, 0.0
        %v2091 = vmax.f32 %v2055, 0.0
        %v2092 = vmax.f32 %v2056, 0.0
        %v2093 = vmax.f32 %v2057, 0.0
        %v2094 = vmax.f32 %v2058, 0.0
        %v2095 = vmax.f32 %v2059, 0.0
        %v2096 = vmax.f32 %v2060, 0.0
        %v2097 = vmax.f32 %v2061, 0.0
        %v2098 = vmax.f32 %v2062, 0.0
        %v2099 = vmax.f32 %v2063, 0.0
        %v2100 = vmax.f32 %v2064, 0.0
        %v2101 = vmax.f32 %v2065, 0.0
        %v2102 = vmax.f32 %v2066, 0.0
        %v2103 = vmax.f32 %v2067, 0.0
        %v2104 = vmax.f32 %v2068, 0.0
        %v2105 = vmax.f32 %v2069, 0.0
        %v2106 = vmax.f32 %v2070, 0.0
        %v2107 = vmax.f32 %v2071, 0.0
        %v2108 = vpack.c.bf16 %v2073, %v2072
        %v2109 = vpack.c.bf16 %v2075, %v2074
        %v2110 = vpack.c.bf16 %v2077, %v2076
        %v2111 = vpack.c.bf16 %v2079, %v2078
        %v2112 = vpack.c.bf16 %v2081, %v2080
        %v2113 = vpack.c.bf16 %v2083, %v2082
        %v2114 = vpack.c.bf16 %v2085, %v2084
        %v2115 = vpack.c.bf16 %v2087, %v2086
        %v2116 = vpack.c.bf16 %v2089, %v2088
        %v2117 = vpack.c.bf16 %v2091, %v2090
        %v2118 = vpack.c.bf16 %v2093, %v2092
        %v2119 = vpack.c.bf16 %v2095, %v2094
        %v2120 = vpack.c.bf16 %v2097, %v2096
        %v2121 = vpack.c.bf16 %v2099, %v2098
        %v2122 = vpack.c.bf16 %v2101, %v2100
        %v2123 = vpack.c.bf16 %v2103, %v2102
        %v2124 = vpack.c.bf16 %v2105, %v2104
        %v2125 = vpack.c.bf16 %v2107, %v2106
        %v2126 = vld [vmem:[#allocation6] sm:$0xf]
        %v2127 = vld [vmem:[#allocation6 + $0x4] sm:$0xf]
        %v2128 = vld [vmem:[#allocation6 + $0x8] sm:$0xf]
        %v2129 = vld [vmem:[#allocation6 + $0xc] sm:$0xf]
        %v2130 = vld [vmem:[#allocation6 + $0x10] sm:$0xf]
        %v2131 = vld [vmem:[#allocation6 + $0x14] sm:$0xf]
        %v2132 = vld [vmem:[#allocation6 + $0x18] sm:$0xf]
        %v2133 = vld [vmem:[#allocation6 + $0x1c] sm:$0xf]
        %v2134 = vld [vmem:[#allocation6 + $0x20] sm:$0xf]
        %v2135 = vld [vmem:[#allocation6 + $0x24] sm:$0xf]
        %v2136 = vld [vmem:[#allocation6 + $0x28] sm:$0xf]
        %v2137 = vld [vmem:[#allocation6 + $0x2c] sm:$0xf]
        %v2138 = vld [vmem:[#allocation6 + $0x30] sm:$0xf]
        %v2139 = vld [vmem:[#allocation6 + $0x34] sm:$0xf]
        %v2140 = vld [vmem:[#allocation6 + $0x38] sm:$0xf]
        %v2141 = vld [vmem:[#allocation6 + $0x3c] sm:$0xf]
        %v2142 = vlaneseq
        %v2143 = vshrl.u32 %v2142, 7
        %v2144 = vsub.s32 3, %v2143
        %v2145 = vrot.slane %v517, %v2144
        %v2162 = vunpack.c.l.b16 %v2126
        %v2163 = vunpack.c.l.b16 %v2127
        %v2164 = vunpack.c.l.b16 %v2128
        %v2165 = vunpack.c.l.b16 %v2129
        %v2166 = vunpack.c.l.b16 %v2130
        %v2167 = vunpack.c.l.b16 %v2131
        %v2168 = vunpack.c.l.b16 %v2132
        %v2169 = vunpack.c.l.b16 %v2133
        %v2170 = vunpack.c.l.b16 %v2134
        %v2171 = vunpack.c.l.b16 %v2135
        %v2172 = vunpack.c.l.b16 %v2136
        %v2173 = vunpack.c.l.b16 %v2137
        %v2174 = vunpack.c.l.b16 %v2138
        %v2175 = vunpack.c.l.b16 %v2139
        %v2176 = vunpack.c.l.b16 %v2140
        %v2177 = vunpack.c.l.b16 %v2141
        %v2178 = vpack.c.b16 %v2163, %v2162
        %v2179 = vpack.c.b16 %v2165, %v2164
        %v2180 = vpack.c.b16 %v2167, %v2166
        %v2181 = vpack.c.b16 %v2169, %v2168
        %v2182 = vpack.c.b16 %v2171, %v2170
        %v2183 = vpack.c.b16 %v2173, %v2172
        %v2184 = vpack.c.b16 %v2175, %v2174
        %v2185 = vpack.c.b16 %v2177, %v2176
        %2194 = vmatprep.subr.bf16.mxu0 0
        %2195 = vmatpush1.bf16.msra.mxu0 %v2178
        %2196 = vmatprep.subr.bf16.mxu0 0
        %2197 = vmatpush1.bf16.msra.mxu0 %v2179
        %2198 = vmatprep.subr.bf16.mxu0 0
        %2199 = vmatpush1.bf16.msra.mxu0 %v2180
        %2200 = vmatprep.subr.bf16.mxu0 0
        %2201 = vmatpush1.bf16.msra.mxu0 %v2181
        %2202 = vmatprep.subr.bf16.mxu0 0
        %2203 = vmatpush1.bf16.msra.mxu0 %v2182
        %2204 = vmatprep.subr.bf16.mxu0 0
        %2205 = vmatpush1.bf16.msra.mxu0 %v2183
        %2206 = vmatprep.subr.bf16.mxu0 0
        %2207 = vmatpush1.bf16.msra.mxu0 %v2184
        %2208 = vmatprep.subr.bf16.mxu0 0
        %2209 = vmatpush1.bf16.msra.mxu0 %v2185
        %2210 = vmatprep.subr.bf16.mxu0 0
        %2211 = vmatpush1.bf16.msra.mxu0 0
        %2212 = vmatprep.subr.bf16.mxu0 0
        %2213 = vmatpush1.bf16.msra.mxu0 0
        %2214 = vmatprep.subr.bf16.mxu0 0
        %2215 = vmatpush1.bf16.msra.mxu0 0
        %2216 = vmatprep.subr.bf16.mxu0 0
        %2217 = vmatpush1.bf16.msra.mxu0 0
        %2218 = vmatprep.subr.bf16.mxu0 0
        %2219 = vmatpush1.bf16.msra.mxu0 0
        %2220 = vmatprep.subr.bf16.mxu0 0
        %2221 = vmatpush1.bf16.msra.mxu0 0
        %2222 = vmatprep.subr.bf16.mxu0 0
        %2223 = vmatpush1.bf16.msra.mxu0 0
        %2224 = vmatprep.subr.bf16.mxu0 0
        %2225 = vmatpush1.bf16.msra.mxu0 0
        %2226 = vmatprep.mubr.bf16.mxu0 0
        %2227 = vmatmul.mubr.bf16.gmra.mrb[0].mxu0 %v2108
        %v2228 = vpop.f32.mrb[0].mxu0
        %v2229 = vadd.f32 %v2145, %v2228
        %v2230 = vpop.f32.mrb[0].mxu0
        %v2231 = vpop.f32.mrb[0].mxu0
        %v2232 = vpop.f32.mrb[0].mxu0
        %2233 = vmatprep.mubr.bf16.mxu0 0
        %2234 = vmatmul.mubr.bf16.gmra.mrb[0].mxu0 %v2109
        %v2235 = vpop.f32.mrb[0].mxu0
        %v2236 = vadd.f32 %v2145, %v2235
        %v2237 = vpop.f32.mrb[0].mxu0
        %v2238 = vpop.f32.mrb[0].mxu0
        %v2239 = vpop.f32.mrb[0].mxu0
        %2240 = vmatprep.mubr.bf16.mxu0 0
        %2241 = vmatmul.mubr.bf16.gmra.mrb[0].mxu0 %v2110
        %v2242 = vpop.f32.mrb[0].mxu0
        %v2243 = vadd.f32 %v2145, %v2242
        %v2244 = vpop.f32.mrb[0].mxu0
        %v2245 = vpop.f32.mrb[0].mxu0
        %v2246 = vpop.f32.mrb[0].mxu0
        %2247 = vmatprep.mubr.bf16.mxu0 0
        %2248 = vmatmul.mubr.bf16.gmra.mrb[0].mxu0 %v2111
        %v2249 = vpop.f32.mrb[0].mxu0
        %v2250 = vadd.f32 %v2145, %v2249
        %v2251 = vpop.f32.mrb[0].mxu0
        %v2252 = vpop.f32.mrb[0].mxu0
        %v2253 = vpop.f32.mrb[0].mxu0
        %2254 = vmatprep.mubr.bf16.mxu0 0
        %2255 = vmatmul.mubr.bf16.gmra.mrb[0].mxu0 %v2112
        %v2256 = vpop.f32.mrb[0].mxu0
        %v2257 = vadd.f32 %v2145, %v2256
        %v2258 = vpop.f32.mrb[0].mxu0
        %v2259 = vpop.f32.mrb[0].mxu0
        %v2260 = vpop.f32.mrb[0].mxu0
        %2261 = vmatprep.mubr.bf16.mxu0 0
        %2262 = vmatmul.mubr.bf16.gmra.mrb[0].mxu0 %v2113
        %v2263 = vpop.f32.mrb[0].mxu0
        %v2264 = vadd.f32 %v2145, %v2263
        %v2265 = vpop.f32.mrb[0].mxu0
        %v2266 = vpop.f32.mrb[0].mxu0
        %v2267 = vpop.f32.mrb[0].mxu0
        %2268 = vmatprep.mubr.bf16.mxu0 0
        %2269 = vmatmul.mubr.bf16.gmra.mrb[0].mxu0 %v2114
        %v2270 = vpop.f32.mrb[0].mxu0
        %v2271 = vadd.f32 %v2145, %v2270
        %v2272 = vpop.f32.mrb[0].mxu0
        %v2273 = vpop.f32.mrb[0].mxu0
        %v2274 = vpop.f32.mrb[0].mxu0
        %2275 = vmatprep.mubr.bf16.mxu0 0
        %2276 = vmatmul.mubr.bf16.gmra.mrb[0].mxu0 %v2115
        %v2277 = vpop.f32.mrb[0].mxu0
        %v2278 = vadd.f32 %v2145, %v2277
        %v2279 = vpop.f32.mrb[0].mxu0
        %v2280 = vpop.f32.mrb[0].mxu0
        %v2281 = vpop.f32.mrb[0].mxu0
        %2282 = vmatprep.mubr.bf16.mxu0 0
        %2283 = vmatmul.mubr.bf16.gmra.mrb[0].mxu0 %v2116
        %v2284 = vpop.f32.mrb[0].mxu0
        %v2285 = vadd.f32 %v2145, %v2284
        %v2286 = vpop.f32.mrb[0].mxu0
        %v2287 = vpop.f32.mrb[0].mxu0
        %v2288 = vpop.f32.mrb[0].mxu0
        %2289 = vmatprep.mubr.bf16.mxu0 0
        %2290 = vmatmul.mubr.bf16.gmra.mrb[0].mxu0 %v2117
        %v2291 = vpop.f32.mrb[0].mxu0
        %v2292 = vadd.f32 %v2145, %v2291
        %v2293 = vpop.f32.mrb[0].mxu0
        %v2294 = vpop.f32.mrb[0].mxu0
        %v2295 = vpop.f32.mrb[0].mxu0
        %2296 = vmatprep.mubr.bf16.mxu0 0
        %2297 = vmatmul.mubr.bf16.gmra.mrb[0].mxu0 %v2118
        %v2298 = vpop.f32.mrb[0].mxu0
        %v2299 = vadd.f32 %v2145, %v2298
        %v2300 = vpop.f32.mrb[0].mxu0
        %v2301 = vpop.f32.mrb[0].mxu0
        %v2302 = vpop.f32.mrb[0].mxu0
        %2303 = vmatprep.mubr.bf16.mxu0 0
        %2304 = vmatmul.mubr.bf16.gmra.mrb[0].mxu0 %v2119
        %v2305 = vpop.f32.mrb[0].mxu0
        %v2306 = vadd.f32 %v2145, %v2305
        %v2307 = vpop.f32.mrb[0].mxu0
        %v2308 = vpop.f32.mrb[0].mxu0
        %v2309 = vpop.f32.mrb[0].mxu0
        %2310 = vmatprep.mubr.bf16.mxu0 0
        %2311 = vmatmul.mubr.bf16.gmra.mrb[0].mxu0 %v2120
        %v2312 = vpop.f32.mrb[0].mxu0
        %v2313 = vadd.f32 %v2145, %v2312
        %v2314 = vpop.f32.mrb[0].mxu0
        %v2315 = vpop.f32.mrb[0].mxu0
        %v2316 = vpop.f32.mrb[0].mxu0
        %2317 = vmatprep.mubr.bf16.mxu0 0
        %2318 = vmatmul.mubr.bf16.gmra.mrb[0].mxu0 %v2121
        %v2319 = vpop.f32.mrb[0].mxu0
        %v2320 = vadd.f32 %v2145, %v2319
        %v2321 = vpop.f32.mrb[0].mxu0
        %v2322 = vpop.f32.mrb[0].mxu0
        %v2323 = vpop.f32.mrb[0].mxu0
        %2324 = vmatprep.mubr.bf16.mxu0 0
        %2325 = vmatmul.mubr.bf16.gmra.mrb[0].mxu0 %v2122
        %v2326 = vpop.f32.mrb[0].mxu0
        %v2327 = vadd.f32 %v2145, %v2326
        %v2328 = vpop.f32.mrb[0].mxu0
        %v2329 = vpop.f32.mrb[0].mxu0
        %v2330 = vpop.f32.mrb[0].mxu0
        %2331 = vmatprep.mubr.bf16.mxu0 0
        %2332 = vmatmul.mubr.bf16.gmra.mrb[0].mxu0 %v2123
        %v2333 = vpop.f32.mrb[0].mxu0
        %v2334 = vadd.f32 %v2145, %v2333
        %v2335 = vpop.f32.mrb[0].mxu0
        %v2336 = vpop.f32.mrb[0].mxu0
        %v2337 = vpop.f32.mrb[0].mxu0
        %2338 = vmatprep.mubr.bf16.mxu0 0
        %2339 = vmatmul.mubr.bf16.gmra.mrb[0].mxu0 %v2124
        %v2340 = vpop.f32.mrb[0].mxu0
        %v2341 = vadd.f32 %v2145, %v2340
        %v2342 = vpop.f32.mrb[0].mxu0
        %v2343 = vpop.f32.mrb[0].mxu0
        %v2344 = vpop.f32.mrb[0].mxu0
        %2345 = vmatprep.mubr.bf16.mxu0 0
        %2346 = vmatmul.mubr.bf16.gmra.mrb[0].mxu0 %v2125
        %v2347 = vpop.f32.mrb[0].mxu0
        %v2348 = vadd.f32 %v2145, %v2347
        %v2349 = vpop.f32.mrb[0].mxu0
        %v2350 = vpop.f32.mrb[0].mxu0
        %v2351 = vpop.f32.mrb[0].mxu0
        %2352 = vdwg.mxu0
        %v2353 = vmax.f32 %v2229, 0.0
        %v2354 = vmax.f32 %v2236, 0.0
        %v2355 = vmax.f32 %v2243, 0.0
        %v2356 = vmax.f32 %v2250, 0.0
        %v2357 = vmax.f32 %v2257, 0.0
        %v2358 = vmax.f32 %v2264, 0.0
        %v2359 = vmax.f32 %v2271, 0.0
        %v2360 = vmax.f32 %v2278, 0.0
        %v2361 = vmax.f32 %v2285, 0.0
        %v2362 = vmax.f32 %v2292, 0.0
        %v2363 = vmax.f32 %v2299, 0.0
        %v2364 = vmax.f32 %v2306, 0.0
        %v2365 = vmax.f32 %v2313, 0.0
        %v2366 = vmax.f32 %v2320, 0.0
        %v2367 = vmax.f32 %v2327, 0.0
        %v2368 = vmax.f32 %v2334, 0.0
        %v2369 = vmax.f32 %v2341, 0.0
        %v2370 = vmax.f32 %v2348, 0.0
        %v2371 = vadd.f32 %v2353, %v899
        %v2372 = vadd.f32 %v2354, %v901
        %v2373 = vadd.f32 %v2355, %v903
        %v2374 = vadd.f32 %v2356, %v905
        %v2375 = vadd.f32 %v2357, %v907
        %v2376 = vadd.f32 %v2358, %v909
        %v2377 = vadd.f32 %v2359, %v911
        %v2378 = vadd.f32 %v2360, %v913
        %v2379 = vadd.f32 %v2361, %v915
        %v2380 = vadd.f32 %v2362, %v917
        %v2381 = vadd.f32 %v2363, %v919
        %v2382 = vadd.f32 %v2364, %v921
        %v2383 = vadd.f32 %v2365, %v923
        %v2384 = vadd.f32 %v2366, %v925
        %v2385 = vadd.f32 %v2367, %v927
        %v2386 = vadd.f32 %v2368, %v929
        %v2387 = vadd.f32 %v2369, %v931
        %v2388 = vadd.f32 %v2370, %v933
        %v2389 = vpack.c.bf16 %v2372, %v2371
        %v2390 = vpack.c.bf16 %v2374, %v2373
        %v2391 = vpack.c.bf16 %v2376, %v2375
        %v2392 = vpack.c.bf16 %v2378, %v2377
        %v2393 = vpack.c.bf16 %v2380, %v2379
        %v2394 = vpack.c.bf16 %v2382, %v2381
        %v2395 = vpack.c.bf16 %v2384, %v2383
        %v2396 = vpack.c.bf16 %v2386, %v2385
        %v2397 = vpack.c.bf16 %v2388, %v2387
        %v2398 = vld [vmem:[#allocation7] sm:$0xff]
        %v2399 = vld [vmem:[#allocation7 + $0x8] sm:$0xff]
        %v2400 = vld [vmem:[#allocation7 + $0x10] sm:$0xff]
        %v2401 = vld [vmem:[#allocation7 + $0x18] sm:$0xff]
        %v2402 = vld [vmem:[#allocation7 + $0x20] sm:$0xff]
        %v2403 = vld [vmem:[#allocation7 + $0x28] sm:$0xff]
        %v2404 = vld [vmem:[#allocation7 + $0x30] sm:$0xff]
        %v2405 = vld [vmem:[#allocation7 + $0x38] sm:$0xff]
        %v2406 = vld [vmem:[#allocation7 + $0x40] sm:$0xff]
        %v2407 = vld [vmem:[#allocation7 + $0x48] sm:$0xff]
        %v2408 = vld [vmem:[#allocation7 + $0x50] sm:$0xff]
        %v2409 = vld [vmem:[#allocation7 + $0x58] sm:$0xff]
        %v2410 = vld [vmem:[#allocation7 + $0x60] sm:$0xff]
        %v2411 = vld [vmem:[#allocation7 + $0x68] sm:$0xff]
        %v2412 = vld [vmem:[#allocation7 + $0x70] sm:$0xff]
        %v2413 = vld [vmem:[#allocation7 + $0x78] sm:$0xff]
        %v2414 = vlaneseq
        %v2415 = vshrl.u32 %v2414, 7
        %v2416 = vsub.s32 4, %v2415
        %v2417 = vrot.slane %v517, %v2416
        %v2418 = vlaneseq
        %v2419 = vshrl.u32 %v2418, 7
        %v2420 = vsub.s32 4, %v2419
        %v2421 = vrot.slane %v518, %v2420
        %v2438 = vunpack.c.l.b16 %v2398
        %v2439 = vunpack.c.h.b16 %v2398
        %v2440 = vunpack.c.l.b16 %v2399
        %v2441 = vunpack.c.h.b16 %v2399
        %v2442 = vunpack.c.l.b16 %v2400
        %v2443 = vunpack.c.h.b16 %v2400
        %v2444 = vunpack.c.l.b16 %v2401
        %v2445 = vunpack.c.h.b16 %v2401
        %v2446 = vunpack.c.l.b16 %v2402
        %v2447 = vunpack.c.h.b16 %v2402
        %v2448 = vunpack.c.l.b16 %v2403
        %v2449 = vunpack.c.h.b16 %v2403
        %v2450 = vunpack.c.l.b16 %v2404
        %v2451 = vunpack.c.h.b16 %v2404
        %v2452 = vunpack.c.l.b16 %v2405
        %v2453 = vunpack.c.h.b16 %v2405
        %v2454 = vunpack.c.l.b16 %v2406
        %v2455 = vunpack.c.h.b16 %v2406
        %v2456 = vunpack.c.l.b16 %v2407
        %v2457 = vunpack.c.h.b16 %v2407
        %v2458 = vunpack.c.l.b16 %v2408
        %v2459 = vunpack.c.h.b16 %v2408
        %v2460 = vunpack.c.l.b16 %v2409
        %v2461 = vunpack.c.h.b16 %v2409
        %v2462 = vunpack.c.l.b16 %v2410
        %v2463 = vunpack.c.h.b16 %v2410
        %v2464 = vunpack.c.l.b16 %v2411
        %v2465 = vunpack.c.h.b16 %v2411
        %v2466 = vunpack.c.l.b16 %v2412
        %v2467 = vunpack.c.h.b16 %v2412
        %v2468 = vunpack.c.l.b16 %v2413
        %v2469 = vunpack.c.h.b16 %v2413
        %v2470 = vpack.c.b16 %v2440, %v2438
        %v2471 = vpack.c.b16 %v2441, %v2439
        %v2472 = vpack.c.b16 %v2444, %v2442
        %v2473 = vpack.c.b16 %v2445, %v2443
        %v2474 = vpack.c.b16 %v2448, %v2446
        %v2475 = vpack.c.b16 %v2449, %v2447
        %v2476 = vpack.c.b16 %v2452, %v2450
        %v2477 = vpack.c.b16 %v2453, %v2451
        %v2478 = vpack.c.b16 %v2456, %v2454
        %v2479 = vpack.c.b16 %v2457, %v2455
        %v2480 = vpack.c.b16 %v2460, %v2458
        %v2481 = vpack.c.b16 %v2461, %v2459
        %v2482 = vpack.c.b16 %v2464, %v2462
        %v2483 = vpack.c.b16 %v2465, %v2463
        %v2484 = vpack.c.b16 %v2468, %v2466
        %v2485 = vpack.c.b16 %v2469, %v2467
        %2502 = vmatprep.subr.bf16.mxu0 %v2471
        %2503 = vmatpush1.bf16.msra.mxu0 %v2470
        %2504 = vmatprep.subr.bf16.mxu0 %v2473
        %2505 = vmatpush1.bf16.msra.mxu0 %v2472
        %2506 = vmatprep.subr.bf16.mxu0 %v2475
        %2507 = vmatpush1.bf16.msra.mxu0 %v2474
        %2508 = vmatprep.subr.bf16.mxu0 %v2477
        %2509 = vmatpush1.bf16.msra.mxu0 %v2476
        %2510 = vmatprep.subr.bf16.mxu0 %v2479
        %2511 = vmatpush1.bf16.msra.mxu0 %v2478
        %2512 = vmatprep.subr.bf16.mxu0 %v2481
        %2513 = vmatpush1.bf16.msra.mxu0 %v2480
        %2514 = vmatprep.subr.bf16.mxu0 %v2483
        %2515 = vmatpush1.bf16.msra.mxu0 %v2482
        %2516 = vmatprep.subr.bf16.mxu0 %v2485
        %2517 = vmatpush1.bf16.msra.mxu0 %v2484
        %2518 = vmatprep.subr.bf16.mxu0 0
        %2519 = vmatpush1.bf16.msra.mxu0 0
        %2520 = vmatprep.subr.bf16.mxu0 0
        %2521 = vmatpush1.bf16.msra.mxu0 0
        %2522 = vmatprep.subr.bf16.mxu0 0
        %2523 = vmatpush1.bf16.msra.mxu0 0
        %2524 = vmatprep.subr.bf16.mxu0 0
        %2525 = vmatpush1.bf16.msra.mxu0 0
        %2526 = vmatprep.subr.bf16.mxu0 0
        %2527 = vmatpush1.bf16.msra.mxu0 0
        %2528 = vmatprep.subr.bf16.mxu0 0
        %2529 = vmatpush1.bf16.msra.mxu0 0
        %2530 = vmatprep.subr.bf16.mxu0 0
        %2531 = vmatpush1.bf16.msra.mxu0 0
        %2532 = vmatprep.subr.bf16.mxu0 0
        %2533 = vmatpush1.bf16.msra.mxu0 0
        %2534 = vmatprep.mubr.bf16.mxu0 0
        %2535 = vmatmul.mubr.bf16.gmra.mrb[0].mxu0 %v2389
        %v2536 = vpop.f32.mrb[0].mxu0
        %v2537 = vadd.f32 %v2417, %v2536
        %v2538 = vpop.f32.mrb[0].mxu0
        %v2539 = vadd.f32 %v2421, %v2538
        %v2540 = vpop.f32.mrb[0].mxu0
        %v2541 = vadd.f32 %v2417, %v2540
        %v2542 = vpop.f32.mrb[0].mxu0
        %v2543 = vadd.f32 %v2421, %v2542
        %2544 = vmatprep.mubr.bf16.mxu0 0
        %2545 = vmatmul.mubr.bf16.gmra.mrb[0].mxu0 %v2390
        %v2546 = vpop.f32.mrb[0].mxu0
        %v2547 = vadd.f32 %v2417, %v2546
        %v2548 = vpop.f32.mrb[0].mxu0
        %v2549 = vadd.f32 %v2421, %v2548
        %v2550 = vpop.f32.mrb[0].mxu0
        %v2551 = vadd.f32 %v2417, %v2550
        %v2552 = vpop.f32.mrb[0].mxu0
        %v2553 = vadd.f32 %v2421, %v2552
        %2554 = vmatprep.mubr.bf16.mxu0 0
        %2555 = vmatmul.mubr.bf16.gmra.mrb[0].mxu0 %v2391
        %v2556 = vpop.f32.mrb[0].mxu0
        %v2557 = vadd.f32 %v2417, %v2556
        %v2558 = vpop.f32.mrb[0].mxu0
        %v2559 = vadd.f32 %v2421, %v2558
        %v2560 = vpop.f32.mrb[0].mxu0
        %v2561 = vadd.f32 %v2417, %v2560
        %v2562 = vpop.f32.mrb[0].mxu0
        %v2563 = vadd.f32 %v2421, %v2562
        %2564 = vmatprep.mubr.bf16.mxu0 0
        %2565 = vmatmul.mubr.bf16.gmra.mrb[0].mxu0 %v2392
        %v2566 = vpop.f32.mrb[0].mxu0
        %v2567 = vadd.f32 %v2417, %v2566
        %v2568 = vpop.f32.mrb[0].mxu0
        %v2569 = vadd.f32 %v2421, %v2568
        %v2570 = vpop.f32.mrb[0].mxu0
        %v2571 = vadd.f32 %v2417, %v2570
        %v2572 = vpop.f32.mrb[0].mxu0
        %v2573 = vadd.f32 %v2421, %v2572
        %2574 = vmatprep.mubr.bf16.mxu0 0
        %2575 = vmatmul.mubr.bf16.gmra.mrb[0].mxu0 %v2393
        %v2576 = vpop.f32.mrb[0].mxu0
        %v2577 = vadd.f32 %v2417, %v2576
        %v2578 = vpop.f32.mrb[0].mxu0
        %v2579 = vadd.f32 %v2421, %v2578
        %v2580 = vpop.f32.mrb[0].mxu0
        %v2581 = vadd.f32 %v2417, %v2580
        %v2582 = vpop.f32.mrb[0].mxu0
        %v2583 = vadd.f32 %v2421, %v2582
        %2584 = vmatprep.mubr.bf16.mxu0 0
        %2585 = vmatmul.mubr.bf16.gmra.mrb[0].mxu0 %v2394
        %v2586 = vpop.f32.mrb[0].mxu0
        %v2587 = vadd.f32 %v2417, %v2586
        %v2588 = vpop.f32.mrb[0].mxu0
        %v2589 = vadd.f32 %v2421, %v2588
        %v2590 = vpop.f32.mrb[0].mxu0
        %v2591 = vadd.f32 %v2417, %v2590
        %v2592 = vpop.f32.mrb[0].mxu0
        %v2593 = vadd.f32 %v2421, %v2592
        %2594 = vmatprep.mubr.bf16.mxu0 0
        %2595 = vmatmul.mubr.bf16.gmra.mrb[0].mxu0 %v2395
        %v2596 = vpop.f32.mrb[0].mxu0
        %v2597 = vadd.f32 %v2417, %v2596
        %v2598 = vpop.f32.mrb[0].mxu0
        %v2599 = vadd.f32 %v2421, %v2598
        %v2600 = vpop.f32.mrb[0].mxu0
        %v2601 = vadd.f32 %v2417, %v2600
        %v2602 = vpop.f32.mrb[0].mxu0
        %v2603 = vadd.f32 %v2421, %v2602
        %2604 = vmatprep.mubr.bf16.mxu0 0
        %2605 = vmatmul.mubr.bf16.gmra.mrb[0].mxu0 %v2396
        %v2606 = vpop.f32.mrb[0].mxu0
        %v2607 = vadd.f32 %v2417, %v2606
        %v2608 = vpop.f32.mrb[0].mxu0
        %v2609 = vadd.f32 %v2421, %v2608
        %v2610 = vpop.f32.mrb[0].mxu0
        %v2611 = vadd.f32 %v2417, %v2610
        %v2612 = vpop.f32.mrb[0].mxu0
        %v2613 = vadd.f32 %v2421, %v2612
        %2614 = vmatprep.mubr.bf16.mxu0 0
        %2615 = vmatmul.mubr.bf16.gmra.mrb[0].mxu0 %v2397
        %v2616 = vpop.f32.mrb[0].mxu0
        %v2617 = vadd.f32 %v2417, %v2616
        %v2618 = vpop.f32.mrb[0].mxu0
        %v2619 = vadd.f32 %v2421, %v2618
        %v2620 = vpop.f32.mrb[0].mxu0
        %v2621 = vadd.f32 %v2417, %v2620
        %v2622 = vpop.f32.mrb[0].mxu0
        %v2623 = vadd.f32 %v2421, %v2622
        %2624 = vdwg.mxu0
        %v2625 = vmax.f32 %v2537, 0.0
        %v2626 = vmax.f32 %v2539, 0.0
        %v2627 = vmax.f32 %v2541, 0.0
        %v2628 = vmax.f32 %v2543, 0.0
        %v2629 = vmax.f32 %v2547, 0.0
        %v2630 = vmax.f32 %v2549, 0.0
        %v2631 = vmax.f32 %v2551, 0.0
        %v2632 = vmax.f32 %v2553, 0.0
        %v2633 = vmax.f32 %v2557, 0.0
        %v2634 = vmax.f32 %v2559, 0.0
        %v2635 = vmax.f32 %v2561, 0.0
        %v2636 = vmax.f32 %v2563, 0.0
        %v2637 = vmax.f32 %v2567, 0.0
        %v2638 = vmax.f32 %v2569, 0.0
        %v2639 = vmax.f32 %v2571, 0.0
        %v2640 = vmax.f32 %v2573, 0.0
        %v2641 = vmax.f32 %v2577, 0.0
        %v2642 = vmax.f32 %v2579, 0.0
        %v2643 = vmax.f32 %v2581, 0.0
        %v2644 = vmax.f32 %v2583, 0.0
        %v2645 = vmax.f32 %v2587, 0.0
        %v2646 = vmax.f32 %v2589, 0.0
        %v2647 = vmax.f32 %v2591, 0.0
        %v2648 = vmax.f32 %v2593, 0.0
        %v2649 = vmax.f32 %v2597, 0.0
        %v2650 = vmax.f32 %v2599, 0.0
        %v2651 = vmax.f32 %v2601, 0.0
        %v2652 = vmax.f32 %v2603, 0.0
        %v2653 = vmax.f32 %v2607, 0.0
        %v2654 = vmax.f32 %v2609, 0.0
        %v2655 = vmax.f32 %v2611, 0.0
        %v2656 = vmax.f32 %v2613, 0.0
        %v2657 = vmax.f32 %v2617, 0.0
        %v2658 = vmax.f32 %v2619, 0.0
        %v2659 = vmax.f32 %v2621, 0.0
        %v2660 = vmax.f32 %v2623, 0.0
        %v2661 = vpack.c.bf16 %v2627, %v2625
        %v2662 = vpack.c.bf16 %v2628, %v2626
        %v2663 = vpack.c.bf16 %v2631, %v2629
        %v2664 = vpack.c.bf16 %v2632, %v2630
        %v2665 = vpack.c.bf16 %v2635, %v2633
        %v2666 = vpack.c.bf16 %v2636, %v2634
        %v2667 = vpack.c.bf16 %v2639, %v2637
        %v2668 = vpack.c.bf16 %v2640, %v2638
        %v2669 = vpack.c.bf16 %v2643, %v2641
        %v2670 = vpack.c.bf16 %v2644, %v2642
        %v2671 = vpack.c.bf16 %v2647, %v2645
        %v2672 = vpack.c.bf16 %v2648, %v2646
        %v2673 = vpack.c.bf16 %v2651, %v2649
        %v2674 = vpack.c.bf16 %v2652, %v2650
        %v2675 = vpack.c.bf16 %v2655, %v2653
        %v2676 = vpack.c.bf16 %v2656, %v2654
        %v2677 = vpack.c.bf16 %v2659, %v2657
        %v2678 = vpack.c.bf16 %v2660, %v2658
        %v2679 = vld [vmem:[%s6] sm:$0xff]
        %v2680 = vld [vmem:[%s6 + $0x8] sm:$0xff]
        %v2681 = vld [vmem:[%s6 + $0x10] sm:$0xff]
        %v2682 = vld [vmem:[%s6 + $0x18] sm:$0xff]
        %v2683 = vld [vmem:[%s6 + $0x20] sm:$0xff]
        %v2684 = vld [vmem:[%s6 + $0x28] sm:$0xff]
        %v2685 = vld [vmem:[%s6 + $0x30] sm:$0xff]
        %v2686 = vld [vmem:[%s6 + $0x38] sm:$0xff]
        %v2687 = vld [vmem:[%s6 + $0x40] sm:$0xff]
        %v2688 = vld [vmem:[%s6 + $0x48] sm:$0xff]
        %v2689 = vld [vmem:[%s6 + $0x50] sm:$0xff]
        %v2690 = vld [vmem:[%s6 + $0x58] sm:$0xff]
        %v2691 = vld [vmem:[%s6 + $0x60] sm:$0xff]
        %v2692 = vld [vmem:[%s6 + $0x68] sm:$0xff]
        %v2693 = vld [vmem:[%s6 + $0x70] sm:$0xff]
        %v2694 = vld [vmem:[%s6 + $0x78] sm:$0xff]
        %v2695 = vld [vmem:[%s6 + $0x80] sm:$0xff]
        %v2696 = vld [vmem:[%s6 + $0x88] sm:$0xff]
        %v2697 = vld [vmem:[%s6 + $0x90] sm:$0xff]
        %v2698 = vld [vmem:[%s6 + $0x98] sm:$0xff]
        %v2699 = vld [vmem:[%s6 + $0xa0] sm:$0xff]
        %v2700 = vld [vmem:[%s6 + $0xa8] sm:$0xff]
        %v2701 = vld [vmem:[%s6 + $0xb0] sm:$0xff]
        %v2702 = vld [vmem:[%s6 + $0xb8] sm:$0xff]
        %v2703 = vld [vmem:[%s6 + $0xc0] sm:$0xff]
        %v2704 = vld [vmem:[%s6 + $0xc8] sm:$0xff]
        %v2705 = vld [vmem:[%s6 + $0xd0] sm:$0xff]
        %v2706 = vld [vmem:[%s6 + $0xd8] sm:$0xff]
        %v2707 = vld [vmem:[%s6 + $0xe0] sm:$0xff]
        %v2708 = vld [vmem:[%s6 + $0xe8] sm:$0xff]
        %v2709 = vld [vmem:[%s6 + $0xf0] sm:$0xff]
        %v2710 = vld [vmem:[%s6 + $0xf8] sm:$0xff]
        %v2711 = vlaneseq
        %v2712 = vshrl.u32 %v2711, 7
        %v2713 = vsub.s32 5, %v2712
        %v2714 = vrot.slane %v517, %v2713
        %v2715 = vlaneseq
        %v2716 = vshrl.u32 %v2715, 7
        %v2717 = vsub.s32 5, %v2716
        %v2718 = vrot.slane %v518, %v2717
        %v2751 = vunpack.c.l.b16 %v2679
        %v2752 = vunpack.c.h.b16 %v2679
        %v2753 = vunpack.c.l.b16 %v2680
        %v2754 = vunpack.c.h.b16 %v2680
        %v2755 = vunpack.c.l.b16 %v2681
        %v2756 = vunpack.c.h.b16 %v2681
        %v2757 = vunpack.c.l.b16 %v2682
        %v2758 = vunpack.c.h.b16 %v2682
        %v2759 = vunpack.c.l.b16 %v2683
        %v2760 = vunpack.c.h.b16 %v2683
        %v2761 = vunpack.c.l.b16 %v2684
        %v2762 = vunpack.c.h.b16 %v2684
        %v2763 = vunpack.c.l.b16 %v2685
        %v2764 = vunpack.c.h.b16 %v2685
        %v2765 = vunpack.c.l.b16 %v2686
        %v2766 = vunpack.c.h.b16 %v2686
        %v2767 = vunpack.c.l.b16 %v2687
        %v2768 = vunpack.c.h.b16 %v2687
        %v2769 = vunpack.c.l.b16 %v2688
        %v2770 = vunpack.c.h.b16 %v2688
        %v2771 = vunpack.c.l.b16 %v2689
        %v2772 = vunpack.c.h.b16 %v2689
        %v2773 = vunpack.c.l.b16 %v2690
        %v2774 = vunpack.c.h.b16 %v2690
        %v2775 = vunpack.c.l.b16 %v2691
        %v2776 = vunpack.c.h.b16 %v2691
        %v2777 = vunpack.c.l.b16 %v2692
        %v2778 = vunpack.c.h.b16 %v2692
        %v2779 = vunpack.c.l.b16 %v2693
        %v2780 = vunpack.c.h.b16 %v2693
        %v2781 = vunpack.c.l.b16 %v2694
        %v2782 = vunpack.c.h.b16 %v2694
        %v2783 = vunpack.c.l.b16 %v2695
        %v2784 = vunpack.c.h.b16 %v2695
        %v2785 = vunpack.c.l.b16 %v2696
        %v2786 = vunpack.c.h.b16 %v2696
        %v2787 = vunpack.c.l.b16 %v2697
        %v2788 = vunpack.c.h.b16 %v2697
        %v2789 = vunpack.c.l.b16 %v2698
        %v2790 = vunpack.c.h.b16 %v2698
        %v2791 = vunpack.c.l.b16 %v2699
        %v2792 = vunpack.c.h.b16 %v2699
        %v2793 = vunpack.c.l.b16 %v2700
        %v2794 = vunpack.c.h.b16 %v2700
        %v2795 = vunpack.c.l.b16 %v2701
        %v2796 = vunpack.c.h.b16 %v2701
        %v2797 = vunpack.c.l.b16 %v2702
        %v2798 = vunpack.c.h.b16 %v2702
        %v2799 = vunpack.c.l.b16 %v2703
        %v2800 = vunpack.c.h.b16 %v2703
        %v2801 = vunpack.c.l.b16 %v2704
        %v2802 = vunpack.c.h.b16 %v2704
        %v2803 = vunpack.c.l.b16 %v2705
        %v2804 = vunpack.c.h.b16 %v2705
        %v2805 = vunpack.c.l.b16 %v2706
        %v2806 = vunpack.c.h.b16 %v2706
        %v2807 = vunpack.c.l.b16 %v2707
        %v2808 = vunpack.c.h.b16 %v2707
        %v2809 = vunpack.c.l.b16 %v2708
        %v2810 = vunpack.c.h.b16 %v2708
        %v2811 = vunpack.c.l.b16 %v2709
        %v2812 = vunpack.c.h.b16 %v2709
        %v2813 = vunpack.c.l.b16 %v2710
        %v2814 = vunpack.c.h.b16 %v2710
        %v2815 = vpack.c.b16 %v2753, %v2751
        %v2816 = vpack.c.b16 %v2754, %v2752
        %v2817 = vpack.c.b16 %v2757, %v2755
        %v2818 = vpack.c.b16 %v2758, %v2756
        %v2819 = vpack.c.b16 %v2761, %v2759
        %v2820 = vpack.c.b16 %v2762, %v2760
        %v2821 = vpack.c.b16 %v2765, %v2763
        %v2822 = vpack.c.b16 %v2766, %v2764
        %v2823 = vpack.c.b16 %v2769, %v2767
        %v2824 = vpack.c.b16 %v2770, %v2768
        %v2825 = vpack.c.b16 %v2773, %v2771
        %v2826 = vpack.c.b16 %v2774, %v2772
        %v2827 = vpack.c.b16 %v2777, %v2775
        %v2828 = vpack.c.b16 %v2778, %v2776
        %v2829 = vpack.c.b16 %v2781, %v2779
        %v2830 = vpack.c.b16 %v2782, %v2780
        %v2831 = vpack.c.b16 %v2785, %v2783
        %v2832 = vpack.c.b16 %v2786, %v2784
        %v2833 = vpack.c.b16 %v2789, %v2787
        %v2834 = vpack.c.b16 %v2790, %v2788
        %v2835 = vpack.c.b16 %v2793, %v2791
        %v2836 = vpack.c.b16 %v2794, %v2792
        %v2837 = vpack.c.b16 %v2797, %v2795
        %v2838 = vpack.c.b16 %v2798, %v2796
        %v2839 = vpack.c.b16 %v2801, %v2799
        %v2840 = vpack.c.b16 %v2802, %v2800
        %v2841 = vpack.c.b16 %v2805, %v2803
        %v2842 = vpack.c.b16 %v2806, %v2804
        %v2843 = vpack.c.b16 %v2809, %v2807
        %v2844 = vpack.c.b16 %v2810, %v2808
        %v2845 = vpack.c.b16 %v2813, %v2811
        %v2846 = vpack.c.b16 %v2814, %v2812
        %2879 = vmatprep.subr.bf16.mxu0 %v2816
        %2880 = vmatpush1.bf16.msra.mxu0 %v2815
        %2881 = vmatprep.subr.bf16.mxu0 %v2818
        %2882 = vmatpush1.bf16.msra.mxu0 %v2817
        %2883 = vmatprep.subr.bf16.mxu0 %v2820
        %2884 = vmatpush1.bf16.msra.mxu0 %v2819
        %2885 = vmatprep.subr.bf16.mxu0 %v2822
        %2886 = vmatpush1.bf16.msra.mxu0 %v2821
        %2887 = vmatprep.subr.bf16.mxu0 %v2824
        %2888 = vmatpush1.bf16.msra.mxu0 %v2823
        %2889 = vmatprep.subr.bf16.mxu0 %v2826
        %2890 = vmatpush1.bf16.msra.mxu0 %v2825
        %2891 = vmatprep.subr.bf16.mxu0 %v2828
        %2892 = vmatpush1.bf16.msra.mxu0 %v2827
        %2893 = vmatprep.subr.bf16.mxu0 %v2830
        %2894 = vmatpush1.bf16.msra.mxu0 %v2829
        %2895 = vmatprep.subr.bf16.mxu0 %v2832
        %2896 = vmatpush1.bf16.msra.mxu0 %v2831
        %2897 = vmatprep.subr.bf16.mxu0 %v2834
        %2898 = vmatpush1.bf16.msra.mxu0 %v2833
        %2899 = vmatprep.subr.bf16.mxu0 %v2836
        %2900 = vmatpush1.bf16.msra.mxu0 %v2835
        %2901 = vmatprep.subr.bf16.mxu0 %v2838
        %2902 = vmatpush1.bf16.msra.mxu0 %v2837
        %2903 = vmatprep.subr.bf16.mxu0 %v2840
        %2904 = vmatpush1.bf16.msra.mxu0 %v2839
        %2905 = vmatprep.subr.bf16.mxu0 %v2842
        %2906 = vmatpush1.bf16.msra.mxu0 %v2841
        %2907 = vmatprep.subr.bf16.mxu0 %v2844
        %2908 = vmatpush1.bf16.msra.mxu0 %v2843
        %2909 = vmatprep.subr.bf16.mxu0 %v2846
        %2910 = vmatpush1.bf16.msra.mxu0 %v2845
        %2911 = vmatprep.mubr.bf16.mxu0 %v2662
        %2912 = vmatmul.mubr.bf16.gmra.mrb[0].mxu0 %v2661
        %v2913 = vpop.f32.mrb[0].mxu0
        %v2914 = vadd.f32 %v2714, %v2913
        %v2915 = vpop.f32.mrb[0].mxu0
        %v2916 = vadd.f32 %v2718, %v2915
        %v2917 = vpop.f32.mrb[0].mxu0
        %v2918 = vadd.f32 %v2714, %v2917
        %v2919 = vpop.f32.mrb[0].mxu0
        %v2920 = vadd.f32 %v2718, %v2919
        %2921 = vmatprep.mubr.bf16.mxu0 %v2664
        %2922 = vmatmul.mubr.bf16.gmra.mrb[0].mxu0 %v2663
        %v2923 = vpop.f32.mrb[0].mxu0
        %v2924 = vadd.f32 %v2714, %v2923
        %v2925 = vpop.f32.mrb[0].mxu0
        %v2926 = vadd.f32 %v2718, %v2925
        %v2927 = vpop.f32.mrb[0].mxu0
        %v2928 = vadd.f32 %v2714, %v2927
        %v2929 = vpop.f32.mrb[0].mxu0
        %v2930 = vadd.f32 %v2718, %v2929
        %2931 = vmatprep.mubr.bf16.mxu0 %v2666
        %2932 = vmatmul.mubr.bf16.gmra.mrb[0].mxu0 %v2665
        %v2933 = vpop.f32.mrb[0].mxu0
        %v2934 = vadd.f32 %v2714, %v2933
        %v2935 = vpop.f32.mrb[0].mxu0
        %v2936 = vadd.f32 %v2718, %v2935
        %v2937 = vpop.f32.mrb[0].mxu0
        %v2938 = vadd.f32 %v2714, %v2937
        %v2939 = vpop.f32.mrb[0].mxu0
        %v2940 = vadd.f32 %v2718, %v2939
        %2941 = vmatprep.mubr.bf16.mxu0 %v2668
        %2942 = vmatmul.mubr.bf16.gmra.mrb[0].mxu0 %v2667
        %v2943 = vpop.f32.mrb[0].mxu0
        %v2944 = vadd.f32 %v2714, %v2943
        %v2945 = vpop.f32.mrb[0].mxu0
        %v2946 = vadd.f32 %v2718, %v2945
        %v2947 = vpop.f32.mrb[0].mxu0
        %v2948 = vadd.f32 %v2714, %v2947
        %v2949 = vpop.f32.mrb[0].mxu0
        %v2950 = vadd.f32 %v2718, %v2949
        %2951 = vmatprep.mubr.bf16.mxu0 %v2670
        %2952 = vmatmul.mubr.bf16.gmra.mrb[0].mxu0 %v2669
        %v2953 = vpop.f32.mrb[0].mxu0
        %v2954 = vadd.f32 %v2714, %v2953
        %v2955 = vpop.f32.mrb[0].mxu0
        %v2956 = vadd.f32 %v2718, %v2955
        %v2957 = vpop.f32.mrb[0].mxu0
        %v2958 = vadd.f32 %v2714, %v2957
        %v2959 = vpop.f32.mrb[0].mxu0
        %v2960 = vadd.f32 %v2718, %v2959
        %2961 = vmatprep.mubr.bf16.mxu0 %v2672
        %2962 = vmatmul.mubr.bf16.gmra.mrb[0].mxu0 %v2671
        %v2963 = vpop.f32.mrb[0].mxu0
        %v2964 = vadd.f32 %v2714, %v2963
        %v2965 = vpop.f32.mrb[0].mxu0
        %v2966 = vadd.f32 %v2718, %v2965
        %v2967 = vpop.f32.mrb[0].mxu0
        %v2968 = vadd.f32 %v2714, %v2967
        %v2969 = vpop.f32.mrb[0].mxu0
        %v2970 = vadd.f32 %v2718, %v2969
        %2971 = vmatprep.mubr.bf16.mxu0 %v2674
        %2972 = vmatmul.mubr.bf16.gmra.mrb[0].mxu0 %v2673
        %v2973 = vpop.f32.mrb[0].mxu0
        %v2974 = vadd.f32 %v2714, %v2973
        %v2975 = vpop.f32.mrb[0].mxu0
        %v2976 = vadd.f32 %v2718, %v2975
        %v2977 = vpop.f32.mrb[0].mxu0
        %v2978 = vadd.f32 %v2714, %v2977
        %v2979 = vpop.f32.mrb[0].mxu0
        %v2980 = vadd.f32 %v2718, %v2979
        %2981 = vmatprep.mubr.bf16.mxu0 %v2676
        %2982 = vmatmul.mubr.bf16.gmra.mrb[0].mxu0 %v2675
        %v2983 = vpop.f32.mrb[0].mxu0
        %v2984 = vadd.f32 %v2714, %v2983
        %v2985 = vpop.f32.mrb[0].mxu0
        %v2986 = vadd.f32 %v2718, %v2985
        %v2987 = vpop.f32.mrb[0].mxu0
        %v2988 = vadd.f32 %v2714, %v2987
        %v2989 = vpop.f32.mrb[0].mxu0
        %v2990 = vadd.f32 %v2718, %v2989
        %2991 = vmatprep.mubr.bf16.mxu0 %v2678
        %2992 = vmatmul.mubr.bf16.gmra.mrb[0].mxu0 %v2677
        %v2993 = vpop.f32.mrb[0].mxu0
        %v2994 = vadd.f32 %v2714, %v2993
        %v2995 = vpop.f32.mrb[0].mxu0
        %v2996 = vadd.f32 %v2718, %v2995
        %v2997 = vpop.f32.mrb[0].mxu0
        %v2998 = vadd.f32 %v2714, %v2997
        %v2999 = vpop.f32.mrb[0].mxu0
        %v3000 = vadd.f32 %v2718, %v2999
        %3001 = vdwg.mxu0
        %v3002 = vmax.f32 %v2914, 0.0
        %v3003 = vmax.f32 %v2916, 0.0
        %v3004 = vmax.f32 %v2918, 0.0
        %v3005 = vmax.f32 %v2920, 0.0
        %v3006 = vmax.f32 %v2924, 0.0
        %v3007 = vmax.f32 %v2926, 0.0
        %v3008 = vmax.f32 %v2928, 0.0
        %v3009 = vmax.f32 %v2930, 0.0
        %v3010 = vmax.f32 %v2934, 0.0
        %v3011 = vmax.f32 %v2936, 0.0
        %v3012 = vmax.f32 %v2938, 0.0
        %v3013 = vmax.f32 %v2940, 0.0
        %v3014 = vmax.f32 %v2944, 0.0
        %v3015 = vmax.f32 %v2946, 0.0
        %v3016 = vmax.f32 %v2948, 0.0
        %v3017 = vmax.f32 %v2950, 0.0
        %v3018 = vmax.f32 %v2954, 0.0
        %v3019 = vmax.f32 %v2956, 0.0
        %v3020 = vmax.f32 %v2958, 0.0
        %v3021 = vmax.f32 %v2960, 0.0
        %v3022 = vmax.f32 %v2964, 0.0
        %v3023 = vmax.f32 %v2966, 0.0
        %v3024 = vmax.f32 %v2968, 0.0
        %v3025 = vmax.f32 %v2970, 0.0
        %v3026 = vmax.f32 %v2974, 0.0
        %v3027 = vmax.f32 %v2976, 0.0
        %v3028 = vmax.f32 %v2978, 0.0
        %v3029 = vmax.f32 %v2980, 0.0
        %v3030 = vmax.f32 %v2984, 0.0
        %v3031 = vmax.f32 %v2986, 0.0
        %v3032 = vmax.f32 %v2988, 0.0
        %v3033 = vmax.f32 %v2990, 0.0
        %v3034 = vmax.f32 %v2994, 0.0
        %v3035 = vmax.f32 %v2996, 0.0
        %v3036 = vmax.f32 %v2998, 0.0
        %v3037 = vmax.f32 %v3000, 0.0
        %v3038 = vpack.c.bf16 %v3002, 0.0
        %v3039 = vpack.c.bf16 %v3003, 0.0
        %v3040 = vpack.c.bf16 %v3006, %v3004
        %v3041 = vpack.c.bf16 %v3007, %v3005
        %v3042 = vpack.c.bf16 %v3010, %v3008
        %v3043 = vpack.c.bf16 %v3011, %v3009
        %v3044 = vpack.c.bf16 %v3014, %v3012
        %v3045 = vpack.c.bf16 %v3015, %v3013
        %v3046 = vpack.c.bf16 %v3018, %v3016
        %v3047 = vpack.c.bf16 %v3019, %v3017
        %v3048 = vpack.c.bf16 %v3022, %v3020
        %v3049 = vpack.c.bf16 %v3023, %v3021
        %v3050 = vpack.c.bf16 %v3026, %v3024
        %v3051 = vpack.c.bf16 %v3027, %v3025
        %v3052 = vpack.c.bf16 %v3030, %v3028
        %v3053 = vpack.c.bf16 %v3031, %v3029
        %v3054 = vpack.c.bf16 %v3034, %v3032
        %v3055 = vpack.c.bf16 %v3035, %v3033
        %v3056 = vld [vmem:[#allocation9] sm:$0xff]
        %v3057 = vld [vmem:[#allocation9 + $0x8] sm:$0xff]
        %v3058 = vld [vmem:[#allocation9 + $0x10] sm:$0xff]
        %v3059 = vld [vmem:[#allocation9 + $0x18] sm:$0xff]
        %v3060 = vld [vmem:[#allocation9 + $0x20] sm:$0xff]
        %v3061 = vld [vmem:[#allocation9 + $0x28] sm:$0xff]
        %v3062 = vld [vmem:[#allocation9 + $0x30] sm:$0xff]
        %v3063 = vld [vmem:[#allocation9 + $0x38] sm:$0xff]
        %v3064 = vld [vmem:[#allocation9 + $0x40] sm:$0xff]
        %v3065 = vld [vmem:[#allocation9 + $0x48] sm:$0xff]
        %v3066 = vld [vmem:[#allocation9 + $0x50] sm:$0xff]
        %v3067 = vld [vmem:[#allocation9 + $0x58] sm:$0xff]
        %v3068 = vld [vmem:[#allocation9 + $0x60] sm:$0xff]
        %v3069 = vld [vmem:[#allocation9 + $0x68] sm:$0xff]
        %v3070 = vld [vmem:[#allocation9 + $0x70] sm:$0xff]
        %v3071 = vld [vmem:[#allocation9 + $0x78] sm:$0xff]
        %v3072 = vld [vmem:[#allocation9 + $0x80] sm:$0xff]
        %v3073 = vld [vmem:[#allocation9 + $0x88] sm:$0xff]
        %v3074 = vld [vmem:[#allocation9 + $0x90] sm:$0xff]
        %v3075 = vld [vmem:[#allocation9 + $0x98] sm:$0xff]
        %v3076 = vld [vmem:[#allocation9 + $0xa0] sm:$0xff]
        %v3077 = vld [vmem:[#allocation9 + $0xa8] sm:$0xff]
        %v3078 = vld [vmem:[#allocation9 + $0xb0] sm:$0xff]
        %v3079 = vld [vmem:[#allocation9 + $0xb8] sm:$0xff]
        %v3080 = vld [vmem:[#allocation9 + $0xc0] sm:$0xff]
        %v3081 = vld [vmem:[#allocation9 + $0xc8] sm:$0xff]
        %v3082 = vld [vmem:[#allocation9 + $0xd0] sm:$0xff]
        %v3083 = vld [vmem:[#allocation9 + $0xd8] sm:$0xff]
        %v3084 = vld [vmem:[#allocation9 + $0xe0] sm:$0xff]
        %v3085 = vld [vmem:[#allocation9 + $0xe8] sm:$0xff]
        %v3086 = vld [vmem:[#allocation9 + $0xf0] sm:$0xff]
        %v3087 = vld [vmem:[#allocation9 + $0xf8] sm:$0xff]
        %v3088 = vpack.c.bf16 %v3004, %v3002
        %v3089 = vpack.c.bf16 %v3005, %v3003
        %v3090 = vpack.c.bf16 %v3008, %v3006
        %v3091 = vpack.c.bf16 %v3009, %v3007
        %v3092 = vpack.c.bf16 %v3012, %v3010
        %v3093 = vpack.c.bf16 %v3013, %v3011
        %v3094 = vpack.c.bf16 %v3016, %v3014
        %v3095 = vpack.c.bf16 %v3017, %v3015
        %v3096 = vpack.c.bf16 %v3020, %v3018
        %v3097 = vpack.c.bf16 %v3021, %v3019
        %v3098 = vpack.c.bf16 %v3024, %v3022
        %v3099 = vpack.c.bf16 %v3025, %v3023
        %v3100 = vpack.c.bf16 %v3028, %v3026
        %v3101 = vpack.c.bf16 %v3029, %v3027
        %v3102 = vpack.c.bf16 %v3032, %v3030
        %v3103 = vpack.c.bf16 %v3033, %v3031
        %v3104 = vpack.c.bf16 %v3036, %v3034
        %v3105 = vpack.c.bf16 %v3037, %v3035
        %s3106 = scalar_lea.vmem [#allocation9], 256
        %v3107 = vld [vmem:[%s3106] sm:$0xff]
        %v3108 = vld [vmem:[%s3106 + $0x8] sm:$0xff]
        %v3109 = vld [vmem:[%s3106 + $0x10] sm:$0xff]
        %v3110 = vld [vmem:[%s3106 + $0x18] sm:$0xff]
        %v3111 = vld [vmem:[%s3106 + $0x20] sm:$0xff]
        %v3112 = vld [vmem:[%s3106 + $0x28] sm:$0xff]
        %v3113 = vld [vmem:[%s3106 + $0x30] sm:$0xff]
        %v3114 = vld [vmem:[%s3106 + $0x38] sm:$0xff]
        %v3115 = vld [vmem:[%s3106 + $0x40] sm:$0xff]
        %v3116 = vld [vmem:[%s3106 + $0x48] sm:$0xff]
        %v3117 = vld [vmem:[%s3106 + $0x50] sm:$0xff]
        %v3118 = vld [vmem:[%s3106 + $0x58] sm:$0xff]
        %v3119 = vld [vmem:[%s3106 + $0x60] sm:$0xff]
        %v3120 = vld [vmem:[%s3106 + $0x68] sm:$0xff]
        %v3121 = vld [vmem:[%s3106 + $0x70] sm:$0xff]
        %v3122 = vld [vmem:[%s3106 + $0x78] sm:$0xff]
        %v3123 = vld [vmem:[%s3106 + $0x80] sm:$0xff]
        %v3124 = vld [vmem:[%s3106 + $0x88] sm:$0xff]
        %v3125 = vld [vmem:[%s3106 + $0x90] sm:$0xff]
        %v3126 = vld [vmem:[%s3106 + $0x98] sm:$0xff]
        %v3127 = vld [vmem:[%s3106 + $0xa0] sm:$0xff]
        %v3128 = vld [vmem:[%s3106 + $0xa8] sm:$0xff]
        %v3129 = vld [vmem:[%s3106 + $0xb0] sm:$0xff]
        %v3130 = vld [vmem:[%s3106 + $0xb8] sm:$0xff]
        %v3131 = vld [vmem:[%s3106 + $0xc0] sm:$0xff]
        %v3132 = vld [vmem:[%s3106 + $0xc8] sm:$0xff]
        %v3133 = vld [vmem:[%s3106 + $0xd0] sm:$0xff]
        %v3134 = vld [vmem:[%s3106 + $0xd8] sm:$0xff]
        %v3135 = vld [vmem:[%s3106 + $0xe0] sm:$0xff]
        %v3136 = vld [vmem:[%s3106 + $0xe8] sm:$0xff]
        %v3137 = vld [vmem:[%s3106 + $0xf0] sm:$0xff]
        %v3138 = vld [vmem:[%s3106 + $0xf8] sm:$0xff]
        %v3171 = vunpack.c.l.b16 %v3107
        %v3172 = vunpack.c.h.b16 %v3107
        %v3173 = vunpack.c.l.b16 %v3108
        %v3174 = vunpack.c.h.b16 %v3108
        %v3175 = vunpack.c.l.b16 %v3109
        %v3176 = vunpack.c.h.b16 %v3109
        %v3177 = vunpack.c.l.b16 %v3110
        %v3178 = vunpack.c.h.b16 %v3110
        %v3179 = vunpack.c.l.b16 %v3111
        %v3180 = vunpack.c.h.b16 %v3111
        %v3181 = vunpack.c.l.b16 %v3112
        %v3182 = vunpack.c.h.b16 %v3112
        %v3183 = vunpack.c.l.b16 %v3113
        %v3184 = vunpack.c.h.b16 %v3113
        %v3185 = vunpack.c.l.b16 %v3114
        %v3186 = vunpack.c.h.b16 %v3114
        %v3187 = vunpack.c.l.b16 %v3115
        %v3188 = vunpack.c.h.b16 %v3115
        %v3189 = vunpack.c.l.b16 %v3116
        %v3190 = vunpack.c.h.b16 %v3116
        %v3191 = vunpack.c.l.b16 %v3117
        %v3192 = vunpack.c.h.b16 %v3117
        %v3193 = vunpack.c.l.b16 %v3118
        %v3194 = vunpack.c.h.b16 %v3118
        %v3195 = vunpack.c.l.b16 %v3119
        %v3196 = vunpack.c.h.b16 %v3119
        %v3197 = vunpack.c.l.b16 %v3120
        %v3198 = vunpack.c.h.b16 %v3120
        %v3199 = vunpack.c.l.b16 %v3121
        %v3200 = vunpack.c.h.b16 %v3121
        %v3201 = vunpack.c.l.b16 %v3122
        %v3202 = vunpack.c.h.b16 %v3122
        %v3203 = vunpack.c.l.b16 %v3123
        %v3204 = vunpack.c.h.b16 %v3123
        %v3205 = vunpack.c.l.b16 %v3124
        %v3206 = vunpack.c.h.b16 %v3124
        %v3207 = vunpack.c.l.b16 %v3125
        %v3208 = vunpack.c.h.b16 %v3125
        %v3209 = vunpack.c.l.b16 %v3126
        %v3210 = vunpack.c.h.b16 %v3126
        %v3211 = vunpack.c.l.b16 %v3127
        %v3212 = vunpack.c.h.b16 %v3127
        %v3213 = vunpack.c.l.b16 %v3128
        %v3214 = vunpack.c.h.b16 %v3128
        %v3215 = vunpack.c.l.b16 %v3129
        %v3216 = vunpack.c.h.b16 %v3129
        %v3217 = vunpack.c.l.b16 %v3130
        %v3218 = vunpack.c.h.b16 %v3130
        %v3219 = vunpack.c.l.b16 %v3131
        %v3220 = vunpack.c.h.b16 %v3131
        %v3221 = vunpack.c.l.b16 %v3132
        %v3222 = vunpack.c.h.b16 %v3132
        %v3223 = vunpack.c.l.b16 %v3133
        %v3224 = vunpack.c.h.b16 %v3133
        %v3225 = vunpack.c.l.b16 %v3134
        %v3226 = vunpack.c.h.b16 %v3134
        %v3227 = vunpack.c.l.b16 %v3135
        %v3228 = vunpack.c.h.b16 %v3135
        %v3229 = vunpack.c.l.b16 %v3136
        %v3230 = vunpack.c.h.b16 %v3136
        %v3231 = vunpack.c.l.b16 %v3137
        %v3232 = vunpack.c.h.b16 %v3137
        %v3233 = vunpack.c.l.b16 %v3138
        %v3234 = vunpack.c.h.b16 %v3138
        %v3235 = vpack.c.b16 %v3173, %v3171
        %v3236 = vpack.c.b16 %v3174, %v3172
        %v3237 = vpack.c.b16 %v3177, %v3175
        %v3238 = vpack.c.b16 %v3178, %v3176
        %v3239 = vpack.c.b16 %v3181, %v3179
        %v3240 = vpack.c.b16 %v3182, %v3180
        %v3241 = vpack.c.b16 %v3185, %v3183
        %v3242 = vpack.c.b16 %v3186, %v3184
        %v3243 = vpack.c.b16 %v3189, %v3187
        %v3244 = vpack.c.b16 %v3190, %v3188
        %v3245 = vpack.c.b16 %v3193, %v3191
        %v3246 = vpack.c.b16 %v3194, %v3192
        %v3247 = vpack.c.b16 %v3197, %v3195
        %v3248 = vpack.c.b16 %v3198, %v3196
        %v3249 = vpack.c.b16 %v3201, %v3199
        %v3250 = vpack.c.b16 %v3202, %v3200
        %v3251 = vpack.c.b16 %v3205, %v3203
        %v3252 = vpack.c.b16 %v3206, %v3204
        %v3253 = vpack.c.b16 %v3209, %v3207
        %v3254 = vpack.c.b16 %v3210, %v3208
        %v3255 = vpack.c.b16 %v3213, %v3211
        %v3256 = vpack.c.b16 %v3214, %v3212
        %v3257 = vpack.c.b16 %v3217, %v3215
        %v3258 = vpack.c.b16 %v3218, %v3216
        %v3259 = vpack.c.b16 %v3221, %v3219
        %v3260 = vpack.c.b16 %v3222, %v3220
        %v3261 = vpack.c.b16 %v3225, %v3223
        %v3262 = vpack.c.b16 %v3226, %v3224
        %v3263 = vpack.c.b16 %v3229, %v3227
        %v3264 = vpack.c.b16 %v3230, %v3228
        %v3265 = vpack.c.b16 %v3233, %v3231
        %v3266 = vpack.c.b16 %v3234, %v3232
        %3299 = vmatprep.subr.bf16.mxu0 %v3236
        %3300 = vmatpush1.bf16.msra.mxu0 %v3235
        %3301 = vmatprep.subr.bf16.mxu0 %v3238
        %3302 = vmatpush1.bf16.msra.mxu0 %v3237
        %3303 = vmatprep.subr.bf16.mxu0 %v3240
        %3304 = vmatpush1.bf16.msra.mxu0 %v3239
        %3305 = vmatprep.subr.bf16.mxu0 %v3242
        %3306 = vmatpush1.bf16.msra.mxu0 %v3241
        %3307 = vmatprep.subr.bf16.mxu0 %v3244
        %3308 = vmatpush1.bf16.msra.mxu0 %v3243
        %3309 = vmatprep.subr.bf16.mxu0 %v3246
        %3310 = vmatpush1.bf16.msra.mxu0 %v3245
        %3311 = vmatprep.subr.bf16.mxu0 %v3248
        %3312 = vmatpush1.bf16.msra.mxu0 %v3247
        %3313 = vmatprep.subr.bf16.mxu0 %v3250
        %3314 = vmatpush1.bf16.msra.mxu0 %v3249
        %3315 = vmatprep.subr.bf16.mxu0 %v3252
        %3316 = vmatpush1.bf16.msra.mxu0 %v3251
        %3317 = vmatprep.subr.bf16.mxu0 %v3254
        %3318 = vmatpush1.bf16.msra.mxu0 %v3253
        %3319 = vmatprep.subr.bf16.mxu0 %v3256
        %3320 = vmatpush1.bf16.msra.mxu0 %v3255
        %3321 = vmatprep.subr.bf16.mxu0 %v3258
        %3322 = vmatpush1.bf16.msra.mxu0 %v3257
        %3323 = vmatprep.subr.bf16.mxu0 %v3260
        %3324 = vmatpush1.bf16.msra.mxu0 %v3259
        %3325 = vmatprep.subr.bf16.mxu0 %v3262
        %3326 = vmatpush1.bf16.msra.mxu0 %v3261
        %3327 = vmatprep.subr.bf16.mxu0 %v3264
        %3328 = vmatpush1.bf16.msra.mxu0 %v3263
        %3329 = vmatprep.subr.bf16.mxu0 %v3266
        %3330 = vmatpush1.bf16.msra.mxu0 %v3265
        %3331 = vmatprep.mubr.bf16.mxu0 %v3089
        %3332 = vmatmul.mubr.bf16.gmra.mrb[0].mxu0 %v3088
        %v3333 = vpop.f32.mrb[0].mxu0
        %v3334 = vadd.f32 0.0, %v3333
        %v3335 = vpop.f32.mrb[0].mxu0
        %v3336 = vadd.f32 0.0, %v3335
        %v3337 = vpop.f32.mrb[0].mxu0
        %v3338 = vadd.f32 0.0, %v3337
        %v3339 = vpop.f32.mrb[0].mxu0
        %v3340 = vadd.f32 0.0, %v3339
        %3341 = vmatprep.mubr.bf16.mxu0 %v3091
        %3342 = vmatmul.mubr.bf16.gmra.mrb[0].mxu0 %v3090
        %v3343 = vpop.f32.mrb[0].mxu0
        %v3344 = vadd.f32 0.0, %v3343
        %v3345 = vpop.f32.mrb[0].mxu0
        %v3346 = vadd.f32 0.0, %v3345
        %v3347 = vpop.f32.mrb[0].mxu0
        %v3348 = vadd.f32 0.0, %v3347
        %v3349 = vpop.f32.mrb[0].mxu0
        %v3350 = vadd.f32 0.0, %v3349
        %3351 = vmatprep.mubr.bf16.mxu0 %v3093
        %3352 = vmatmul.mubr.bf16.gmra.mrb[0].mxu0 %v3092
        %v3353 = vpop.f32.mrb[0].mxu0
        %v3354 = vadd.f32 0.0, %v3353
        %v3355 = vpop.f32.mrb[0].mxu0
        %v3356 = vadd.f32 0.0, %v3355
        %v3357 = vpop.f32.mrb[0].mxu0
        %v3358 = vadd.f32 0.0, %v3357
        %v3359 = vpop.f32.mrb[0].mxu0
        %v3360 = vadd.f32 0.0, %v3359
        %3361 = vmatprep.mubr.bf16.mxu0 %v3095
        %3362 = vmatmul.mubr.bf16.gmra.mrb[0].mxu0 %v3094
        %v3363 = vpop.f32.mrb[0].mxu0
        %v3364 = vadd.f32 0.0, %v3363
        %v3365 = vpop.f32.mrb[0].mxu0
        %v3366 = vadd.f32 0.0, %v3365
        %v3367 = vpop.f32.mrb[0].mxu0
        %v3368 = vadd.f32 0.0, %v3367
        %v3369 = vpop.f32.mrb[0].mxu0
        %v3370 = vadd.f32 0.0, %v3369
        %3371 = vmatprep.mubr.bf16.mxu0 %v3097
        %3372 = vmatmul.mubr.bf16.gmra.mrb[0].mxu0 %v3096
        %v3373 = vpop.f32.mrb[0].mxu0
        %v3374 = vadd.f32 0.0, %v3373
        %v3375 = vpop.f32.mrb[0].mxu0
        %v3376 = vadd.f32 0.0, %v3375
        %v3377 = vpop.f32.mrb[0].mxu0
        %v3378 = vadd.f32 0.0, %v3377
        %v3379 = vpop.f32.mrb[0].mxu0
        %v3380 = vadd.f32 0.0, %v3379
        %3381 = vmatprep.mubr.bf16.mxu0 %v3099
        %3382 = vmatmul.mubr.bf16.gmra.mrb[0].mxu0 %v3098
        %v3383 = vpop.f32.mrb[0].mxu0
        %v3384 = vadd.f32 0.0, %v3383
        %v3385 = vpop.f32.mrb[0].mxu0
        %v3386 = vadd.f32 0.0, %v3385
        %v3387 = vpop.f32.mrb[0].mxu0
        %v3388 = vadd.f32 0.0, %v3387
        %v3389 = vpop.f32.mrb[0].mxu0
        %v3390 = vadd.f32 0.0, %v3389
        %3391 = vmatprep.mubr.bf16.mxu0 %v3101
        %3392 = vmatmul.mubr.bf16.gmra.mrb[0].mxu0 %v3100
        %v3393 = vpop.f32.mrb[0].mxu0
        %v3394 = vadd.f32 0.0, %v3393
        %v3395 = vpop.f32.mrb[0].mxu0
        %v3396 = vadd.f32 0.0, %v3395
        %v3397 = vpop.f32.mrb[0].mxu0
        %v3398 = vadd.f32 0.0, %v3397
        %v3399 = vpop.f32.mrb[0].mxu0
        %v3400 = vadd.f32 0.0, %v3399
        %3401 = vmatprep.mubr.bf16.mxu0 %v3103
        %3402 = vmatmul.mubr.bf16.gmra.mrb[0].mxu0 %v3102
        %v3403 = vpop.f32.mrb[0].mxu0
        %v3404 = vadd.f32 0.0, %v3403
        %v3405 = vpop.f32.mrb[0].mxu0
        %v3406 = vadd.f32 0.0, %v3405
        %v3407 = vpop.f32.mrb[0].mxu0
        %v3408 = vadd.f32 0.0, %v3407
        %v3409 = vpop.f32.mrb[0].mxu0
        %v3410 = vadd.f32 0.0, %v3409
        %3411 = vmatprep.mubr.bf16.mxu0 %v3105
        %3412 = vmatmul.mubr.bf16.gmra.mrb[0].mxu0 %v3104
        %v3413 = vpop.f32.mrb[0].mxu0
        %v3414 = vadd.f32 0.0, %v3413
        %v3415 = vpop.f32.mrb[0].mxu0
        %v3416 = vadd.f32 0.0, %v3415
        %v3417 = vpop.f32.mrb[0].mxu0
        %v3418 = vadd.f32 0.0, %v3417
        %v3419 = vpop.f32.mrb[0].mxu0
        %v3420 = vadd.f32 0.0, %v3419
        %3421 = vdwg.mxu0
        %v3454 = vunpack.c.l.b16 %v3056
        %v3455 = vunpack.c.h.b16 %v3056
        %v3456 = vunpack.c.l.b16 %v3057
        %v3457 = vunpack.c.h.b16 %v3057
        %v3458 = vunpack.c.l.b16 %v3058
        %v3459 = vunpack.c.h.b16 %v3058
        %v3460 = vunpack.c.l.b16 %v3059
        %v3461 = vunpack.c.h.b16 %v3059
        %v3462 = vunpack.c.l.b16 %v3060
        %v3463 = vunpack.c.h.b16 %v3060
        %v3464 = vunpack.c.l.b16 %v3061
        %v3465 = vunpack.c.h.b16 %v3061
        %v3466 = vunpack.c.l.b16 %v3062
        %v3467 = vunpack.c.h.b16 %v3062
        %v3468 = vunpack.c.l.b16 %v3063
        %v3469 = vunpack.c.h.b16 %v3063
        %v3470 = vunpack.c.l.b16 %v3064
        %v3471 = vunpack.c.h.b16 %v3064
        %v3472 = vunpack.c.l.b16 %v3065
        %v3473 = vunpack.c.h.b16 %v3065
        %v3474 = vunpack.c.l.b16 %v3066
        %v3475 = vunpack.c.h.b16 %v3066
        %v3476 = vunpack.c.l.b16 %v3067
        %v3477 = vunpack.c.h.b16 %v3067
        %v3478 = vunpack.c.l.b16 %v3068
        %v3479 = vunpack.c.h.b16 %v3068
        %v3480 = vunpack.c.l.b16 %v3069
        %v3481 = vunpack.c.h.b16 %v3069
        %v3482 = vunpack.c.l.b16 %v3070
        %v3483 = vunpack.c.h.b16 %v3070
        %v3484 = vunpack.c.l.b16 %v3071
        %v3485 = vunpack.c.h.b16 %v3071
        %v3486 = vunpack.c.l.b16 %v3072
        %v3487 = vunpack.c.h.b16 %v3072
        %v3488 = vunpack.c.l.b16 %v3073
        %v3489 = vunpack.c.h.b16 %v3073
        %v3490 = vunpack.c.l.b16 %v3074
        %v3491 = vunpack.c.h.b16 %v3074
        %v3492 = vunpack.c.l.b16 %v3075
        %v3493 = vunpack.c.h.b16 %v3075
        %v3494 = vunpack.c.l.b16 %v3076
        %v3495 = vunpack.c.h.b16 %v3076
        %v3496 = vunpack.c.l.b16 %v3077
        %v3497 = vunpack.c.h.b16 %v3077
        %v3498 = vunpack.c.l.b16 %v3078
        %v3499 = vunpack.c.h.b16 %v3078
        %v3500 = vunpack.c.l.b16 %v3079
        %v3501 = vunpack.c.h.b16 %v3079
        %v3502 = vunpack.c.l.b16 %v3080
        %v3503 = vunpack.c.h.b16 %v3080
        %v3504 = vunpack.c.l.b16 %v3081
        %v3505 = vunpack.c.h.b16 %v3081
        %v3506 = vunpack.c.l.b16 %v3082
        %v3507 = vunpack.c.h.b16 %v3082
        %v3508 = vunpack.c.l.b16 %v3083
        %v3509 = vunpack.c.h.b16 %v3083
        %v3510 = vunpack.c.l.b16 %v3084
        %v3511 = vunpack.c.h.b16 %v3084
        %v3512 = vunpack.c.l.b16 %v3085
        %v3513 = vunpack.c.h.b16 %v3085
        %v3514 = vunpack.c.l.b16 %v3086
        %v3515 = vunpack.c.h.b16 %v3086
        %v3516 = vunpack.c.l.b16 %v3087
        %v3517 = vunpack.c.h.b16 %v3087
        %v3518 = vpack.c.b16 %v3456, %v3454
        %v3519 = vpack.c.b16 %v3457, %v3455
        %v3520 = vpack.c.b16 %v3460, %v3458
        %v3521 = vpack.c.b16 %v3461, %v3459
        %v3522 = vpack.c.b16 %v3464, %v3462
        %v3523 = vpack.c.b16 %v3465, %v3463
        %v3524 = vpack.c.b16 %v3468, %v3466
        %v3525 = vpack.c.b16 %v3469, %v3467
        %v3526 = vpack.c.b16 %v3472, %v3470
        %v3527 = vpack.c.b16 %v3473, %v3471
        %v3528 = vpack.c.b16 %v3476, %v3474
        %v3529 = vpack.c.b16 %v3477, %v3475
        %v3530 = vpack.c.b16 %v3480, %v3478
        %v3531 = vpack.c.b16 %v3481, %v3479
        %v3532 = vpack.c.b16 %v3484, %v3482
        %v3533 = vpack.c.b16 %v3485, %v3483
        %v3534 = vpack.c.b16 %v3488, %v3486
        %v3535 = vpack.c.b16 %v3489, %v3487
        %v3536 = vpack.c.b16 %v3492, %v3490
        %v3537 = vpack.c.b16 %v3493, %v3491
        %v3538 = vpack.c.b16 %v3496, %v3494
        %v3539 = vpack.c.b16 %v3497, %v3495
        %v3540 = vpack.c.b16 %v3500, %v3498
        %v3541 = vpack.c.b16 %v3501, %v3499
        %v3542 = vpack.c.b16 %v3504, %v3502
        %v3543 = vpack.c.b16 %v3505, %v3503
        %v3544 = vpack.c.b16 %v3508, %v3506
        %v3545 = vpack.c.b16 %v3509, %v3507
        %v3546 = vpack.c.b16 %v3512, %v3510
        %v3547 = vpack.c.b16 %v3513, %v3511
        %v3548 = vpack.c.b16 %v3516, %v3514
        %v3549 = vpack.c.b16 %v3517, %v3515
        %3582 = vmatprep.subr.bf16.mxu0 %v3519
        %3583 = vmatpush1.bf16.msra.mxu0 %v3518
        %3584 = vmatprep.subr.bf16.mxu0 %v3521
        %3585 = vmatpush1.bf16.msra.mxu0 %v3520
        %3586 = vmatprep.subr.bf16.mxu0 %v3523
        %3587 = vmatpush1.bf16.msra.mxu0 %v3522
        %3588 = vmatprep.subr.bf16.mxu0 %v3525
        %3589 = vmatpush1.bf16.msra.mxu0 %v3524
        %3590 = vmatprep.subr.bf16.mxu0 %v3527
        %3591 = vmatpush1.bf16.msra.mxu0 %v3526
        %3592 = vmatprep.subr.bf16.mxu0 %v3529
        %3593 = vmatpush1.bf16.msra.mxu0 %v3528
        %3594 = vmatprep.subr.bf16.mxu0 %v3531
        %3595 = vmatpush1.bf16.msra.mxu0 %v3530
        %3596 = vmatprep.subr.bf16.mxu0 %v3533
        %3597 = vmatpush1.bf16.msra.mxu0 %v3532
        %3598 = vmatprep.subr.bf16.mxu0 %v3535
        %3599 = vmatpush1.bf16.msra.mxu0 %v3534
        %3600 = vmatprep.subr.bf16.mxu0 %v3537
        %3601 = vmatpush1.bf16.msra.mxu0 %v3536
        %3602 = vmatprep.subr.bf16.mxu0 %v3539
        %3603 = vmatpush1.bf16.msra.mxu0 %v3538
        %3604 = vmatprep.subr.bf16.mxu0 %v3541
        %3605 = vmatpush1.bf16.msra.mxu0 %v3540
        %3606 = vmatprep.subr.bf16.mxu0 %v3543
        %3607 = vmatpush1.bf16.msra.mxu0 %v3542
        %3608 = vmatprep.subr.bf16.mxu0 %v3545
        %3609 = vmatpush1.bf16.msra.mxu0 %v3544
        %3610 = vmatprep.subr.bf16.mxu0 %v3547
        %3611 = vmatpush1.bf16.msra.mxu0 %v3546
        %3612 = vmatprep.subr.bf16.mxu0 %v3549
        %3613 = vmatpush1.bf16.msra.mxu0 %v3548
        %3614 = vmatprep.mubr.bf16.mxu0 %v3039
        %3615 = vmatmul.mubr.bf16.gmra.mrb[0].mxu0 %v3038
        %v3616 = vpop.f32.mrb[0].mxu0
        %v3617 = vadd.f32 %v3334, %v3616
        %v3618 = vpop.f32.mrb[0].mxu0
        %v3619 = vadd.f32 %v3336, %v3618
        %v3620 = vpop.f32.mrb[0].mxu0
        %v3621 = vadd.f32 %v3338, %v3620
        %v3622 = vpop.f32.mrb[0].mxu0
        %v3623 = vadd.f32 %v3340, %v3622
        %3624 = vmatprep.mubr.bf16.mxu0 %v3041
        %3625 = vmatmul.mubr.bf16.gmra.mrb[0].mxu0 %v3040
        %v3626 = vpop.f32.mrb[0].mxu0
        %v3627 = vadd.f32 %v3344, %v3626
        %v3628 = vpop.f32.mrb[0].mxu0
        %v3629 = vadd.f32 %v3346, %v3628
        %v3630 = vpop.f32.mrb[0].mxu0
        %v3631 = vadd.f32 %v3348, %v3630
        %v3632 = vpop.f32.mrb[0].mxu0
        %v3633 = vadd.f32 %v3350, %v3632
        %3634 = vmatprep.mubr.bf16.mxu0 %v3043
        %3635 = vmatmul.mubr.bf16.gmra.mrb[0].mxu0 %v3042
        %v3636 = vpop.f32.mrb[0].mxu0
        %v3637 = vadd.f32 %v3354, %v3636
        %v3638 = vpop.f32.mrb[0].mxu0
        %v3639 = vadd.f32 %v3356, %v3638
        %v3640 = vpop.f32.mrb[0].mxu0
        %v3641 = vadd.f32 %v3358, %v3640
        %v3642 = vpop.f32.mrb[0].mxu0
        %v3643 = vadd.f32 %v3360, %v3642
        %3644 = vmatprep.mubr.bf16.mxu0 %v3045
        %3645 = vmatmul.mubr.bf16.gmra.mrb[0].mxu0 %v3044
        %v3646 = vpop.f32.mrb[0].mxu0
        %v3647 = vadd.f32 %v3364, %v3646
        %v3648 = vpop.f32.mrb[0].mxu0
        %v3649 = vadd.f32 %v3366, %v3648
        %v3650 = vpop.f32.mrb[0].mxu0
        %v3651 = vadd.f32 %v3368, %v3650
        %v3652 = vpop.f32.mrb[0].mxu0
        %v3653 = vadd.f32 %v3370, %v3652
        %3654 = vmatprep.mubr.bf16.mxu0 %v3047
        %3655 = vmatmul.mubr.bf16.gmra.mrb[0].mxu0 %v3046
        %v3656 = vpop.f32.mrb[0].mxu0
        %v3657 = vadd.f32 %v3374, %v3656
        %v3658 = vpop.f32.mrb[0].mxu0
        %v3659 = vadd.f32 %v3376, %v3658
        %v3660 = vpop.f32.mrb[0].mxu0
        %v3661 = vadd.f32 %v3378, %v3660
        %v3662 = vpop.f32.mrb[0].mxu0
        %v3663 = vadd.f32 %v3380, %v3662
        %3664 = vmatprep.mubr.bf16.mxu0 %v3049
        %3665 = vmatmul.mubr.bf16.gmra.mrb[0].mxu0 %v3048
        %v3666 = vpop.f32.mrb[0].mxu0
        %v3667 = vadd.f32 %v3384, %v3666
        %v3668 = vpop.f32.mrb[0].mxu0
        %v3669 = vadd.f32 %v3386, %v3668
        %v3670 = vpop.f32.mrb[0].mxu0
        %v3671 = vadd.f32 %v3388, %v3670
        %v3672 = vpop.f32.mrb[0].mxu0
        %v3673 = vadd.f32 %v3390, %v3672
        %3674 = vmatprep.mubr.bf16.mxu0 %v3051
        %3675 = vmatmul.mubr.bf16.gmra.mrb[0].mxu0 %v3050
        %v3676 = vpop.f32.mrb[0].mxu0
        %v3677 = vadd.f32 %v3394, %v3676
        %v3678 = vpop.f32.mrb[0].mxu0
        %v3679 = vadd.f32 %v3396, %v3678
        %v3680 = vpop.f32.mrb[0].mxu0
        %v3681 = vadd.f32 %v3398, %v3680
        %v3682 = vpop.f32.mrb[0].mxu0
        %v3683 = vadd.f32 %v3400, %v3682
        %3684 = vmatprep.mubr.bf16.mxu0 %v3053
        %3685 = vmatmul.mubr.bf16.gmra.mrb[0].mxu0 %v3052
        %v3686 = vpop.f32.mrb[0].mxu0
        %v3687 = vadd.f32 %v3404, %v3686
        %v3688 = vpop.f32.mrb[0].mxu0
        %v3689 = vadd.f32 %v3406, %v3688
        %v3690 = vpop.f32.mrb[0].mxu0
        %v3691 = vadd.f32 %v3408, %v3690
        %v3692 = vpop.f32.mrb[0].mxu0
        %v3693 = vadd.f32 %v3410, %v3692
        %3694 = vmatprep.mubr.bf16.mxu0 %v3055
        %3695 = vmatmul.mubr.bf16.gmra.mrb[0].mxu0 %v3054
        %v3696 = vpop.f32.mrb[0].mxu0
        %v3697 = vadd.f32 %v3414, %v3696
        %v3698 = vpop.f32.mrb[0].mxu0
        %v3699 = vadd.f32 %v3416, %v3698
        %v3700 = vpop.f32.mrb[0].mxu0
        %v3701 = vadd.f32 %v3418, %v3700
        %v3702 = vpop.f32.mrb[0].mxu0
        %v3703 = vadd.f32 %v3420, %v3702
        %3704 = vdwg.mxu0
        %v3705 = vpack.c.bf16 0.0, %v3036
        %v3706 = vpack.c.bf16 0.0, %v3037
        %s3707 = scalar_lea.vmem [#allocation9], 512
        %v3708 = vld [vmem:[%s3707] sm:$0xff]
        %v3709 = vld [vmem:[%s3707 + $0x8] sm:$0xff]
        %v3710 = vld [vmem:[%s3707 + $0x10] sm:$0xff]
        %v3711 = vld [vmem:[%s3707 + $0x18] sm:$0xff]
        %v3712 = vld [vmem:[%s3707 + $0x20] sm:$0xff]
        %v3713 = vld [vmem:[%s3707 + $0x28] sm:$0xff]
        %v3714 = vld [vmem:[%s3707 + $0x30] sm:$0xff]
        %v3715 = vld [vmem:[%s3707 + $0x38] sm:$0xff]
        %v3716 = vld [vmem:[%s3707 + $0x40] sm:$0xff]
        %v3717 = vld [vmem:[%s3707 + $0x48] sm:$0xff]
        %v3718 = vld [vmem:[%s3707 + $0x50] sm:$0xff]
        %v3719 = vld [vmem:[%s3707 + $0x58] sm:$0xff]
        %v3720 = vld [vmem:[%s3707 + $0x60] sm:$0xff]
        %v3721 = vld [vmem:[%s3707 + $0x68] sm:$0xff]
        %v3722 = vld [vmem:[%s3707 + $0x70] sm:$0xff]
        %v3723 = vld [vmem:[%s3707 + $0x78] sm:$0xff]
        %v3724 = vld [vmem:[%s3707 + $0x80] sm:$0xff]
        %v3725 = vld [vmem:[%s3707 + $0x88] sm:$0xff]
        %v3726 = vld [vmem:[%s3707 + $0x90] sm:$0xff]
        %v3727 = vld [vmem:[%s3707 + $0x98] sm:$0xff]
        %v3728 = vld [vmem:[%s3707 + $0xa0] sm:$0xff]
        %v3729 = vld [vmem:[%s3707 + $0xa8] sm:$0xff]
        %v3730 = vld [vmem:[%s3707 + $0xb0] sm:$0xff]
        %v3731 = vld [vmem:[%s3707 + $0xb8] sm:$0xff]
        %v3732 = vld [vmem:[%s3707 + $0xc0] sm:$0xff]
        %v3733 = vld [vmem:[%s3707 + $0xc8] sm:$0xff]
        %v3734 = vld [vmem:[%s3707 + $0xd0] sm:$0xff]
        %v3735 = vld [vmem:[%s3707 + $0xd8] sm:$0xff]
        %v3736 = vld [vmem:[%s3707 + $0xe0] sm:$0xff]
        %v3737 = vld [vmem:[%s3707 + $0xe8] sm:$0xff]
        %v3738 = vld [vmem:[%s3707 + $0xf0] sm:$0xff]
        %v3739 = vld [vmem:[%s3707 + $0xf8] sm:$0xff]
        %v3772 = vunpack.c.l.b16 %v3708
        %v3773 = vunpack.c.h.b16 %v3708
        %v3774 = vunpack.c.l.b16 %v3709
        %v3775 = vunpack.c.h.b16 %v3709
        %v3776 = vunpack.c.l.b16 %v3710
        %v3777 = vunpack.c.h.b16 %v3710
        %v3778 = vunpack.c.l.b16 %v3711
        %v3779 = vunpack.c.h.b16 %v3711
        %v3780 = vunpack.c.l.b16 %v3712
        %v3781 = vunpack.c.h.b16 %v3712
        %v3782 = vunpack.c.l.b16 %v3713
        %v3783 = vunpack.c.h.b16 %v3713
        %v3784 = vunpack.c.l.b16 %v3714
        %v3785 = vunpack.c.h.b16 %v3714
        %v3786 = vunpack.c.l.b16 %v3715
        %v3787 = vunpack.c.h.b16 %v3715
        %v3788 = vunpack.c.l.b16 %v3716
        %v3789 = vunpack.c.h.b16 %v3716
        %v3790 = vunpack.c.l.b16 %v3717
        %v3791 = vunpack.c.h.b16 %v3717
        %v3792 = vunpack.c.l.b16 %v3718
        %v3793 = vunpack.c.h.b16 %v3718
        %v3794 = vunpack.c.l.b16 %v3719
        %v3795 = vunpack.c.h.b16 %v3719
        %v3796 = vunpack.c.l.b16 %v3720
        %v3797 = vunpack.c.h.b16 %v3720
        %v3798 = vunpack.c.l.b16 %v3721
        %v3799 = vunpack.c.h.b16 %v3721
        %v3800 = vunpack.c.l.b16 %v3722
        %v3801 = vunpack.c.h.b16 %v3722
        %v3802 = vunpack.c.l.b16 %v3723
        %v3803 = vunpack.c.h.b16 %v3723
        %v3804 = vunpack.c.l.b16 %v3724
        %v3805 = vunpack.c.h.b16 %v3724
        %v3806 = vunpack.c.l.b16 %v3725
        %v3807 = vunpack.c.h.b16 %v3725
        %v3808 = vunpack.c.l.b16 %v3726
        %v3809 = vunpack.c.h.b16 %v3726
        %v3810 = vunpack.c.l.b16 %v3727
        %v3811 = vunpack.c.h.b16 %v3727
        %v3812 = vunpack.c.l.b16 %v3728
        %v3813 = vunpack.c.h.b16 %v3728
        %v3814 = vunpack.c.l.b16 %v3729
        %v3815 = vunpack.c.h.b16 %v3729
        %v3816 = vunpack.c.l.b16 %v3730
        %v3817 = vunpack.c.h.b16 %v3730
        %v3818 = vunpack.c.l.b16 %v3731
        %v3819 = vunpack.c.h.b16 %v3731
        %v3820 = vunpack.c.l.b16 %v3732
        %v3821 = vunpack.c.h.b16 %v3732
        %v3822 = vunpack.c.l.b16 %v3733
        %v3823 = vunpack.c.h.b16 %v3733
        %v3824 = vunpack.c.l.b16 %v3734
        %v3825 = vunpack.c.h.b16 %v3734
        %v3826 = vunpack.c.l.b16 %v3735
        %v3827 = vunpack.c.h.b16 %v3735
        %v3828 = vunpack.c.l.b16 %v3736
        %v3829 = vunpack.c.h.b16 %v3736
        %v3830 = vunpack.c.l.b16 %v3737
        %v3831 = vunpack.c.h.b16 %v3737
        %v3832 = vunpack.c.l.b16 %v3738
        %v3833 = vunpack.c.h.b16 %v3738
        %v3834 = vunpack.c.l.b16 %v3739
        %v3835 = vunpack.c.h.b16 %v3739
        %v3836 = vpack.c.b16 %v3774, %v3772
        %v3837 = vpack.c.b16 %v3775, %v3773
        %v3838 = vpack.c.b16 %v3778, %v3776
        %v3839 = vpack.c.b16 %v3779, %v3777
        %v3840 = vpack.c.b16 %v3782, %v3780
        %v3841 = vpack.c.b16 %v3783, %v3781
        %v3842 = vpack.c.b16 %v3786, %v3784
        %v3843 = vpack.c.b16 %v3787, %v3785
        %v3844 = vpack.c.b16 %v3790, %v3788
        %v3845 = vpack.c.b16 %v3791, %v3789
        %v3846 = vpack.c.b16 %v3794, %v3792
        %v3847 = vpack.c.b16 %v3795, %v3793
        %v3848 = vpack.c.b16 %v3798, %v3796
        %v3849 = vpack.c.b16 %v3799, %v3797
        %v3850 = vpack.c.b16 %v3802, %v3800
        %v3851 = vpack.c.b16 %v3803, %v3801
        %v3852 = vpack.c.b16 %v3806, %v3804
        %v3853 = vpack.c.b16 %v3807, %v3805
        %v3854 = vpack.c.b16 %v3810, %v3808
        %v3855 = vpack.c.b16 %v3811, %v3809
        %v3856 = vpack.c.b16 %v3814, %v3812
        %v3857 = vpack.c.b16 %v3815, %v3813
        %v3858 = vpack.c.b16 %v3818, %v3816
        %v3859 = vpack.c.b16 %v3819, %v3817
        %v3860 = vpack.c.b16 %v3822, %v3820
        %v3861 = vpack.c.b16 %v3823, %v3821
        %v3862 = vpack.c.b16 %v3826, %v3824
        %v3863 = vpack.c.b16 %v3827, %v3825
        %v3864 = vpack.c.b16 %v3830, %v3828
        %v3865 = vpack.c.b16 %v3831, %v3829
        %v3866 = vpack.c.b16 %v3834, %v3832
        %v3867 = vpack.c.b16 %v3835, %v3833
        %3900 = vmatprep.subr.bf16.mxu0 %v3837
        %3901 = vmatpush1.bf16.msra.mxu0 %v3836
        %3902 = vmatprep.subr.bf16.mxu0 %v3839
        %3903 = vmatpush1.bf16.msra.mxu0 %v3838
        %3904 = vmatprep.subr.bf16.mxu0 %v3841
        %3905 = vmatpush1.bf16.msra.mxu0 %v3840
        %3906 = vmatprep.subr.bf16.mxu0 %v3843
        %3907 = vmatpush1.bf16.msra.mxu0 %v3842
        %3908 = vmatprep.subr.bf16.mxu0 %v3845
        %3909 = vmatpush1.bf16.msra.mxu0 %v3844
        %3910 = vmatprep.subr.bf16.mxu0 %v3847
        %3911 = vmatpush1.bf16.msra.mxu0 %v3846
        %3912 = vmatprep.subr.bf16.mxu0 %v3849
        %3913 = vmatpush1.bf16.msra.mxu0 %v3848
        %3914 = vmatprep.subr.bf16.mxu0 %v3851
        %3915 = vmatpush1.bf16.msra.mxu0 %v3850
        %3916 = vmatprep.subr.bf16.mxu0 %v3853
        %3917 = vmatpush1.bf16.msra.mxu0 %v3852
        %3918 = vmatprep.subr.bf16.mxu0 %v3855
        %3919 = vmatpush1.bf16.msra.mxu0 %v3854
        %3920 = vmatprep.subr.bf16.mxu0 %v3857
        %3921 = vmatpush1.bf16.msra.mxu0 %v3856
        %3922 = vmatprep.subr.bf16.mxu0 %v3859
        %3923 = vmatpush1.bf16.msra.mxu0 %v3858
        %3924 = vmatprep.subr.bf16.mxu0 %v3861
        %3925 = vmatpush1.bf16.msra.mxu0 %v3860
        %3926 = vmatprep.subr.bf16.mxu0 %v3863
        %3927 = vmatpush1.bf16.msra.mxu0 %v3862
        %3928 = vmatprep.subr.bf16.mxu0 %v3865
        %3929 = vmatpush1.bf16.msra.mxu0 %v3864
        %3930 = vmatprep.subr.bf16.mxu0 %v3867
        %3931 = vmatpush1.bf16.msra.mxu0 %v3866
        %3932 = vmatprep.mubr.bf16.mxu0 %v3041
        %3933 = vmatmul.mubr.bf16.gmra.mrb[0].mxu0 %v3040
        %v3934 = vpop.f32.mrb[0].mxu0
        %v3935 = vadd.f32 0.0, %v3934
        %v3936 = vpop.f32.mrb[0].mxu0
        %v3937 = vadd.f32 0.0, %v3936
        %v3938 = vpop.f32.mrb[0].mxu0
        %v3939 = vadd.f32 0.0, %v3938
        %v3940 = vpop.f32.mrb[0].mxu0
        %v3941 = vadd.f32 0.0, %v3940
        %3942 = vmatprep.mubr.bf16.mxu0 %v3043
        %3943 = vmatmul.mubr.bf16.gmra.mrb[0].mxu0 %v3042
        %v3944 = vpop.f32.mrb[0].mxu0
        %v3945 = vadd.f32 0.0, %v3944
        %v3946 = vpop.f32.mrb[0].mxu0
        %v3947 = vadd.f32 0.0, %v3946
        %v3948 = vpop.f32.mrb[0].mxu0
        %v3949 = vadd.f32 0.0, %v3948
        %v3950 = vpop.f32.mrb[0].mxu0
        %v3951 = vadd.f32 0.0, %v3950
        %3952 = vmatprep.mubr.bf16.mxu0 %v3045
        %3953 = vmatmul.mubr.bf16.gmra.mrb[0].mxu0 %v3044
        %v3954 = vpop.f32.mrb[0].mxu0
        %v3955 = vadd.f32 0.0, %v3954
        %v3956 = vpop.f32.mrb[0].mxu0
        %v3957 = vadd.f32 0.0, %v3956
        %v3958 = vpop.f32.mrb[0].mxu0
        %v3959 = vadd.f32 0.0, %v3958
        %v3960 = vpop.f32.mrb[0].mxu0
        %v3961 = vadd.f32 0.0, %v3960
        %3962 = vmatprep.mubr.bf16.mxu0 %v3047
        %3963 = vmatmul.mubr.bf16.gmra.mrb[0].mxu0 %v3046
        %v3964 = vpop.f32.mrb[0].mxu0
        %v3965 = vadd.f32 0.0, %v3964
        %v3966 = vpop.f32.mrb[0].mxu0
        %v3967 = vadd.f32 0.0, %v3966
        %v3968 = vpop.f32.mrb[0].mxu0
        %v3969 = vadd.f32 0.0, %v3968
        %v3970 = vpop.f32.mrb[0].mxu0
        %v3971 = vadd.f32 0.0, %v3970
        %3972 = vmatprep.mubr.bf16.mxu0 %v3049
        %3973 = vmatmul.mubr.bf16.gmra.mrb[0].mxu0 %v3048
        %v3974 = vpop.f32.mrb[0].mxu0
        %v3975 = vadd.f32 0.0, %v3974
        %v3976 = vpop.f32.mrb[0].mxu0
        %v3977 = vadd.f32 0.0, %v3976
        %v3978 = vpop.f32.mrb[0].mxu0
        %v3979 = vadd.f32 0.0, %v3978
        %v3980 = vpop.f32.mrb[0].mxu0
        %v3981 = vadd.f32 0.0, %v3980
        %3982 = vmatprep.mubr.bf16.mxu0 %v3051
        %3983 = vmatmul.mubr.bf16.gmra.mrb[0].mxu0 %v3050
        %v3984 = vpop.f32.mrb[0].mxu0
        %v3985 = vadd.f32 0.0, %v3984
        %v3986 = vpop.f32.mrb[0].mxu0
        %v3987 = vadd.f32 0.0, %v3986
        %v3988 = vpop.f32.mrb[0].mxu0
        %v3989 = vadd.f32 0.0, %v3988
        %v3990 = vpop.f32.mrb[0].mxu0
        %v3991 = vadd.f32 0.0, %v3990
        %3992 = vmatprep.mubr.bf16.mxu0 %v3053
        %3993 = vmatmul.mubr.bf16.gmra.mrb[0].mxu0 %v3052
        %v3994 = vpop.f32.mrb[0].mxu0
        %v3995 = vadd.f32 0.0, %v3994
        %v3996 = vpop.f32.mrb[0].mxu0
        %v3997 = vadd.f32 0.0, %v3996
        %v3998 = vpop.f32.mrb[0].mxu0
        %v3999 = vadd.f32 0.0, %v3998
        %v4000 = vpop.f32.mrb[0].mxu0
        %v4001 = vadd.f32 0.0, %v4000
        %4002 = vmatprep.mubr.bf16.mxu0 %v3055
        %4003 = vmatmul.mubr.bf16.gmra.mrb[0].mxu0 %v3054
        %v4004 = vpop.f32.mrb[0].mxu0
        %v4005 = vadd.f32 0.0, %v4004
        %v4006 = vpop.f32.mrb[0].mxu0
        %v4007 = vadd.f32 0.0, %v4006
        %v4008 = vpop.f32.mrb[0].mxu0
        %v4009 = vadd.f32 0.0, %v4008
        %v4010 = vpop.f32.mrb[0].mxu0
        %v4011 = vadd.f32 0.0, %v4010
        %4012 = vmatprep.mubr.bf16.mxu0 %v3706
        %4013 = vmatmul.mubr.bf16.gmra.mrb[0].mxu0 %v3705
        %v4014 = vpop.f32.mrb[0].mxu0
        %v4015 = vadd.f32 0.0, %v4014
        %v4016 = vpop.f32.mrb[0].mxu0
        %v4017 = vadd.f32 0.0, %v4016
        %v4018 = vpop.f32.mrb[0].mxu0
        %v4019 = vadd.f32 0.0, %v4018
        %v4020 = vpop.f32.mrb[0].mxu0
        %v4021 = vadd.f32 0.0, %v4020
        %4022 = vdwg.mxu0
        %v4023 = vadd.f32 %v3617, %v3935
        %v4024 = vadd.f32 %v3619, %v3937
        %v4025 = vadd.f32 %v3621, %v3939
        %v4026 = vadd.f32 %v3623, %v3941
        %v4027 = vadd.f32 %v3627, %v3945
        %v4028 = vadd.f32 %v3629, %v3947
        %v4029 = vadd.f32 %v3631, %v3949
        %v4030 = vadd.f32 %v3633, %v3951
        %v4031 = vadd.f32 %v3637, %v3955
        %v4032 = vadd.f32 %v3639, %v3957
        %v4033 = vadd.f32 %v3641, %v3959
        %v4034 = vadd.f32 %v3643, %v3961
        %v4035 = vadd.f32 %v3647, %v3965
        %v4036 = vadd.f32 %v3649, %v3967
        %v4037 = vadd.f32 %v3651, %v3969
        %v4038 = vadd.f32 %v3653, %v3971
        %v4039 = vadd.f32 %v3657, %v3975
        %v4040 = vadd.f32 %v3659, %v3977
        %v4041 = vadd.f32 %v3661, %v3979
        %v4042 = vadd.f32 %v3663, %v3981
        %v4043 = vadd.f32 %v3667, %v3985
        %v4044 = vadd.f32 %v3669, %v3987
        %v4045 = vadd.f32 %v3671, %v3989
        %v4046 = vadd.f32 %v3673, %v3991
        %v4047 = vadd.f32 %v3677, %v3995
        %v4048 = vadd.f32 %v3679, %v3997
        %v4049 = vadd.f32 %v3681, %v3999
        %v4050 = vadd.f32 %v3683, %v4001
        %v4051 = vadd.f32 %v3687, %v4005
        %v4052 = vadd.f32 %v3689, %v4007
        %v4053 = vadd.f32 %v3691, %v4009
        %v4054 = vadd.f32 %v3693, %v4011
        %v4055 = vadd.f32 %v3697, %v4015
        %v4056 = vadd.f32 %v3699, %v4017
        %v4057 = vadd.f32 %v3701, %v4019
        %v4058 = vadd.f32 %v3703, %v4021
        %v4059 = vlaneseq
        %v4060 = vshrl.u32 %v4059, 7
        %v4061 = vsub.s32 6, %v4060
        %v4062 = vrot.slane %v517, %v4061
        %v4063 = vlaneseq
        %v4064 = vshrl.u32 %v4063, 7
        %v4065 = vsub.s32 6, %v4064
        %v4066 = vrot.slane %v518, %v4065
        %v4067 = vadd.f32 %v4023, %v4062
        %v4068 = vadd.f32 %v4024, %v4066
        %v4069 = vadd.f32 %v4025, %v4062
        %v4070 = vadd.f32 %v4026, %v4066
        %v4071 = vadd.f32 %v4027, %v4062
        %v4072 = vadd.f32 %v4028, %v4066
        %v4073 = vadd.f32 %v4029, %v4062
        %v4074 = vadd.f32 %v4030, %v4066
        %v4075 = vadd.f32 %v4031, %v4062
        %v4076 = vadd.f32 %v4032, %v4066
        %v4077 = vadd.f32 %v4033, %v4062
        %v4078 = vadd.f32 %v4034, %v4066
        %v4079 = vadd.f32 %v4035, %v4062
        %v4080 = vadd.f32 %v4036, %v4066
        %v4081 = vadd.f32 %v4037, %v4062
        %v4082 = vadd.f32 %v4038, %v4066
        %v4083 = vadd.f32 %v4039, %v4062
        %v4084 = vadd.f32 %v4040, %v4066
        %v4085 = vadd.f32 %v4041, %v4062
        %v4086 = vadd.f32 %v4042, %v4066
        %v4087 = vadd.f32 %v4043, %v4062
        %v4088 = vadd.f32 %v4044, %v4066
        %v4089 = vadd.f32 %v4045, %v4062
        %v4090 = vadd.f32 %v4046, %v4066
        %v4091 = vadd.f32 %v4047, %v4062
        %v4092 = vadd.f32 %v4048, %v4066
        %v4093 = vadd.f32 %v4049, %v4062
        %v4094 = vadd.f32 %v4050, %v4066
        %v4095 = vadd.f32 %v4051, %v4062
        %v4096 = vadd.f32 %v4052, %v4066
        %v4097 = vadd.f32 %v4053, %v4062
        %v4098 = vadd.f32 %v4054, %v4066
        %v4099 = vadd.f32 %v4055, %v4062
        %v4100 = vadd.f32 %v4056, %v4066
        %v4101 = vadd.f32 %v4057, %v4062
        %v4102 = vadd.f32 %v4058, %v4066
        %v4103 = vmax.f32 %v4067, 0.0
        %v4104 = vmax.f32 %v4068, 0.0
        %v4105 = vmax.f32 %v4069, 0.0
        %v4106 = vmax.f32 %v4070, 0.0
        %v4107 = vmax.f32 %v4071, 0.0
        %v4108 = vmax.f32 %v4072, 0.0
        %v4109 = vmax.f32 %v4073, 0.0
        %v4110 = vmax.f32 %v4074, 0.0
        %v4111 = vmax.f32 %v4075, 0.0
        %v4112 = vmax.f32 %v4076, 0.0
        %v4113 = vmax.f32 %v4077, 0.0
        %v4114 = vmax.f32 %v4078, 0.0
        %v4115 = vmax.f32 %v4079, 0.0
        %v4116 = vmax.f32 %v4080, 0.0
        %v4117 = vmax.f32 %v4081, 0.0
        %v4118 = vmax.f32 %v4082, 0.0
        %v4119 = vmax.f32 %v4083, 0.0
        %v4120 = vmax.f32 %v4084, 0.0
        %v4121 = vmax.f32 %v4085, 0.0
        %v4122 = vmax.f32 %v4086, 0.0
        %v4123 = vmax.f32 %v4087, 0.0
        %v4124 = vmax.f32 %v4088, 0.0
        %v4125 = vmax.f32 %v4089, 0.0
        %v4126 = vmax.f32 %v4090, 0.0
        %v4127 = vmax.f32 %v4091, 0.0
        %v4128 = vmax.f32 %v4092, 0.0
        %v4129 = vmax.f32 %v4093, 0.0
        %v4130 = vmax.f32 %v4094, 0.0
        %v4131 = vmax.f32 %v4095, 0.0
        %v4132 = vmax.f32 %v4096, 0.0
        %v4133 = vmax.f32 %v4097, 0.0
        %v4134 = vmax.f32 %v4098, 0.0
        %v4135 = vmax.f32 %v4099, 0.0
        %v4136 = vmax.f32 %v4100, 0.0
        %v4137 = vmax.f32 %v4101, 0.0
        %v4138 = vmax.f32 %v4102, 0.0
        %v4139 = vpack.c.bf16 %v4105, %v4103
        %v4140 = vpack.c.bf16 %v4106, %v4104
        %v4141 = vpack.c.bf16 %v4109, %v4107
        %v4142 = vpack.c.bf16 %v4110, %v4108
        %v4143 = vpack.c.bf16 %v4113, %v4111
        %v4144 = vpack.c.bf16 %v4114, %v4112
        %v4145 = vpack.c.bf16 %v4117, %v4115
        %v4146 = vpack.c.bf16 %v4118, %v4116
        %v4147 = vpack.c.bf16 %v4121, %v4119
        %v4148 = vpack.c.bf16 %v4122, %v4120
        %v4149 = vpack.c.bf16 %v4125, %v4123
        %v4150 = vpack.c.bf16 %v4126, %v4124
        %v4151 = vpack.c.bf16 %v4129, %v4127
        %v4152 = vpack.c.bf16 %v4130, %v4128
        %v4153 = vpack.c.bf16 %v4133, %v4131
        %v4154 = vpack.c.bf16 %v4134, %v4132
        %v4155 = vpack.c.bf16 %v4137, %v4135
        %v4156 = vpack.c.bf16 %v4138, %v4136
        %v4157 = vld [vmem:[#allocation10] sm:$0xff]
        %v4158 = vld [vmem:[#allocation10 + $0x8] sm:$0xff]
        %v4159 = vld [vmem:[#allocation10 + $0x10] sm:$0xff]
        %v4160 = vld [vmem:[#allocation10 + $0x18] sm:$0xff]
        %v4161 = vld [vmem:[#allocation10 + $0x20] sm:$0xff]
        %v4162 = vld [vmem:[#allocation10 + $0x28] sm:$0xff]
        %v4163 = vld [vmem:[#allocation10 + $0x30] sm:$0xff]
        %v4164 = vld [vmem:[#allocation10 + $0x38] sm:$0xff]
        %v4165 = vld [vmem:[#allocation10 + $0x40] sm:$0xff]
        %v4166 = vld [vmem:[#allocation10 + $0x48] sm:$0xff]
        %v4167 = vld [vmem:[#allocation10 + $0x50] sm:$0xff]
        %v4168 = vld [vmem:[#allocation10 + $0x58] sm:$0xff]
        %v4169 = vld [vmem:[#allocation10 + $0x60] sm:$0xff]
        %v4170 = vld [vmem:[#allocation10 + $0x68] sm:$0xff]
        %v4171 = vld [vmem:[#allocation10 + $0x70] sm:$0xff]
        %v4172 = vld [vmem:[#allocation10 + $0x78] sm:$0xff]
        %v4173 = vld [vmem:[#allocation10 + $0x80] sm:$0xff]
        %v4174 = vld [vmem:[#allocation10 + $0x88] sm:$0xff]
        %v4175 = vld [vmem:[#allocation10 + $0x90] sm:$0xff]
        %v4176 = vld [vmem:[#allocation10 + $0x98] sm:$0xff]
        %v4177 = vld [vmem:[#allocation10 + $0xa0] sm:$0xff]
        %v4178 = vld [vmem:[#allocation10 + $0xa8] sm:$0xff]
        %v4179 = vld [vmem:[#allocation10 + $0xb0] sm:$0xff]
        %v4180 = vld [vmem:[#allocation10 + $0xb8] sm:$0xff]
        %v4181 = vld [vmem:[#allocation10 + $0xc0] sm:$0xff]
        %v4182 = vld [vmem:[#allocation10 + $0xc8] sm:$0xff]
        %v4183 = vld [vmem:[#allocation10 + $0xd0] sm:$0xff]
        %v4184 = vld [vmem:[#allocation10 + $0xd8] sm:$0xff]
        %v4185 = vld [vmem:[#allocation10 + $0xe0] sm:$0xff]
        %v4186 = vld [vmem:[#allocation10 + $0xe8] sm:$0xff]
        %v4187 = vld [vmem:[#allocation10 + $0xf0] sm:$0xff]
        %v4188 = vld [vmem:[#allocation10 + $0xf8] sm:$0xff]
        %v4189 = vlaneseq
        %v4190 = vshrl.u32 %v4189, 7
        %v4191 = vsub.s32 7, %v4190
        %v4192 = vrot.slane %v517, %v4191
        %v4193 = vlaneseq
        %v4194 = vshrl.u32 %v4193, 7
        %v4195 = vsub.s32 7, %v4194
        %v4196 = vrot.slane %v518, %v4195
        %v4229 = vunpack.c.l.b16 %v4157
        %v4230 = vunpack.c.h.b16 %v4157
        %v4231 = vunpack.c.l.b16 %v4158
        %v4232 = vunpack.c.h.b16 %v4158
        %v4233 = vunpack.c.l.b16 %v4159
        %v4234 = vunpack.c.h.b16 %v4159
        %v4235 = vunpack.c.l.b16 %v4160
        %v4236 = vunpack.c.h.b16 %v4160
        %v4237 = vunpack.c.l.b16 %v4161
        %v4238 = vunpack.c.h.b16 %v4161
        %v4239 = vunpack.c.l.b16 %v4162
        %v4240 = vunpack.c.h.b16 %v4162
        %v4241 = vunpack.c.l.b16 %v4163
        %v4242 = vunpack.c.h.b16 %v4163
        %v4243 = vunpack.c.l.b16 %v4164
        %v4244 = vunpack.c.h.b16 %v4164
        %v4245 = vunpack.c.l.b16 %v4165
        %v4246 = vunpack.c.h.b16 %v4165
        %v4247 = vunpack.c.l.b16 %v4166
        %v4248 = vunpack.c.h.b16 %v4166
        %v4249 = vunpack.c.l.b16 %v4167
        %v4250 = vunpack.c.h.b16 %v4167
        %v4251 = vunpack.c.l.b16 %v4168
        %v4252 = vunpack.c.h.b16 %v4168
        %v4253 = vunpack.c.l.b16 %v4169
        %v4254 = vunpack.c.h.b16 %v4169
        %v4255 = vunpack.c.l.b16 %v4170
        %v4256 = vunpack.c.h.b16 %v4170
        %v4257 = vunpack.c.l.b16 %v4171
        %v4258 = vunpack.c.h.b16 %v4171
        %v4259 = vunpack.c.l.b16 %v4172
        %v4260 = vunpack.c.h.b16 %v4172
        %v4261 = vunpack.c.l.b16 %v4173
        %v4262 = vunpack.c.h.b16 %v4173
        %v4263 = vunpack.c.l.b16 %v4174
        %v4264 = vunpack.c.h.b16 %v4174
        %v4265 = vunpack.c.l.b16 %v4175
        %v4266 = vunpack.c.h.b16 %v4175
        %v4267 = vunpack.c.l.b16 %v4176
        %v4268 = vunpack.c.h.b16 %v4176
        %v4269 = vunpack.c.l.b16 %v4177
        %v4270 = vunpack.c.h.b16 %v4177
        %v4271 = vunpack.c.l.b16 %v4178
        %v4272 = vunpack.c.h.b16 %v4178
        %v4273 = vunpack.c.l.b16 %v4179
        %v4274 = vunpack.c.h.b16 %v4179
        %v4275 = vunpack.c.l.b16 %v4180
        %v4276 = vunpack.c.h.b16 %v4180
        %v4277 = vunpack.c.l.b16 %v4181
        %v4278 = vunpack.c.h.b16 %v4181
        %v4279 = vunpack.c.l.b16 %v4182
        %v4280 = vunpack.c.h.b16 %v4182
        %v4281 = vunpack.c.l.b16 %v4183
        %v4282 = vunpack.c.h.b16 %v4183
        %v4283 = vunpack.c.l.b16 %v4184
        %v4284 = vunpack.c.h.b16 %v4184
        %v4285 = vunpack.c.l.b16 %v4185
        %v4286 = vunpack.c.h.b16 %v4185
        %v4287 = vunpack.c.l.b16 %v4186
        %v4288 = vunpack.c.h.b16 %v4186
        %v4289 = vunpack.c.l.b16 %v4187
        %v4290 = vunpack.c.h.b16 %v4187
        %v4291 = vunpack.c.l.b16 %v4188
        %v4292 = vunpack.c.h.b16 %v4188
        %v4293 = vpack.c.b16 %v4231, %v4229
        %v4294 = vpack.c.b16 %v4232, %v4230
        %v4295 = vpack.c.b16 %v4235, %v4233
        %v4296 = vpack.c.b16 %v4236, %v4234
        %v4297 = vpack.c.b16 %v4239, %v4237
        %v4298 = vpack.c.b16 %v4240, %v4238
        %v4299 = vpack.c.b16 %v4243, %v4241
        %v4300 = vpack.c.b16 %v4244, %v4242
        %v4301 = vpack.c.b16 %v4247, %v4245
        %v4302 = vpack.c.b16 %v4248, %v4246
        %v4303 = vpack.c.b16 %v4251, %v4249
        %v4304 = vpack.c.b16 %v4252, %v4250
        %v4305 = vpack.c.b16 %v4255, %v4253
        %v4306 = vpack.c.b16 %v4256, %v4254
        %v4307 = vpack.c.b16 %v4259, %v4257
        %v4308 = vpack.c.b16 %v4260, %v4258
        %v4309 = vpack.c.b16 %v4263, %v4261
        %v4310 = vpack.c.b16 %v4264, %v4262
        %v4311 = vpack.c.b16 %v4267, %v4265
        %v4312 = vpack.c.b16 %v4268, %v4266
        %v4313 = vpack.c.b16 %v4271, %v4269
        %v4314 = vpack.c.b16 %v4272, %v4270
        %v4315 = vpack.c.b16 %v4275, %v4273
        %v4316 = vpack.c.b16 %v4276, %v4274
        %v4317 = vpack.c.b16 %v4279, %v4277
        %v4318 = vpack.c.b16 %v4280, %v4278
        %v4319 = vpack.c.b16 %v4283, %v4281
        %v4320 = vpack.c.b16 %v4284, %v4282
        %v4321 = vpack.c.b16 %v4287, %v4285
        %v4322 = vpack.c.b16 %v4288, %v4286
        %v4323 = vpack.c.b16 %v4291, %v4289
        %v4324 = vpack.c.b16 %v4292, %v4290
        %4357 = vmatprep.subr.bf16.mxu0 %v4294
        %4358 = vmatpush1.bf16.msra.mxu0 %v4293
        %4359 = vmatprep.subr.bf16.mxu0 %v4296
        %4360 = vmatpush1.bf16.msra.mxu0 %v4295
        %4361 = vmatprep.subr.bf16.mxu0 %v4298
        %4362 = vmatpush1.bf16.msra.mxu0 %v4297
        %4363 = vmatprep.subr.bf16.mxu0 %v4300
        %4364 = vmatpush1.bf16.msra.mxu0 %v4299
        %4365 = vmatprep.subr.bf16.mxu0 %v4302
        %4366 = vmatpush1.bf16.msra.mxu0 %v4301
        %4367 = vmatprep.subr.bf16.mxu0 %v4304
        %4368 = vmatpush1.bf16.msra.mxu0 %v4303
        %4369 = vmatprep.subr.bf16.mxu0 %v4306
        %4370 = vmatpush1.bf16.msra.mxu0 %v4305
        %4371 = vmatprep.subr.bf16.mxu0 %v4308
        %4372 = vmatpush1.bf16.msra.mxu0 %v4307
        %4373 = vmatprep.subr.bf16.mxu0 %v4310
        %4374 = vmatpush1.bf16.msra.mxu0 %v4309
        %4375 = vmatprep.subr.bf16.mxu0 %v4312
        %4376 = vmatpush1.bf16.msra.mxu0 %v4311
        %4377 = vmatprep.subr.bf16.mxu0 %v4314
        %4378 = vmatpush1.bf16.msra.mxu0 %v4313
        %4379 = vmatprep.subr.bf16.mxu0 %v4316
        %4380 = vmatpush1.bf16.msra.mxu0 %v4315
        %4381 = vmatprep.subr.bf16.mxu0 %v4318
        %4382 = vmatpush1.bf16.msra.mxu0 %v4317
        %4383 = vmatprep.subr.bf16.mxu0 %v4320
        %4384 = vmatpush1.bf16.msra.mxu0 %v4319
        %4385 = vmatprep.subr.bf16.mxu0 %v4322
        %4386 = vmatpush1.bf16.msra.mxu0 %v4321
        %4387 = vmatprep.subr.bf16.mxu0 %v4324
        %4388 = vmatpush1.bf16.msra.mxu0 %v4323
        %4389 = vmatprep.mubr.bf16.mxu0 %v4140
        %4390 = vmatmul.mubr.bf16.gmra.mrb[0].mxu0 %v4139
        %v4391 = vpop.f32.mrb[0].mxu0
        %v4392 = vadd.f32 %v4192, %v4391
        %v4393 = vpop.f32.mrb[0].mxu0
        %v4394 = vadd.f32 %v4196, %v4393
        %v4395 = vpop.f32.mrb[0].mxu0
        %v4396 = vadd.f32 %v4192, %v4395
        %v4397 = vpop.f32.mrb[0].mxu0
        %v4398 = vadd.f32 %v4196, %v4397
        %4399 = vmatprep.mubr.bf16.mxu0 %v4142
        %4400 = vmatmul.mubr.bf16.gmra.mrb[0].mxu0 %v4141
        %v4401 = vpop.f32.mrb[0].mxu0
        %v4402 = vadd.f32 %v4192, %v4401
        %v4403 = vpop.f32.mrb[0].mxu0
        %v4404 = vadd.f32 %v4196, %v4403
        %v4405 = vpop.f32.mrb[0].mxu0
        %v4406 = vadd.f32 %v4192, %v4405
        %v4407 = vpop.f32.mrb[0].mxu0
        %v4408 = vadd.f32 %v4196, %v4407
        %4409 = vmatprep.mubr.bf16.mxu0 %v4144
        %4410 = vmatmul.mubr.bf16.gmra.mrb[0].mxu0 %v4143
        %v4411 = vpop.f32.mrb[0].mxu0
        %v4412 = vadd.f32 %v4192, %v4411
        %v4413 = vpop.f32.mrb[0].mxu0
        %v4414 = vadd.f32 %v4196, %v4413
        %v4415 = vpop.f32.mrb[0].mxu0
        %v4416 = vadd.f32 %v4192, %v4415
        %v4417 = vpop.f32.mrb[0].mxu0
        %v4418 = vadd.f32 %v4196, %v4417
        %4419 = vmatprep.mubr.bf16.mxu0 %v4146
        %4420 = vmatmul.mubr.bf16.gmra.mrb[0].mxu0 %v4145
        %v4421 = vpop.f32.mrb[0].mxu0
        %v4422 = vadd.f32 %v4192, %v4421
        %v4423 = vpop.f32.mrb[0].mxu0
        %v4424 = vadd.f32 %v4196, %v4423
        %v4425 = vpop.f32.mrb[0].mxu0
        %v4426 = vadd.f32 %v4192, %v4425
        %v4427 = vpop.f32.mrb[0].mxu0
        %v4428 = vadd.f32 %v4196, %v4427
        %4429 = vmatprep.mubr.bf16.mxu0 %v4148
        %4430 = vmatmul.mubr.bf16.gmra.mrb[0].mxu0 %v4147
        %v4431 = vpop.f32.mrb[0].mxu0
        %v4432 = vadd.f32 %v4192, %v4431
        %v4433 = vpop.f32.mrb[0].mxu0
        %v4434 = vadd.f32 %v4196, %v4433
        %v4435 = vpop.f32.mrb[0].mxu0
        %v4436 = vadd.f32 %v4192, %v4435
        %v4437 = vpop.f32.mrb[0].mxu0
        %v4438 = vadd.f32 %v4196, %v4437
        %4439 = vmatprep.mubr.bf16.mxu0 %v4150
        %4440 = vmatmul.mubr.bf16.gmra.mrb[0].mxu0 %v4149
        %v4441 = vpop.f32.mrb[0].mxu0
        %v4442 = vadd.f32 %v4192, %v4441
        %v4443 = vpop.f32.mrb[0].mxu0
        %v4444 = vadd.f32 %v4196, %v4443
        %v4445 = vpop.f32.mrb[0].mxu0
        %v4446 = vadd.f32 %v4192, %v4445
        %v4447 = vpop.f32.mrb[0].mxu0
        %v4448 = vadd.f32 %v4196, %v4447
        %4449 = vmatprep.mubr.bf16.mxu0 %v4152
        %4450 = vmatmul.mubr.bf16.gmra.mrb[0].mxu0 %v4151
        %v4451 = vpop.f32.mrb[0].mxu0
        %v4452 = vadd.f32 %v4192, %v4451
        %v4453 = vpop.f32.mrb[0].mxu0
        %v4454 = vadd.f32 %v4196, %v4453
        %v4455 = vpop.f32.mrb[0].mxu0
        %v4456 = vadd.f32 %v4192, %v4455
        %v4457 = vpop.f32.mrb[0].mxu0
        %v4458 = vadd.f32 %v4196, %v4457
        %4459 = vmatprep.mubr.bf16.mxu0 %v4154
        %4460 = vmatmul.mubr.bf16.gmra.mrb[0].mxu0 %v4153
        %v4461 = vpop.f32.mrb[0].mxu0
        %v4462 = vadd.f32 %v4192, %v4461
        %v4463 = vpop.f32.mrb[0].mxu0
        %v4464 = vadd.f32 %v4196, %v4463
        %v4465 = vpop.f32.mrb[0].mxu0
        %v4466 = vadd.f32 %v4192, %v4465
        %v4467 = vpop.f32.mrb[0].mxu0
        %v4468 = vadd.f32 %v4196, %v4467
        %4469 = vmatprep.mubr.bf16.mxu0 %v4156
        %4470 = vmatmul.mubr.bf16.gmra.mrb[0].mxu0 %v4155
        %v4471 = vpop.f32.mrb[0].mxu0
        %v4472 = vadd.f32 %v4192, %v4471
        %v4473 = vpop.f32.mrb[0].mxu0
        %v4474 = vadd.f32 %v4196, %v4473
        %v4475 = vpop.f32.mrb[0].mxu0
        %v4476 = vadd.f32 %v4192, %v4475
        %v4477 = vpop.f32.mrb[0].mxu0
        %v4478 = vadd.f32 %v4196, %v4477
        %4479 = vdwg.mxu0
        %v4480 = vmax.f32 %v4392, 0.0
        %v4481 = vmax.f32 %v4394, 0.0
        %v4482 = vmax.f32 %v4396, 0.0
        %v4483 = vmax.f32 %v4398, 0.0
        %v4484 = vmax.f32 %v4402, 0.0
        %v4485 = vmax.f32 %v4404, 0.0
        %v4486 = vmax.f32 %v4406, 0.0
        %v4487 = vmax.f32 %v4408, 0.0
        %v4488 = vmax.f32 %v4412, 0.0
        %v4489 = vmax.f32 %v4414, 0.0
        %v4490 = vmax.f32 %v4416, 0.0
        %v4491 = vmax.f32 %v4418, 0.0
        %v4492 = vmax.f32 %v4422, 0.0
        %v4493 = vmax.f32 %v4424, 0.0
        %v4494 = vmax.f32 %v4426, 0.0
        %v4495 = vmax.f32 %v4428, 0.0
        %v4496 = vmax.f32 %v4432, 0.0
        %v4497 = vmax.f32 %v4434, 0.0
        %v4498 = vmax.f32 %v4436, 0.0
        %v4499 = vmax.f32 %v4438, 0.0
        %v4500 = vmax.f32 %v4442, 0.0
        %v4501 = vmax.f32 %v4444, 0.0
        %v4502 = vmax.f32 %v4446, 0.0
        %v4503 = vmax.f32 %v4448, 0.0
        %v4504 = vmax.f32 %v4452, 0.0
        %v4505 = vmax.f32 %v4454, 0.0
        %v4506 = vmax.f32 %v4456, 0.0
        %v4507 = vmax.f32 %v4458, 0.0
        %v4508 = vmax.f32 %v4462, 0.0
        %v4509 = vmax.f32 %v4464, 0.0
        %v4510 = vmax.f32 %v4466, 0.0
        %v4511 = vmax.f32 %v4468, 0.0
        %v4512 = vmax.f32 %v4472, 0.0
        %v4513 = vmax.f32 %v4474, 0.0
        %v4514 = vmax.f32 %v4476, 0.0
        %v4515 = vmax.f32 %v4478, 0.0
        %v4516 = vadd.f32 %v4480, %v2625
        %v4517 = vadd.f32 %v4481, %v2626
        %v4518 = vadd.f32 %v4482, %v2627
        %v4519 = vadd.f32 %v4483, %v2628
        %v4520 = vadd.f32 %v4484, %v2629
        %v4521 = vadd.f32 %v4485, %v2630
        %v4522 = vadd.f32 %v4486, %v2631
        %v4523 = vadd.f32 %v4487, %v2632
        %v4524 = vadd.f32 %v4488, %v2633
        %v4525 = vadd.f32 %v4489, %v2634
        %v4526 = vadd.f32 %v4490, %v2635
        %v4527 = vadd.f32 %v4491, %v2636
        %v4528 = vadd.f32 %v4492, %v2637
        %v4529 = vadd.f32 %v4493, %v2638
        %v4530 = vadd.f32 %v4494, %v2639
        %v4531 = vadd.f32 %v4495, %v2640
        %v4532 = vadd.f32 %v4496, %v2641
        %v4533 = vadd.f32 %v4497, %v2642
        %v4534 = vadd.f32 %v4498, %v2643
        %v4535 = vadd.f32 %v4499, %v2644
        %v4536 = vadd.f32 %v4500, %v2645
        %v4537 = vadd.f32 %v4501, %v2646
        %v4538 = vadd.f32 %v4502, %v2647
        %v4539 = vadd.f32 %v4503, %v2648
        %v4540 = vadd.f32 %v4504, %v2649
        %v4541 = vadd.f32 %v4505, %v2650
        %v4542 = vadd.f32 %v4506, %v2651
        %v4543 = vadd.f32 %v4507, %v2652
        %v4544 = vadd.f32 %v4508, %v2653
        %v4545 = vadd.f32 %v4509, %v2654
        %v4546 = vadd.f32 %v4510, %v2655
        %v4547 = vadd.f32 %v4511, %v2656
        %v4548 = vadd.f32 %v4512, %v2657
        %v4549 = vadd.f32 %v4513, %v2658
        %v4550 = vadd.f32 %v4514, %v2659
        %v4551 = vadd.f32 %v4515, %v2660
        %v4552 = vpack.c.bf16 %v4518, %v4516
        %v4553 = vpack.c.bf16 %v4519, %v4517
        %v4554 = vpack.c.bf16 %v4522, %v4520
        %v4555 = vpack.c.bf16 %v4523, %v4521
        %v4556 = vpack.c.bf16 %v4526, %v4524
        %v4557 = vpack.c.bf16 %v4527, %v4525
        %v4558 = vpack.c.bf16 %v4530, %v4528
        %v4559 = vpack.c.bf16 %v4531, %v4529
        %v4560 = vpack.c.bf16 %v4534, %v4532
        %v4561 = vpack.c.bf16 %v4535, %v4533
        %v4562 = vpack.c.bf16 %v4538, %v4536
        %v4563 = vpack.c.bf16 %v4539, %v4537
        %v4564 = vpack.c.bf16 %v4542, %v4540
        %v4565 = vpack.c.bf16 %v4543, %v4541
        %v4566 = vpack.c.bf16 %v4546, %v4544
        %v4567 = vpack.c.bf16 %v4547, %v4545
        %v4568 = vpack.c.bf16 %v4550, %v4548
        %v4569 = vpack.c.bf16 %v4551, %v4549
        %v4570 = vld [vmem:[#allocation12] sm:$0xff]
        %v4571 = vld [vmem:[#allocation12 + $0x8] sm:$0xff]
        %v4572 = vld [vmem:[#allocation12 + $0x10] sm:$0xff]
        %v4573 = vld [vmem:[#allocation12 + $0x18] sm:$0xff]
        %v4574 = vld [vmem:[#allocation12 + $0x20] sm:$0xff]
        %v4575 = vld [vmem:[#allocation12 + $0x28] sm:$0xff]
        %v4576 = vld [vmem:[#allocation12 + $0x30] sm:$0xff]
        %v4577 = vld [vmem:[#allocation12 + $0x38] sm:$0xff]
        %v4578 = vld [vmem:[#allocation12 + $0x40] sm:$0xff]
        %v4579 = vld [vmem:[#allocation12 + $0x48] sm:$0xff]
        %v4580 = vld [vmem:[#allocation12 + $0x50] sm:$0xff]
        %v4581 = vld [vmem:[#allocation12 + $0x58] sm:$0xff]
        %v4582 = vld [vmem:[#allocation12 + $0x60] sm:$0xff]
        %v4583 = vld [vmem:[#allocation12 + $0x68] sm:$0xff]
        %v4584 = vld [vmem:[#allocation12 + $0x70] sm:$0xff]
        %v4585 = vld [vmem:[#allocation12 + $0x78] sm:$0xff]
        %v4586 = vld [vmem:[#allocation12 + $0x80] sm:$0xff]
        %v4587 = vld [vmem:[#allocation12 + $0x88] sm:$0xff]
        %v4588 = vld [vmem:[#allocation12 + $0x90] sm:$0xff]
        %v4589 = vld [vmem:[#allocation12 + $0x98] sm:$0xff]
        %v4590 = vld [vmem:[#allocation12 + $0xa0] sm:$0xff]
        %v4591 = vld [vmem:[#allocation12 + $0xa8] sm:$0xff]
        %v4592 = vld [vmem:[#allocation12 + $0xb0] sm:$0xff]
        %v4593 = vld [vmem:[#allocation12 + $0xb8] sm:$0xff]
        %v4594 = vld [vmem:[#allocation12 + $0xc0] sm:$0xff]
        %v4595 = vld [vmem:[#allocation12 + $0xc8] sm:$0xff]
        %v4596 = vld [vmem:[#allocation12 + $0xd0] sm:$0xff]
        %v4597 = vld [vmem:[#allocation12 + $0xd8] sm:$0xff]
        %v4598 = vld [vmem:[#allocation12 + $0xe0] sm:$0xff]
        %v4599 = vld [vmem:[#allocation12 + $0xe8] sm:$0xff]
        %v4600 = vld [vmem:[#allocation12 + $0xf0] sm:$0xff]
        %v4601 = vld [vmem:[#allocation12 + $0xf8] sm:$0xff]
        %v4602 = vlaneseq
        %v4603 = vshrl.u32 %v4602, 7
        %v4604 = vsub.s32 0, %v4603
        %v4605 = vrot.slane %v519, %v4604
        %v4606 = vlaneseq
        %v4607 = vshrl.u32 %v4606, 7
        %v4608 = vsub.s32 0, %v4607
        %v4609 = vrot.slane %v520, %v4608
        %v4642 = vunpack.c.l.b16 %v4570
        %v4643 = vunpack.c.h.b16 %v4570
        %v4644 = vunpack.c.l.b16 %v4571
        %v4645 = vunpack.c.h.b16 %v4571
        %v4646 = vunpack.c.l.b16 %v4572
        %v4647 = vunpack.c.h.b16 %v4572
        %v4648 = vunpack.c.l.b16 %v4573
        %v4649 = vunpack.c.h.b16 %v4573
        %v4650 = vunpack.c.l.b16 %v4574
        %v4651 = vunpack.c.h.b16 %v4574
        %v4652 = vunpack.c.l.b16 %v4575
        %v4653 = vunpack.c.h.b16 %v4575
        %v4654 = vunpack.c.l.b16 %v4576
        %v4655 = vunpack.c.h.b16 %v4576
        %v4656 = vunpack.c.l.b16 %v4577
        %v4657 = vunpack.c.h.b16 %v4577
        %v4658 = vunpack.c.l.b16 %v4578
        %v4659 = vunpack.c.h.b16 %v4578
        %v4660 = vunpack.c.l.b16 %v4579
        %v4661 = vunpack.c.h.b16 %v4579
        %v4662 = vunpack.c.l.b16 %v4580
        %v4663 = vunpack.c.h.b16 %v4580
        %v4664 = vunpack.c.l.b16 %v4581
        %v4665 = vunpack.c.h.b16 %v4581
        %v4666 = vunpack.c.l.b16 %v4582
        %v4667 = vunpack.c.h.b16 %v4582
        %v4668 = vunpack.c.l.b16 %v4583
        %v4669 = vunpack.c.h.b16 %v4583
        %v4670 = vunpack.c.l.b16 %v4584
        %v4671 = vunpack.c.h.b16 %v4584
        %v4672 = vunpack.c.l.b16 %v4585
        %v4673 = vunpack.c.h.b16 %v4585
        %v4674 = vunpack.c.l.b16 %v4586
        %v4675 = vunpack.c.h.b16 %v4586
        %v4676 = vunpack.c.l.b16 %v4587
        %v4677 = vunpack.c.h.b16 %v4587
        %v4678 = vunpack.c.l.b16 %v4588
        %v4679 = vunpack.c.h.b16 %v4588
        %v4680 = vunpack.c.l.b16 %v4589
        %v4681 = vunpack.c.h.b16 %v4589
        %v4682 = vunpack.c.l.b16 %v4590
        %v4683 = vunpack.c.h.b16 %v4590
        %v4684 = vunpack.c.l.b16 %v4591
        %v4685 = vunpack.c.h.b16 %v4591
        %v4686 = vunpack.c.l.b16 %v4592
        %v4687 = vunpack.c.h.b16 %v4592
        %v4688 = vunpack.c.l.b16 %v4593
        %v4689 = vunpack.c.h.b16 %v4593
        %v4690 = vunpack.c.l.b16 %v4594
        %v4691 = vunpack.c.h.b16 %v4594
        %v4692 = vunpack.c.l.b16 %v4595
        %v4693 = vunpack.c.h.b16 %v4595
        %v4694 = vunpack.c.l.b16 %v4596
        %v4695 = vunpack.c.h.b16 %v4596
        %v4696 = vunpack.c.l.b16 %v4597
        %v4697 = vunpack.c.h.b16 %v4597
        %v4698 = vunpack.c.l.b16 %v4598
        %v4699 = vunpack.c.h.b16 %v4598
        %v4700 = vunpack.c.l.b16 %v4599
        %v4701 = vunpack.c.h.b16 %v4599
        %v4702 = vunpack.c.l.b16 %v4600
        %v4703 = vunpack.c.h.b16 %v4600
        %v4704 = vunpack.c.l.b16 %v4601
        %v4705 = vunpack.c.h.b16 %v4601
        %v4706 = vpack.c.b16 %v4644, %v4642
        %v4707 = vpack.c.b16 %v4645, %v4643
        %v4708 = vpack.c.b16 %v4648, %v4646
        %v4709 = vpack.c.b16 %v4649, %v4647
        %v4710 = vpack.c.b16 %v4652, %v4650
        %v4711 = vpack.c.b16 %v4653, %v4651
        %v4712 = vpack.c.b16 %v4656, %v4654
        %v4713 = vpack.c.b16 %v4657, %v4655
        %v4714 = vpack.c.b16 %v4660, %v4658
        %v4715 = vpack.c.b16 %v4661, %v4659
        %v4716 = vpack.c.b16 %v4664, %v4662
        %v4717 = vpack.c.b16 %v4665, %v4663
        %v4718 = vpack.c.b16 %v4668, %v4666
        %v4719 = vpack.c.b16 %v4669, %v4667
        %v4720 = vpack.c.b16 %v4672, %v4670
        %v4721 = vpack.c.b16 %v4673, %v4671
        %v4722 = vpack.c.b16 %v4676, %v4674
        %v4723 = vpack.c.b16 %v4677, %v4675
        %v4724 = vpack.c.b16 %v4680, %v4678
        %v4725 = vpack.c.b16 %v4681, %v4679
        %v4726 = vpack.c.b16 %v4684, %v4682
        %v4727 = vpack.c.b16 %v4685, %v4683
        %v4728 = vpack.c.b16 %v4688, %v4686
        %v4729 = vpack.c.b16 %v4689, %v4687
        %v4730 = vpack.c.b16 %v4692, %v4690
        %v4731 = vpack.c.b16 %v4693, %v4691
        %v4732 = vpack.c.b16 %v4696, %v4694
        %v4733 = vpack.c.b16 %v4697, %v4695
        %v4734 = vpack.c.b16 %v4700, %v4698
        %v4735 = vpack.c.b16 %v4701, %v4699
        %v4736 = vpack.c.b16 %v4704, %v4702
        %v4737 = vpack.c.b16 %v4705, %v4703
        %4770 = vmatprep.subr.bf16.mxu0 %v4707
        %4771 = vmatpush1.bf16.msra.mxu0 %v4706
        %4772 = vmatprep.subr.bf16.mxu0 %v4709
        %4773 = vmatpush1.bf16.msra.mxu0 %v4708
        %4774 = vmatprep.subr.bf16.mxu0 %v4711
        %4775 = vmatpush1.bf16.msra.mxu0 %v4710
        %4776 = vmatprep.subr.bf16.mxu0 %v4713
        %4777 = vmatpush1.bf16.msra.mxu0 %v4712
        %4778 = vmatprep.subr.bf16.mxu0 %v4715
        %4779 = vmatpush1.bf16.msra.mxu0 %v4714
        %4780 = vmatprep.subr.bf16.mxu0 %v4717
        %4781 = vmatpush1.bf16.msra.mxu0 %v4716
        %4782 = vmatprep.subr.bf16.mxu0 %v4719
        %4783 = vmatpush1.bf16.msra.mxu0 %v4718
        %4784 = vmatprep.subr.bf16.mxu0 %v4721
        %4785 = vmatpush1.bf16.msra.mxu0 %v4720
        %4786 = vmatprep.subr.bf16.mxu0 %v4723
        %4787 = vmatpush1.bf16.msra.mxu0 %v4722
        %4788 = vmatprep.subr.bf16.mxu0 %v4725
        %4789 = vmatpush1.bf16.msra.mxu0 %v4724
        %4790 = vmatprep.subr.bf16.mxu0 %v4727
        %4791 = vmatpush1.bf16.msra.mxu0 %v4726
        %4792 = vmatprep.subr.bf16.mxu0 %v4729
        %4793 = vmatpush1.bf16.msra.mxu0 %v4728
        %4794 = vmatprep.subr.bf16.mxu0 %v4731
        %4795 = vmatpush1.bf16.msra.mxu0 %v4730
        %4796 = vmatprep.subr.bf16.mxu0 %v4733
        %4797 = vmatpush1.bf16.msra.mxu0 %v4732
        %4798 = vmatprep.subr.bf16.mxu0 %v4735
        %4799 = vmatpush1.bf16.msra.mxu0 %v4734
        %4800 = vmatprep.subr.bf16.mxu0 %v4737
        %4801 = vmatpush1.bf16.msra.mxu0 %v4736
        %4802 = vmatprep.mubr.bf16.mxu0 %v4553
        %4803 = vmatmul.mubr.bf16.gmra.mrb[0].mxu0 %v4552
        %v4804 = vpop.f32.mrb[0].mxu0
        %v4805 = vadd.f32 %v4605, %v4804
        %v4806 = vpop.f32.mrb[0].mxu0
        %v4807 = vadd.f32 %v4609, %v4806
        %v4808 = vpop.f32.mrb[0].mxu0
        %v4809 = vadd.f32 %v4605, %v4808
        %v4810 = vpop.f32.mrb[0].mxu0
        %v4811 = vadd.f32 %v4609, %v4810
        %4812 = vmatprep.mubr.bf16.mxu0 %v4555
        %4813 = vmatmul.mubr.bf16.gmra.mrb[0].mxu0 %v4554
        %v4814 = vpop.f32.mrb[0].mxu0
        %v4815 = vadd.f32 %v4605, %v4814
        %v4816 = vpop.f32.mrb[0].mxu0
        %v4817 = vadd.f32 %v4609, %v4816
        %v4818 = vpop.f32.mrb[0].mxu0
        %v4819 = vadd.f32 %v4605, %v4818
        %v4820 = vpop.f32.mrb[0].mxu0
        %v4821 = vadd.f32 %v4609, %v4820
        %4822 = vmatprep.mubr.bf16.mxu0 %v4557
        %4823 = vmatmul.mubr.bf16.gmra.mrb[0].mxu0 %v4556
        %v4824 = vpop.f32.mrb[0].mxu0
        %v4825 = vadd.f32 %v4605, %v4824
        %v4826 = vpop.f32.mrb[0].mxu0
        %v4827 = vadd.f32 %v4609, %v4826
        %v4828 = vpop.f32.mrb[0].mxu0
        %v4829 = vadd.f32 %v4605, %v4828
        %v4830 = vpop.f32.mrb[0].mxu0
        %v4831 = vadd.f32 %v4609, %v4830
        %4832 = vmatprep.mubr.bf16.mxu0 %v4559
        %4833 = vmatmul.mubr.bf16.gmra.mrb[0].mxu0 %v4558
        %v4834 = vpop.f32.mrb[0].mxu0
        %v4835 = vadd.f32 %v4605, %v4834
        %v4836 = vpop.f32.mrb[0].mxu0
        %v4837 = vadd.f32 %v4609, %v4836
        %v4838 = vpop.f32.mrb[0].mxu0
        %v4839 = vadd.f32 %v4605, %v4838
        %v4840 = vpop.f32.mrb[0].mxu0
        %v4841 = vadd.f32 %v4609, %v4840
        %4842 = vmatprep.mubr.bf16.mxu0 %v4561
        %4843 = vmatmul.mubr.bf16.gmra.mrb[0].mxu0 %v4560
        %v4844 = vpop.f32.mrb[0].mxu0
        %v4845 = vadd.f32 %v4605, %v4844
        %v4846 = vpop.f32.mrb[0].mxu0
        %v4847 = vadd.f32 %v4609, %v4846
        %v4848 = vpop.f32.mrb[0].mxu0
        %v4849 = vadd.f32 %v4605, %v4848
        %v4850 = vpop.f32.mrb[0].mxu0
        %v4851 = vadd.f32 %v4609, %v4850
        %4852 = vmatprep.mubr.bf16.mxu0 %v4563
        %4853 = vmatmul.mubr.bf16.gmra.mrb[0].mxu0 %v4562
        %v4854 = vpop.f32.mrb[0].mxu0
        %v4855 = vadd.f32 %v4605, %v4854
        %v4856 = vpop.f32.mrb[0].mxu0
        %v4857 = vadd.f32 %v4609, %v4856
        %v4858 = vpop.f32.mrb[0].mxu0
        %v4859 = vadd.f32 %v4605, %v4858
        %v4860 = vpop.f32.mrb[0].mxu0
        %v4861 = vadd.f32 %v4609, %v4860
        %4862 = vmatprep.mubr.bf16.mxu0 %v4565
        %4863 = vmatmul.mubr.bf16.gmra.mrb[0].mxu0 %v4564
        %v4864 = vpop.f32.mrb[0].mxu0
        %v4865 = vadd.f32 %v4605, %v4864
        %v4866 = vpop.f32.mrb[0].mxu0
        %v4867 = vadd.f32 %v4609, %v4866
        %v4868 = vpop.f32.mrb[0].mxu0
        %v4869 = vadd.f32 %v4605, %v4868
        %v4870 = vpop.f32.mrb[0].mxu0
        %v4871 = vadd.f32 %v4609, %v4870
        %4872 = vmatprep.mubr.bf16.mxu0 %v4567
        %4873 = vmatmul.mubr.bf16.gmra.mrb[0].mxu0 %v4566
        %v4874 = vpop.f32.mrb[0].mxu0
        %v4875 = vadd.f32 %v4605, %v4874
        %v4876 = vpop.f32.mrb[0].mxu0
        %v4877 = vadd.f32 %v4609, %v4876
        %v4878 = vpop.f32.mrb[0].mxu0
        %v4879 = vadd.f32 %v4605, %v4878
        %v4880 = vpop.f32.mrb[0].mxu0
        %v4881 = vadd.f32 %v4609, %v4880
        %4882 = vmatprep.mubr.bf16.mxu0 %v4569
        %4883 = vmatmul.mubr.bf16.gmra.mrb[0].mxu0 %v4568
        %v4884 = vpop.f32.mrb[0].mxu0
        %v4885 = vadd.f32 %v4605, %v4884
        %v4886 = vpop.f32.mrb[0].mxu0
        %v4887 = vadd.f32 %v4609, %v4886
        %v4888 = vpop.f32.mrb[0].mxu0
        %v4889 = vadd.f32 %v4605, %v4888
        %v4890 = vpop.f32.mrb[0].mxu0
        %v4891 = vadd.f32 %v4609, %v4890
        %4892 = vdwg.mxu0
        %v4893 = vmax.f32 %v4805, 0.0
        %v4894 = vmax.f32 %v4807, 0.0
        %v4895 = vmax.f32 %v4809, 0.0
        %v4896 = vmax.f32 %v4811, 0.0
        %v4897 = vmax.f32 %v4815, 0.0
        %v4898 = vmax.f32 %v4817, 0.0
        %v4899 = vmax.f32 %v4819, 0.0
        %v4900 = vmax.f32 %v4821, 0.0
        %v4901 = vmax.f32 %v4825, 0.0
        %v4902 = vmax.f32 %v4827, 0.0
        %v4903 = vmax.f32 %v4829, 0.0
        %v4904 = vmax.f32 %v4831, 0.0
        %v4905 = vmax.f32 %v4835, 0.0
        %v4906 = vmax.f32 %v4837, 0.0
        %v4907 = vmax.f32 %v4839, 0.0
        %v4908 = vmax.f32 %v4841, 0.0
        %v4909 = vmax.f32 %v4845, 0.0
        %v4910 = vmax.f32 %v4847, 0.0
        %v4911 = vmax.f32 %v4849, 0.0
        %v4912 = vmax.f32 %v4851, 0.0
        %v4913 = vmax.f32 %v4855, 0.0
        %v4914 = vmax.f32 %v4857, 0.0
        %v4915 = vmax.f32 %v4859, 0.0
        %v4916 = vmax.f32 %v4861, 0.0
        %v4917 = vmax.f32 %v4865, 0.0
        %v4918 = vmax.f32 %v4867, 0.0
        %v4919 = vmax.f32 %v4869, 0.0
        %v4920 = vmax.f32 %v4871, 0.0
        %v4921 = vmax.f32 %v4875, 0.0
        %v4922 = vmax.f32 %v4877, 0.0
        %v4923 = vmax.f32 %v4879, 0.0
        %v4924 = vmax.f32 %v4881, 0.0
        %v4925 = vmax.f32 %v4885, 0.0
        %v4926 = vmax.f32 %v4887, 0.0
        %v4927 = vmax.f32 %v4889, 0.0
        %v4928 = vmax.f32 %v4891, 0.0
        %v4929 = vadd.f32 %v4893, %v4895
        %v4930 = vadd.f32 %v4894, %v4896
        %v4931 = vmul.f32 %v4929, 0.5
        %v4932 = vmul.f32 %v4930, 0.5
        %v4933 = vpack.c.bf16 %v4931, %v4931
        %v4934 = vpack.c.bf16 %v4932, %v4932
        %v4935 = vadd.f32 %v4897, %v4899
        %v4936 = vadd.f32 %v4898, %v4900
        %v4937 = vmul.f32 %v4935, 0.5
        %v4938 = vmul.f32 %v4936, 0.5
        %v4939 = vpack.c.bf16 %v4937, %v4937
        %v4940 = vpack.c.bf16 %v4938, %v4938
        %v4941 = vadd.f32 %v4901, %v4903
        %v4942 = vadd.f32 %v4902, %v4904
        %v4943 = vmul.f32 %v4941, 0.5
        %v4944 = vmul.f32 %v4942, 0.5
        %v4945 = vpack.c.bf16 %v4943, %v4943
        %v4946 = vpack.c.bf16 %v4944, %v4944
        %v4947 = vadd.f32 %v4905, %v4907
        %v4948 = vadd.f32 %v4906, %v4908
        %v4949 = vmul.f32 %v4947, 0.5
        %v4950 = vmul.f32 %v4948, 0.5
        %v4951 = vpack.c.bf16 %v4949, %v4949
        %v4952 = vpack.c.bf16 %v4950, %v4950
        %v4953 = vadd.f32 %v4909, %v4911
        %v4954 = vadd.f32 %v4910, %v4912
        %v4955 = vmul.f32 %v4953, 0.5
        %v4956 = vmul.f32 %v4954, 0.5
        %v4957 = vpack.c.bf16 %v4955, %v4955
        %v4958 = vpack.c.bf16 %v4956, %v4956
        %v4959 = vadd.f32 %v4913, %v4915
        %v4960 = vadd.f32 %v4914, %v4916
        %v4961 = vmul.f32 %v4959, 0.5
        %v4962 = vmul.f32 %v4960, 0.5
        %v4963 = vpack.c.bf16 %v4961, %v4961
        %v4964 = vpack.c.bf16 %v4962, %v4962
        %v4965 = vadd.f32 %v4917, %v4919
        %v4966 = vadd.f32 %v4918, %v4920
        %v4967 = vmul.f32 %v4965, 0.5
        %v4968 = vmul.f32 %v4966, 0.5
        %v4969 = vpack.c.bf16 %v4967, %v4967
        %v4970 = vpack.c.bf16 %v4968, %v4968
        %v4971 = vadd.f32 %v4921, %v4923
        %v4972 = vadd.f32 %v4922, %v4924
        %v4973 = vmul.f32 %v4971, 0.5
        %v4974 = vmul.f32 %v4972, 0.5
        %v4975 = vpack.c.bf16 %v4973, %v4973
        %v4976 = vpack.c.bf16 %v4974, %v4974
        %v4977 = vadd.f32 %v4925, %v4927
        %v4978 = vadd.f32 %v4926, %v4928
        %v4979 = vmul.f32 %v4977, 0.5
        %v4980 = vmul.f32 %v4978, 0.5
        %v4981 = vpack.c.bf16 %v4979, %v4979
        %v4982 = vpack.c.bf16 %v4980, %v4980
        %v4983 = vld [vmem:[%s10] sm:$0xf]
        %v4984 = vld [vmem:[%s10 + $0x4] sm:$0xf]
        %v4985 = vld [vmem:[%s10 + $0x8] sm:$0xf]
        %v4986 = vld [vmem:[%s10 + $0xc] sm:$0xf]
        %v4987 = vld [vmem:[%s10 + $0x10] sm:$0xf]
        %v4988 = vld [vmem:[%s10 + $0x14] sm:$0xf]
        %v4989 = vld [vmem:[%s10 + $0x18] sm:$0xf]
        %v4990 = vld [vmem:[%s10 + $0x1c] sm:$0xf]
        %v4991 = vld [vmem:[%s10 + $0x20] sm:$0xf]
        %v4992 = vld [vmem:[%s10 + $0x24] sm:$0xf]
        %v4993 = vld [vmem:[%s10 + $0x28] sm:$0xf]
        %v4994 = vld [vmem:[%s10 + $0x2c] sm:$0xf]
        %v4995 = vld [vmem:[%s10 + $0x30] sm:$0xf]
        %v4996 = vld [vmem:[%s10 + $0x34] sm:$0xf]
        %v4997 = vld [vmem:[%s10 + $0x38] sm:$0xf]
        %v4998 = vld [vmem:[%s10 + $0x3c] sm:$0xf]
        %v4999 = vld [vmem:[%s10 + $0x40] sm:$0xf]
        %v5000 = vld [vmem:[%s10 + $0x44] sm:$0xf]
        %v5001 = vld [vmem:[%s10 + $0x48] sm:$0xf]
        %v5002 = vld [vmem:[%s10 + $0x4c] sm:$0xf]
        %v5003 = vld [vmem:[%s10 + $0x50] sm:$0xf]
        %v5004 = vld [vmem:[%s10 + $0x54] sm:$0xf]
        %v5005 = vld [vmem:[%s10 + $0x58] sm:$0xf]
        %v5006 = vld [vmem:[%s10 + $0x5c] sm:$0xf]
        %v5007 = vld [vmem:[%s10 + $0x60] sm:$0xf]
        %v5008 = vld [vmem:[%s10 + $0x64] sm:$0xf]
        %v5009 = vld [vmem:[%s10 + $0x68] sm:$0xf]
        %v5010 = vld [vmem:[%s10 + $0x6c] sm:$0xf]
        %v5011 = vld [vmem:[%s10 + $0x70] sm:$0xf]
        %v5012 = vld [vmem:[%s10 + $0x74] sm:$0xf]
        %v5013 = vld [vmem:[%s10 + $0x78] sm:$0xf]
        %v5014 = vld [vmem:[%s10 + $0x7c] sm:$0xf]
        %v5015 = vld [vmem:[%s10 + $0x80] sm:$0xf]
        %v5016 = vld [vmem:[%s10 + $0x84] sm:$0xf]
        %v5017 = vld [vmem:[%s10 + $0x88] sm:$0xf]
        %v5018 = vld [vmem:[%s10 + $0x8c] sm:$0xf]
        %v5019 = vld [vmem:[%s10 + $0x90] sm:$0xf]
        %v5020 = vld [vmem:[%s10 + $0x94] sm:$0xf]
        %v5021 = vld [vmem:[%s10 + $0x98] sm:$0xf]
        %v5022 = vld [vmem:[%s10 + $0x9c] sm:$0xf]
        %v5023 = vld [vmem:[%s10 + $0xa0] sm:$0xf]
        %v5024 = vld [vmem:[%s10 + $0xa4] sm:$0xf]
        %v5025 = vld [vmem:[%s10 + $0xa8] sm:$0xf]
        %v5026 = vld [vmem:[%s10 + $0xac] sm:$0xf]
        %v5027 = vld [vmem:[%s10 + $0xb0] sm:$0xf]
        %v5028 = vld [vmem:[%s10 + $0xb4] sm:$0xf]
        %v5029 = vld [vmem:[%s10 + $0xb8] sm:$0xf]
        %v5030 = vld [vmem:[%s10 + $0xbc] sm:$0xf]
        %v5031 = vld [vmem:[%s10 + $0xc0] sm:$0xf]
        %v5032 = vld [vmem:[%s10 + $0xc4] sm:$0xf]
        %v5033 = vld [vmem:[%s10 + $0xc8] sm:$0xf]
        %v5034 = vld [vmem:[%s10 + $0xcc] sm:$0xf]
        %v5035 = vld [vmem:[%s10 + $0xd0] sm:$0xf]
        %v5036 = vld [vmem:[%s10 + $0xd4] sm:$0xf]
        %v5037 = vld [vmem:[%s10 + $0xd8] sm:$0xf]
        %v5038 = vld [vmem:[%s10 + $0xdc] sm:$0xf]
        %v5039 = vld [vmem:[%s10 + $0xe0] sm:$0xf]
        %v5040 = vld [vmem:[%s10 + $0xe4] sm:$0xf]
        %v5041 = vld [vmem:[%s10 + $0xe8] sm:$0xf]
        %v5042 = vld [vmem:[%s10 + $0xec] sm:$0xf]
        %v5043 = vld [vmem:[%s10 + $0xf0] sm:$0xf]
        %v5044 = vld [vmem:[%s10 + $0xf4] sm:$0xf]
        %v5045 = vld [vmem:[%s10 + $0xf8] sm:$0xf]
        %v5046 = vld [vmem:[%s10 + $0xfc] sm:$0xf]
        %v5047 = vld [vmem:[%s10 + $0x100] sm:$0xf]
        %v5048 = vld [vmem:[%s10 + $0x104] sm:$0xf]
        %v5049 = vld [vmem:[%s10 + $0x108] sm:$0xf]
        %v5050 = vld [vmem:[%s10 + $0x10c] sm:$0xf]
        %v5051 = vld [vmem:[%s10 + $0x110] sm:$0xf]
        %v5052 = vld [vmem:[%s10 + $0x114] sm:$0xf]
        %v5053 = vld [vmem:[%s10 + $0x118] sm:$0xf]
        %v5054 = vld [vmem:[%s10 + $0x11c] sm:$0xf]
        %v5055 = vld [vmem:[%s10 + $0x120] sm:$0xf]
        %v5056 = vld [vmem:[%s10 + $0x124] sm:$0xf]
        %v5057 = vld [vmem:[%s10 + $0x128] sm:$0xf]
        %v5058 = vld [vmem:[%s10 + $0x12c] sm:$0xf]
        %v5059 = vld [vmem:[%s10 + $0x130] sm:$0xf]
        %v5060 = vld [vmem:[%s10 + $0x134] sm:$0xf]
        %v5061 = vld [vmem:[%s10 + $0x138] sm:$0xf]
        %v5062 = vld [vmem:[%s10 + $0x13c] sm:$0xf]
        %v5063 = vld [vmem:[%s10 + $0x140] sm:$0xf]
        %v5064 = vld [vmem:[%s10 + $0x144] sm:$0xf]
        %v5065 = vld [vmem:[%s10 + $0x148] sm:$0xf]
        %v5066 = vld [vmem:[%s10 + $0x14c] sm:$0xf]
        %v5067 = vld [vmem:[%s10 + $0x150] sm:$0xf]
        %v5068 = vld [vmem:[%s10 + $0x154] sm:$0xf]
        %v5069 = vld [vmem:[%s10 + $0x158] sm:$0xf]
        %v5070 = vld [vmem:[%s10 + $0x15c] sm:$0xf]
        %v5071 = vld [vmem:[%s10 + $0x160] sm:$0xf]
        %v5072 = vld [vmem:[%s10 + $0x164] sm:$0xf]
        %v5073 = vld [vmem:[%s10 + $0x168] sm:$0xf]
        %v5074 = vld [vmem:[%s10 + $0x16c] sm:$0xf]
        %v5075 = vld [vmem:[%s10 + $0x170] sm:$0xf]
        %v5076 = vld [vmem:[%s10 + $0x174] sm:$0xf]
        %v5077 = vld [vmem:[%s10 + $0x178] sm:$0xf]
        %v5078 = vld [vmem:[%s10 + $0x17c] sm:$0xf]
        %v5079 = vld [vmem:[%s10 + $0x180] sm:$0xf]
        %v5080 = vld [vmem:[%s10 + $0x184] sm:$0xf]
        %v5081 = vld [vmem:[%s10 + $0x188] sm:$0xf]
        %v5082 = vld [vmem:[%s10 + $0x18c] sm:$0xf]
        %v5083 = vld [vmem:[%s10 + $0x190] sm:$0xf]
        %v5084 = vld [vmem:[%s10 + $0x194] sm:$0xf]
        %v5085 = vld [vmem:[%s10 + $0x198] sm:$0xf]
        %v5086 = vld [vmem:[%s10 + $0x19c] sm:$0xf]
        %v5087 = vld [vmem:[%s10 + $0x1a0] sm:$0xf]
        %v5088 = vld [vmem:[%s10 + $0x1a4] sm:$0xf]
        %v5089 = vld [vmem:[%s10 + $0x1a8] sm:$0xf]
        %v5090 = vld [vmem:[%s10 + $0x1ac] sm:$0xf]
        %v5091 = vld [vmem:[%s10 + $0x1b0] sm:$0xf]
        %v5092 = vld [vmem:[%s10 + $0x1b4] sm:$0xf]
        %v5093 = vld [vmem:[%s10 + $0x1b8] sm:$0xf]
        %v5094 = vld [vmem:[%s10 + $0x1bc] sm:$0xf]
        %v5095 = vld [vmem:[%s10 + $0x1c0] sm:$0xf]
        %v5096 = vld [vmem:[%s10 + $0x1c4] sm:$0xf]
        %v5097 = vld [vmem:[%s10 + $0x1c8] sm:$0xf]
        %v5098 = vld [vmem:[%s10 + $0x1cc] sm:$0xf]
        %v5099 = vld [vmem:[%s10 + $0x1d0] sm:$0xf]
        %v5100 = vld [vmem:[%s10 + $0x1d4] sm:$0xf]
        %v5101 = vld [vmem:[%s10 + $0x1d8] sm:$0xf]
        %v5102 = vld [vmem:[%s10 + $0x1dc] sm:$0xf]
        %v5103 = vld [vmem:[%s10 + $0x1e0] sm:$0xf]
        %v5104 = vld [vmem:[%s10 + $0x1e4] sm:$0xf]
        %v5105 = vld [vmem:[%s10 + $0x1e8] sm:$0xf]
        %v5106 = vld [vmem:[%s10 + $0x1ec] sm:$0xf]
        %v5107 = vld [vmem:[%s10 + $0x1f0] sm:$0xf]
        %v5108 = vld [vmem:[%s10 + $0x1f4] sm:$0xf]
        %v5109 = vld [vmem:[%s10 + $0x1f8] sm:$0xf]
        %v5110 = vld [vmem:[%s10 + $0x1fc] sm:$0xf]
        %v5111 = vld [vmem:[%s10 + $0x200] sm:$0xf]
        %v5112 = vld [vmem:[%s10 + $0x204] sm:$0xf]
        %v5113 = vld [vmem:[%s10 + $0x208] sm:$0xf]
        %v5114 = vld [vmem:[%s10 + $0x20c] sm:$0xf]
        %v5115 = vld [vmem:[%s10 + $0x210] sm:$0xf]
        %v5116 = vld [vmem:[%s10 + $0x214] sm:$0xf]
        %v5117 = vld [vmem:[%s10 + $0x218] sm:$0xf]
        %v5118 = vld [vmem:[%s10 + $0x21c] sm:$0xf]
        %v5119 = vld [vmem:[%s10 + $0x220] sm:$0xf]
        %v5120 = vld [vmem:[%s10 + $0x224] sm:$0xf]
        %v5121 = vld [vmem:[%s10 + $0x228] sm:$0xf]
        %v5122 = vld [vmem:[%s10 + $0x22c] sm:$0xf]
        %v5123 = vld [vmem:[%s10 + $0x230] sm:$0xf]
        %v5124 = vld [vmem:[%s10 + $0x234] sm:$0xf]
        %v5125 = vld [vmem:[%s10 + $0x238] sm:$0xf]
        %v5126 = vld [vmem:[%s10 + $0x23c] sm:$0xf]
        %v5127 = vld [vmem:[%s10 + $0x240] sm:$0xf]
        %v5128 = vld [vmem:[%s10 + $0x244] sm:$0xf]
        %v5129 = vld [vmem:[%s10 + $0x248] sm:$0xf]
        %v5130 = vld [vmem:[%s10 + $0x24c] sm:$0xf]
        %v5131 = vld [vmem:[%s10 + $0x250] sm:$0xf]
        %v5132 = vld [vmem:[%s10 + $0x254] sm:$0xf]
        %v5133 = vld [vmem:[%s10 + $0x258] sm:$0xf]
        %v5134 = vld [vmem:[%s10 + $0x25c] sm:$0xf]
        %v5135 = vld [vmem:[%s10 + $0x260] sm:$0xf]
        %v5136 = vld [vmem:[%s10 + $0x264] sm:$0xf]
        %v5137 = vld [vmem:[%s10 + $0x268] sm:$0xf]
        %v5138 = vld [vmem:[%s10 + $0x26c] sm:$0xf]
        %v5139 = vld [vmem:[%s10 + $0x270] sm:$0xf]
        %v5140 = vld [vmem:[%s10 + $0x274] sm:$0xf]
        %v5141 = vld [vmem:[%s10 + $0x278] sm:$0xf]
        %v5142 = vld [vmem:[%s10 + $0x27c] sm:$0xf]
        %v5143 = vld [vmem:[%s10 + $0x280] sm:$0xf]
        %v5144 = vld [vmem:[%s10 + $0x284] sm:$0xf]
        %v5145 = vld [vmem:[%s10 + $0x288] sm:$0xf]
        %v5146 = vld [vmem:[%s10 + $0x28c] sm:$0xf]
        %v5147 = vld [vmem:[%s10 + $0x290] sm:$0xf]
        %v5148 = vld [vmem:[%s10 + $0x294] sm:$0xf]
        %v5149 = vld [vmem:[%s10 + $0x298] sm:$0xf]
        %v5150 = vld [vmem:[%s10 + $0x29c] sm:$0xf]
        %v5151 = vld [vmem:[%s10 + $0x2a0] sm:$0xf]
        %v5152 = vld [vmem:[%s10 + $0x2a4] sm:$0xf]
        %v5153 = vld [vmem:[%s10 + $0x2a8] sm:$0xf]
        %v5154 = vld [vmem:[%s10 + $0x2ac] sm:$0xf]
        %v5155 = vld [vmem:[%s10 + $0x2b0] sm:$0xf]
        %v5156 = vld [vmem:[%s10 + $0x2b4] sm:$0xf]
        %v5157 = vld [vmem:[%s10 + $0x2b8] sm:$0xf]
        %v5158 = vld [vmem:[%s10 + $0x2bc] sm:$0xf]
        %v5159 = vld [vmem:[%s10 + $0x2c0] sm:$0xf]
        %v5160 = vld [vmem:[%s10 + $0x2c4] sm:$0xf]
        %v5161 = vld [vmem:[%s10 + $0x2c8] sm:$0xf]
        %v5162 = vld [vmem:[%s10 + $0x2cc] sm:$0xf]
        %v5163 = vld [vmem:[%s10 + $0x2d0] sm:$0xf]
        %v5164 = vld [vmem:[%s10 + $0x2d4] sm:$0xf]
        %v5165 = vld [vmem:[%s10 + $0x2d8] sm:$0xf]
        %v5166 = vld [vmem:[%s10 + $0x2dc] sm:$0xf]
        %v5167 = vld [vmem:[%s10 + $0x2e0] sm:$0xf]
        %v5168 = vld [vmem:[%s10 + $0x2e4] sm:$0xf]
        %v5169 = vld [vmem:[%s10 + $0x2e8] sm:$0xf]
        %v5170 = vld [vmem:[%s10 + $0x2ec] sm:$0xf]
        %v5171 = vld [vmem:[%s10 + $0x2f0] sm:$0xf]
        %v5172 = vld [vmem:[%s10 + $0x2f4] sm:$0xf]
        %v5173 = vld [vmem:[%s10 + $0x2f8] sm:$0xf]
        %v5174 = vld [vmem:[%s10 + $0x2fc] sm:$0xf]
        %v5175 = vld [vmem:[%s10 + $0x300] sm:$0xf]
        %v5176 = vld [vmem:[%s10 + $0x304] sm:$0xf]
        %v5177 = vld [vmem:[%s10 + $0x308] sm:$0xf]
        %v5178 = vld [vmem:[%s10 + $0x30c] sm:$0xf]
        %v5179 = vld [vmem:[%s10 + $0x310] sm:$0xf]
        %v5180 = vld [vmem:[%s10 + $0x314] sm:$0xf]
        %v5181 = vld [vmem:[%s10 + $0x318] sm:$0xf]
        %v5182 = vld [vmem:[%s10 + $0x31c] sm:$0xf]
        %v5183 = vld [vmem:[%s10 + $0x320] sm:$0xf]
        %v5184 = vld [vmem:[%s10 + $0x324] sm:$0xf]
        %v5185 = vld [vmem:[%s10 + $0x328] sm:$0xf]
        %v5186 = vld [vmem:[%s10 + $0x32c] sm:$0xf]
        %v5187 = vld [vmem:[%s10 + $0x330] sm:$0xf]
        %v5188 = vld [vmem:[%s10 + $0x334] sm:$0xf]
        %v5189 = vld [vmem:[%s10 + $0x338] sm:$0xf]
        %v5190 = vld [vmem:[%s10 + $0x33c] sm:$0xf]
        %v5191 = vld [vmem:[%s10 + $0x340] sm:$0xf]
        %v5192 = vld [vmem:[%s10 + $0x344] sm:$0xf]
        %v5193 = vld [vmem:[%s10 + $0x348] sm:$0xf]
        %v5194 = vld [vmem:[%s10 + $0x34c] sm:$0xf]
        %v5195 = vld [vmem:[%s10 + $0x350] sm:$0xf]
        %v5196 = vld [vmem:[%s10 + $0x354] sm:$0xf]
        %v5197 = vld [vmem:[%s10 + $0x358] sm:$0xf]
        %v5198 = vld [vmem:[%s10 + $0x35c] sm:$0xf]
        %v5199 = vld [vmem:[%s10 + $0x360] sm:$0xf]
        %v5200 = vld [vmem:[%s10 + $0x364] sm:$0xf]
        %v5201 = vld [vmem:[%s10 + $0x368] sm:$0xf]
        %v5202 = vld [vmem:[%s10 + $0x36c] sm:$0xf]
        %v5203 = vld [vmem:[%s10 + $0x370] sm:$0xf]
        %v5204 = vld [vmem:[%s10 + $0x374] sm:$0xf]
        %v5205 = vld [vmem:[%s10 + $0x378] sm:$0xf]
        %v5206 = vld [vmem:[%s10 + $0x37c] sm:$0xf]
        %v5207 = vld [vmem:[%s10 + $0x380] sm:$0xf]
        %v5208 = vld [vmem:[%s10 + $0x384] sm:$0xf]
        %v5209 = vld [vmem:[%s10 + $0x388] sm:$0xf]
        %v5210 = vld [vmem:[%s10 + $0x38c] sm:$0xf]
        %v5211 = vld [vmem:[%s10 + $0x390] sm:$0xf]
        %v5212 = vld [vmem:[%s10 + $0x394] sm:$0xf]
        %v5213 = vld [vmem:[%s10 + $0x398] sm:$0xf]
        %v5214 = vld [vmem:[%s10 + $0x39c] sm:$0xf]
        %v5215 = vld [vmem:[%s10 + $0x3a0] sm:$0xf]
        %v5216 = vld [vmem:[%s10 + $0x3a4] sm:$0xf]
        %v5217 = vld [vmem:[%s10 + $0x3a8] sm:$0xf]
        %v5218 = vld [vmem:[%s10 + $0x3ac] sm:$0xf]
        %v5219 = vld [vmem:[%s10 + $0x3b0] sm:$0xf]
        %v5220 = vld [vmem:[%s10 + $0x3b4] sm:$0xf]
        %v5221 = vld [vmem:[%s10 + $0x3b8] sm:$0xf]
        %v5222 = vld [vmem:[%s10 + $0x3bc] sm:$0xf]
        %v5223 = vld [vmem:[%s10 + $0x3c0] sm:$0xf]
        %v5224 = vld [vmem:[%s10 + $0x3c4] sm:$0xf]
        %v5225 = vld [vmem:[%s10 + $0x3c8] sm:$0xf]
        %v5226 = vld [vmem:[%s10 + $0x3cc] sm:$0xf]
        %v5227 = vld [vmem:[%s10 + $0x3d0] sm:$0xf]
        %v5228 = vld [vmem:[%s10 + $0x3d4] sm:$0xf]
        %v5229 = vld [vmem:[%s10 + $0x3d8] sm:$0xf]
        %v5230 = vld [vmem:[%s10 + $0x3dc] sm:$0xf]
        %v5231 = vld [vmem:[%s10 + $0x3e0] sm:$0xf]
        %v5232 = vld [vmem:[%s10 + $0x3e4] sm:$0xf]
        %v5233 = vld [vmem:[%s10 + $0x3e8] sm:$0xf]
        %v5234 = vld [vmem:[%s10 + $0x3ec] sm:$0xf]
        %v5235 = vld [vmem:[%s10 + $0x3f0] sm:$0xf]
        %v5236 = vld [vmem:[%s10 + $0x3f4] sm:$0xf]
        %v5237 = vld [vmem:[%s10 + $0x3f8] sm:$0xf]
        %v5238 = vld [vmem:[%s10 + $0x3fc] sm:$0xf]
        %v5239 = vld [vmem:[%s10 + $0x400] sm:$0xf]
        %v5240 = vld [vmem:[%s10 + $0x404] sm:$0xf]
        %v5241 = vld [vmem:[%s10 + $0x408] sm:$0xf]
        %v5242 = vld [vmem:[%s10 + $0x40c] sm:$0xf]
        %v5243 = vld [vmem:[%s10 + $0x410] sm:$0xf]
        %v5244 = vld [vmem:[%s10 + $0x414] sm:$0xf]
        %v5245 = vld [vmem:[%s10 + $0x418] sm:$0xf]
        %v5246 = vld [vmem:[%s10 + $0x41c] sm:$0xf]
        %v5247 = vld [vmem:[%s10 + $0x420] sm:$0xf]
        %v5248 = vld [vmem:[%s10 + $0x424] sm:$0xf]
        %v5249 = vld [vmem:[%s10 + $0x428] sm:$0xf]
        %v5250 = vld [vmem:[%s10 + $0x42c] sm:$0xf]
        %v5251 = vld [vmem:[%s10 + $0x430] sm:$0xf]
        %v5252 = vld [vmem:[%s10 + $0x434] sm:$0xf]
        %v5253 = vld [vmem:[%s10 + $0x438] sm:$0xf]
        %v5254 = vld [vmem:[%s10 + $0x43c] sm:$0xf]
        %v5255 = vld [vmem:[%s10 + $0x440] sm:$0xf]
        %v5256 = vld [vmem:[%s10 + $0x444] sm:$0xf]
        %v5257 = vld [vmem:[%s10 + $0x448] sm:$0xf]
        %v5258 = vld [vmem:[%s10 + $0x44c] sm:$0xf]
        %v5259 = vld [vmem:[%s10 + $0x450] sm:$0xf]
        %v5260 = vld [vmem:[%s10 + $0x454] sm:$0xf]
        %v5261 = vld [vmem:[%s10 + $0x458] sm:$0xf]
        %v5262 = vld [vmem:[%s10 + $0x45c] sm:$0xf]
        %v5263 = vld [vmem:[%s10 + $0x460] sm:$0xf]
        %v5264 = vld [vmem:[%s10 + $0x464] sm:$0xf]
        %v5265 = vld [vmem:[%s10 + $0x468] sm:$0xf]
        %v5266 = vld [vmem:[%s10 + $0x46c] sm:$0xf]
        %v5267 = vld [vmem:[%s10 + $0x470] sm:$0xf]
        %v5268 = vld [vmem:[%s10 + $0x474] sm:$0xf]
        %v5269 = vld [vmem:[%s10 + $0x478] sm:$0xf]
        %v5270 = vld [vmem:[%s10 + $0x47c] sm:$0xf]
        %v5271 = vlaneseq
        %v5272 = vshrl.u32 %v5271, 7
        %v5273 = vsub.s32 1, %v5272
        %v5274 = vrot.slane %v519, %v5273
        %v5563 = vunpack.c.l.b16 %v4983
        %v5564 = vunpack.c.l.b16 %v4984
        %v5565 = vunpack.c.l.b16 %v4985
        %v5566 = vunpack.c.l.b16 %v4986
        %v5567 = vunpack.c.l.b16 %v4987
        %v5568 = vunpack.c.l.b16 %v4988
        %v5569 = vunpack.c.l.b16 %v4989
        %v5570 = vunpack.c.l.b16 %v4990
        %v5571 = vunpack.c.l.b16 %v4991
        %v5572 = vunpack.c.l.b16 %v4992
        %v5573 = vunpack.c.l.b16 %v4993
        %v5574 = vunpack.c.l.b16 %v4994
        %v5575 = vunpack.c.l.b16 %v4995
        %v5576 = vunpack.c.l.b16 %v4996
        %v5577 = vunpack.c.l.b16 %v4997
        %v5578 = vunpack.c.l.b16 %v4998
        %v5579 = vunpack.c.l.b16 %v4999
        %v5580 = vunpack.c.l.b16 %v5000
        %v5581 = vunpack.c.l.b16 %v5001
        %v5582 = vunpack.c.l.b16 %v5002
        %v5583 = vunpack.c.l.b16 %v5003
        %v5584 = vunpack.c.l.b16 %v5004
        %v5585 = vunpack.c.l.b16 %v5005
        %v5586 = vunpack.c.l.b16 %v5006
        %v5587 = vunpack.c.l.b16 %v5007
        %v5588 = vunpack.c.l.b16 %v5008
        %v5589 = vunpack.c.l.b16 %v5009
        %v5590 = vunpack.c.l.b16 %v5010
        %v5591 = vunpack.c.l.b16 %v5011
        %v5592 = vunpack.c.l.b16 %v5012
        %v5593 = vunpack.c.l.b16 %v5013
        %v5594 = vunpack.c.l.b16 %v5014
        %v5595 = vunpack.c.l.b16 %v5015
        %v5596 = vunpack.c.l.b16 %v5016
        %v5597 = vunpack.c.l.b16 %v5017
        %v5598 = vunpack.c.l.b16 %v5018
        %v5599 = vunpack.c.l.b16 %v5019
        %v5600 = vunpack.c.l.b16 %v5020
        %v5601 = vunpack.c.l.b16 %v5021
        %v5602 = vunpack.c.l.b16 %v5022
        %v5603 = vunpack.c.l.b16 %v5023
        %v5604 = vunpack.c.l.b16 %v5024
        %v5605 = vunpack.c.l.b16 %v5025
        %v5606 = vunpack.c.l.b16 %v5026
        %v5607 = vunpack.c.l.b16 %v5027
        %v5608 = vunpack.c.l.b16 %v5028
        %v5609 = vunpack.c.l.b16 %v5029
        %v5610 = vunpack.c.l.b16 %v5030
        %v5611 = vunpack.c.l.b16 %v5031
        %v5612 = vunpack.c.l.b16 %v5032
        %v5613 = vunpack.c.l.b16 %v5033
        %v5614 = vunpack.c.l.b16 %v5034
        %v5615 = vunpack.c.l.b16 %v5035
        %v5616 = vunpack.c.l.b16 %v5036
        %v5617 = vunpack.c.l.b16 %v5037
        %v5618 = vunpack.c.l.b16 %v5038
        %v5619 = vunpack.c.l.b16 %v5039
        %v5620 = vunpack.c.l.b16 %v5040
        %v5621 = vunpack.c.l.b16 %v5041
        %v5622 = vunpack.c.l.b16 %v5042
        %v5623 = vunpack.c.l.b16 %v5043
        %v5624 = vunpack.c.l.b16 %v5044
        %v5625 = vunpack.c.l.b16 %v5045
        %v5626 = vunpack.c.l.b16 %v5046
        %v5627 = vunpack.c.l.b16 %v5047
        %v5628 = vunpack.c.l.b16 %v5048
        %v5629 = vunpack.c.l.b16 %v5049
        %v5630 = vunpack.c.l.b16 %v5050
        %v5631 = vunpack.c.l.b16 %v5051
        %v5632 = vunpack.c.l.b16 %v5052
        %v5633 = vunpack.c.l.b16 %v5053
        %v5634 = vunpack.c.l.b16 %v5054
        %v5635 = vunpack.c.l.b16 %v5055
        %v5636 = vunpack.c.l.b16 %v5056
        %v5637 = vunpack.c.l.b16 %v5057
        %v5638 = vunpack.c.l.b16 %v5058
        %v5639 = vunpack.c.l.b16 %v5059
        %v5640 = vunpack.c.l.b16 %v5060
        %v5641 = vunpack.c.l.b16 %v5061
        %v5642 = vunpack.c.l.b16 %v5062
        %v5643 = vunpack.c.l.b16 %v5063
        %v5644 = vunpack.c.l.b16 %v5064
        %v5645 = vunpack.c.l.b16 %v5065
        %v5646 = vunpack.c.l.b16 %v5066
        %v5647 = vunpack.c.l.b16 %v5067
        %v5648 = vunpack.c.l.b16 %v5068
        %v5649 = vunpack.c.l.b16 %v5069
        %v5650 = vunpack.c.l.b16 %v5070
        %v5651 = vunpack.c.l.b16 %v5071
        %v5652 = vunpack.c.l.b16 %v5072
        %v5653 = vunpack.c.l.b16 %v5073
        %v5654 = vunpack.c.l.b16 %v5074
        %v5655 = vunpack.c.l.b16 %v5075
        %v5656 = vunpack.c.l.b16 %v5076
        %v5657 = vunpack.c.l.b16 %v5077
        %v5658 = vunpack.c.l.b16 %v5078
        %v5659 = vunpack.c.l.b16 %v5079
        %v5660 = vunpack.c.l.b16 %v5080
        %v5661 = vunpack.c.l.b16 %v5081
        %v5662 = vunpack.c.l.b16 %v5082
        %v5663 = vunpack.c.l.b16 %v5083
        %v5664 = vunpack.c.l.b16 %v5084
        %v5665 = vunpack.c.l.b16 %v5085
        %v5666 = vunpack.c.l.b16 %v5086
        %v5667 = vunpack.c.l.b16 %v5087
        %v5668 = vunpack.c.l.b16 %v5088
        %v5669 = vunpack.c.l.b16 %v5089
        %v5670 = vunpack.c.l.b16 %v5090
        %v5671 = vunpack.c.l.b16 %v5091
        %v5672 = vunpack.c.l.b16 %v5092
        %v5673 = vunpack.c.l.b16 %v5093
        %v5674 = vunpack.c.l.b16 %v5094
        %v5675 = vunpack.c.l.b16 %v5095
        %v5676 = vunpack.c.l.b16 %v5096
        %v5677 = vunpack.c.l.b16 %v5097
        %v5678 = vunpack.c.l.b16 %v5098
        %v5679 = vunpack.c.l.b16 %v5099
        %v5680 = vunpack.c.l.b16 %v5100
        %v5681 = vunpack.c.l.b16 %v5101
        %v5682 = vunpack.c.l.b16 %v5102
        %v5683 = vunpack.c.l.b16 %v5103
        %v5684 = vunpack.c.l.b16 %v5104
        %v5685 = vunpack.c.l.b16 %v5105
        %v5686 = vunpack.c.l.b16 %v5106
        %v5687 = vunpack.c.l.b16 %v5107
        %v5688 = vunpack.c.l.b16 %v5108
        %v5689 = vunpack.c.l.b16 %v5109
        %v5690 = vunpack.c.l.b16 %v5110
        %v5691 = vunpack.c.l.b16 %v5111
        %v5692 = vunpack.c.l.b16 %v5112
        %v5693 = vunpack.c.l.b16 %v5113
        %v5694 = vunpack.c.l.b16 %v5114
        %v5695 = vunpack.c.l.b16 %v5115
        %v5696 = vunpack.c.l.b16 %v5116
        %v5697 = vunpack.c.l.b16 %v5117
        %v5698 = vunpack.c.l.b16 %v5118
        %v5699 = vunpack.c.l.b16 %v5119
        %v5700 = vunpack.c.l.b16 %v5120
        %v5701 = vunpack.c.l.b16 %v5121
        %v5702 = vunpack.c.l.b16 %v5122
        %v5703 = vunpack.c.l.b16 %v5123
        %v5704 = vunpack.c.l.b16 %v5124
        %v5705 = vunpack.c.l.b16 %v5125
        %v5706 = vunpack.c.l.b16 %v5126
        %v5707 = vunpack.c.l.b16 %v5127
        %v5708 = vunpack.c.l.b16 %v5128
        %v5709 = vunpack.c.l.b16 %v5129
        %v5710 = vunpack.c.l.b16 %v5130
        %v5711 = vunpack.c.l.b16 %v5131
        %v5712 = vunpack.c.l.b16 %v5132
        %v5713 = vunpack.c.l.b16 %v5133
        %v5714 = vunpack.c.l.b16 %v5134
        %v5715 = vunpack.c.l.b16 %v5135
        %v5716 = vunpack.c.l.b16 %v5136
        %v5717 = vunpack.c.l.b16 %v5137
        %v5718 = vunpack.c.l.b16 %v5138
        %v5719 = vunpack.c.l.b16 %v5139
        %v5720 = vunpack.c.l.b16 %v5140
        %v5721 = vunpack.c.l.b16 %v5141
        %v5722 = vunpack.c.l.b16 %v5142
        %v5723 = vunpack.c.l.b16 %v5143
        %v5724 = vunpack.c.l.b16 %v5144
        %v5725 = vunpack.c.l.b16 %v5145
        %v5726 = vunpack.c.l.b16 %v5146
        %v5727 = vunpack.c.l.b16 %v5147
        %v5728 = vunpack.c.l.b16 %v5148
        %v5729 = vunpack.c.l.b16 %v5149
        %v5730 = vunpack.c.l.b16 %v5150
        %v5731 = vunpack.c.l.b16 %v5151
        %v5732 = vunpack.c.l.b16 %v5152
        %v5733 = vunpack.c.l.b16 %v5153
        %v5734 = vunpack.c.l.b16 %v5154
        %v5735 = vunpack.c.l.b16 %v5155
        %v5736 = vunpack.c.l.b16 %v5156
        %v5737 = vunpack.c.l.b16 %v5157
        %v5738 = vunpack.c.l.b16 %v5158
        %v5739 = vunpack.c.l.b16 %v5159
        %v5740 = vunpack.c.l.b16 %v5160
        %v5741 = vunpack.c.l.b16 %v5161
        %v5742 = vunpack.c.l.b16 %v5162
        %v5743 = vunpack.c.l.b16 %v5163
        %v5744 = vunpack.c.l.b16 %v5164
        %v5745 = vunpack.c.l.b16 %v5165
        %v5746 = vunpack.c.l.b16 %v5166
        %v5747 = vunpack.c.l.b16 %v5167
        %v5748 = vunpack.c.l.b16 %v5168
        %v5749 = vunpack.c.l.b16 %v5169
        %v5750 = vunpack.c.l.b16 %v5170
        %v5751 = vunpack.c.l.b16 %v5171
        %v5752 = vunpack.c.l.b16 %v5172
        %v5753 = vunpack.c.l.b16 %v5173
        %v5754 = vunpack.c.l.b16 %v5174
        %v5755 = vunpack.c.l.b16 %v5175
        %v5756 = vunpack.c.l.b16 %v5176
        %v5757 = vunpack.c.l.b16 %v5177
        %v5758 = vunpack.c.l.b16 %v5178
        %v5759 = vunpack.c.l.b16 %v5179
        %v5760 = vunpack.c.l.b16 %v5180
        %v5761 = vunpack.c.l.b16 %v5181
        %v5762 = vunpack.c.l.b16 %v5182
        %v5763 = vunpack.c.l.b16 %v5183
        %v5764 = vunpack.c.l.b16 %v5184
        %v5765 = vunpack.c.l.b16 %v5185
        %v5766 = vunpack.c.l.b16 %v5186
        %v5767 = vunpack.c.l.b16 %v5187
        %v5768 = vunpack.c.l.b16 %v5188
        %v5769 = vunpack.c.l.b16 %v5189
        %v5770 = vunpack.c.l.b16 %v5190
        %v5771 = vunpack.c.l.b16 %v5191
        %v5772 = vunpack.c.l.b16 %v5192
        %v5773 = vunpack.c.l.b16 %v5193
        %v5774 = vunpack.c.l.b16 %v5194
        %v5775 = vunpack.c.l.b16 %v5195
        %v5776 = vunpack.c.l.b16 %v5196
        %v5777 = vunpack.c.l.b16 %v5197
        %v5778 = vunpack.c.l.b16 %v5198
        %v5779 = vunpack.c.l.b16 %v5199
        %v5780 = vunpack.c.l.b16 %v5200
        %v5781 = vunpack.c.l.b16 %v5201
        %v5782 = vunpack.c.l.b16 %v5202
        %v5783 = vunpack.c.l.b16 %v5203
        %v5784 = vunpack.c.l.b16 %v5204
        %v5785 = vunpack.c.l.b16 %v5205
        %v5786 = vunpack.c.l.b16 %v5206
        %v5787 = vunpack.c.l.b16 %v5207
        %v5788 = vunpack.c.l.b16 %v5208
        %v5789 = vunpack.c.l.b16 %v5209
        %v5790 = vunpack.c.l.b16 %v5210
        %v5791 = vunpack.c.l.b16 %v5211
        %v5792 = vunpack.c.l.b16 %v5212
        %v5793 = vunpack.c.l.b16 %v5213
        %v5794 = vunpack.c.l.b16 %v5214
        %v5795 = vunpack.c.l.b16 %v5215
        %v5796 = vunpack.c.l.b16 %v5216
        %v5797 = vunpack.c.l.b16 %v5217
        %v5798 = vunpack.c.l.b16 %v5218
        %v5799 = vunpack.c.l.b16 %v5219
        %v5800 = vunpack.c.l.b16 %v5220
        %v5801 = vunpack.c.l.b16 %v5221
        %v5802 = vunpack.c.l.b16 %v5222
        %v5803 = vunpack.c.l.b16 %v5223
        %v5804 = vunpack.c.l.b16 %v5224
        %v5805 = vunpack.c.l.b16 %v5225
        %v5806 = vunpack.c.l.b16 %v5226
        %v5807 = vunpack.c.l.b16 %v5227
        %v5808 = vunpack.c.l.b16 %v5228
        %v5809 = vunpack.c.l.b16 %v5229
        %v5810 = vunpack.c.l.b16 %v5230
        %v5811 = vunpack.c.l.b16 %v5231
        %v5812 = vunpack.c.l.b16 %v5232
        %v5813 = vunpack.c.l.b16 %v5233
        %v5814 = vunpack.c.l.b16 %v5234
        %v5815 = vunpack.c.l.b16 %v5235
        %v5816 = vunpack.c.l.b16 %v5236
        %v5817 = vunpack.c.l.b16 %v5237
        %v5818 = vunpack.c.l.b16 %v5238
        %v5819 = vunpack.c.l.b16 %v5239
        %v5820 = vunpack.c.l.b16 %v5240
        %v5821 = vunpack.c.l.b16 %v5241
        %v5822 = vunpack.c.l.b16 %v5242
        %v5823 = vunpack.c.l.b16 %v5243
        %v5824 = vunpack.c.l.b16 %v5244
        %v5825 = vunpack.c.l.b16 %v5245
        %v5826 = vunpack.c.l.b16 %v5246
        %v5827 = vunpack.c.l.b16 %v5247
        %v5828 = vunpack.c.l.b16 %v5248
        %v5829 = vunpack.c.l.b16 %v5249
        %v5830 = vunpack.c.l.b16 %v5250
        %v5831 = vunpack.c.l.b16 %v5251
        %v5832 = vunpack.c.l.b16 %v5252
        %v5833 = vunpack.c.l.b16 %v5253
        %v5834 = vunpack.c.l.b16 %v5254
        %v5835 = vunpack.c.l.b16 %v5255
        %v5836 = vunpack.c.l.b16 %v5256
        %v5837 = vunpack.c.l.b16 %v5257
        %v5838 = vunpack.c.l.b16 %v5258
        %v5839 = vunpack.c.l.b16 %v5259
        %v5840 = vunpack.c.l.b16 %v5260
        %v5841 = vunpack.c.l.b16 %v5261
        %v5842 = vunpack.c.l.b16 %v5262
        %v5843 = vunpack.c.l.b16 %v5263
        %v5844 = vunpack.c.l.b16 %v5264
        %v5845 = vunpack.c.l.b16 %v5265
        %v5846 = vunpack.c.l.b16 %v5266
        %v5847 = vunpack.c.l.b16 %v5267
        %v5848 = vunpack.c.l.b16 %v5268
        %v5849 = vunpack.c.l.b16 %v5269
        %v5850 = vunpack.c.l.b16 %v5270
        %v5851 = vpack.c.b16 %v5564, %v5563
        %v5852 = vpack.c.b16 %v5566, %v5565
        %v5853 = vpack.c.b16 %v5568, %v5567
        %v5854 = vpack.c.b16 %v5570, %v5569
        %v5855 = vpack.c.b16 %v5572, %v5571
        %v5856 = vpack.c.b16 %v5574, %v5573
        %v5857 = vpack.c.b16 %v5576, %v5575
        %v5858 = vpack.c.b16 %v5578, %v5577
        %v5859 = vpack.c.b16 %v5580, %v5579
        %v5860 = vpack.c.b16 %v5582, %v5581
        %v5861 = vpack.c.b16 %v5584, %v5583
        %v5862 = vpack.c.b16 %v5586, %v5585
        %v5863 = vpack.c.b16 %v5588, %v5587
        %v5864 = vpack.c.b16 %v5590, %v5589
        %v5865 = vpack.c.b16 %v5592, %v5591
        %v5866 = vpack.c.b16 %v5594, %v5593
        %v5867 = vpack.c.b16 %v5596, %v5595
        %v5868 = vpack.c.b16 %v5598, %v5597
        %v5869 = vpack.c.b16 %v5600, %v5599
        %v5870 = vpack.c.b16 %v5602, %v5601
        %v5871 = vpack.c.b16 %v5604, %v5603
        %v5872 = vpack.c.b16 %v5606, %v5605
        %v5873 = vpack.c.b16 %v5608, %v5607
        %v5874 = vpack.c.b16 %v5610, %v5609
        %v5875 = vpack.c.b16 %v5612, %v5611
        %v5876 = vpack.c.b16 %v5614, %v5613
        %v5877 = vpack.c.b16 %v5616, %v5615
        %v5878 = vpack.c.b16 %v5618, %v5617
        %v5879 = vpack.c.b16 %v5620, %v5619
        %v5880 = vpack.c.b16 %v5622, %v5621
        %v5881 = vpack.c.b16 %v5624, %v5623
        %v5882 = vpack.c.b16 %v5626, %v5625
        %v5883 = vpack.c.b16 %v5628, %v5627
        %v5884 = vpack.c.b16 %v5630, %v5629
        %v5885 = vpack.c.b16 %v5632, %v5631
        %v5886 = vpack.c.b16 %v5634, %v5633
        %v5887 = vpack.c.b16 %v5636, %v5635
        %v5888 = vpack.c.b16 %v5638, %v5637
        %v5889 = vpack.c.b16 %v5640, %v5639
        %v5890 = vpack.c.b16 %v5642, %v5641
        %v5891 = vpack.c.b16 %v5644, %v5643
        %v5892 = vpack.c.b16 %v5646, %v5645
        %v5893 = vpack.c.b16 %v5648, %v5647
        %v5894 = vpack.c.b16 %v5650, %v5649
        %v5895 = vpack.c.b16 %v5652, %v5651
        %v5896 = vpack.c.b16 %v5654, %v5653
        %v5897 = vpack.c.b16 %v5656, %v5655
        %v5898 = vpack.c.b16 %v5658, %v5657
        %v5899 = vpack.c.b16 %v5660, %v5659
        %v5900 = vpack.c.b16 %v5662, %v5661
        %v5901 = vpack.c.b16 %v5664, %v5663
        %v5902 = vpack.c.b16 %v5666, %v5665
        %v5903 = vpack.c.b16 %v5668, %v5667
        %v5904 = vpack.c.b16 %v5670, %v5669
        %v5905 = vpack.c.b16 %v5672, %v5671
        %v5906 = vpack.c.b16 %v5674, %v5673
        %v5907 = vpack.c.b16 %v5676, %v5675
        %v5908 = vpack.c.b16 %v5678, %v5677
        %v5909 = vpack.c.b16 %v5680, %v5679
        %v5910 = vpack.c.b16 %v5682, %v5681
        %v5911 = vpack.c.b16 %v5684, %v5683
        %v5912 = vpack.c.b16 %v5686, %v5685
        %v5913 = vpack.c.b16 %v5688, %v5687
        %v5914 = vpack.c.b16 %v5690, %v5689
        %v5915 = vpack.c.b16 %v5692, %v5691
        %v5916 = vpack.c.b16 %v5694, %v5693
        %v5917 = vpack.c.b16 %v5696, %v5695
        %v5918 = vpack.c.b16 %v5698, %v5697
        %v5919 = vpack.c.b16 %v5700, %v5699
        %v5920 = vpack.c.b16 %v5702, %v5701
        %v5921 = vpack.c.b16 %v5704, %v5703
        %v5922 = vpack.c.b16 %v5706, %v5705
        %v5923 = vpack.c.b16 %v5708, %v5707
        %v5924 = vpack.c.b16 %v5710, %v5709
        %v5925 = vpack.c.b16 %v5712, %v5711
        %v5926 = vpack.c.b16 %v5714, %v5713
        %v5927 = vpack.c.b16 %v5716, %v5715
        %v5928 = vpack.c.b16 %v5718, %v5717
        %v5929 = vpack.c.b16 %v5720, %v5719
        %v5930 = vpack.c.b16 %v5722, %v5721
        %v5931 = vpack.c.b16 %v5724, %v5723
        %v5932 = vpack.c.b16 %v5726, %v5725
        %v5933 = vpack.c.b16 %v5728, %v5727
        %v5934 = vpack.c.b16 %v5730, %v5729
        %v5935 = vpack.c.b16 %v5732, %v5731
        %v5936 = vpack.c.b16 %v5734, %v5733
        %v5937 = vpack.c.b16 %v5736, %v5735
        %v5938 = vpack.c.b16 %v5738, %v5737
        %v5939 = vpack.c.b16 %v5740, %v5739
        %v5940 = vpack.c.b16 %v5742, %v5741
        %v5941 = vpack.c.b16 %v5744, %v5743
        %v5942 = vpack.c.b16 %v5746, %v5745
        %v5943 = vpack.c.b16 %v5748, %v5747
        %v5944 = vpack.c.b16 %v5750, %v5749
        %v5945 = vpack.c.b16 %v5752, %v5751
        %v5946 = vpack.c.b16 %v5754, %v5753
        %v5947 = vpack.c.b16 %v5756, %v5755
        %v5948 = vpack.c.b16 %v5758, %v5757
        %v5949 = vpack.c.b16 %v5760, %v5759
        %v5950 = vpack.c.b16 %v5762, %v5761
        %v5951 = vpack.c.b16 %v5764, %v5763
        %v5952 = vpack.c.b16 %v5766, %v5765
        %v5953 = vpack.c.b16 %v5768, %v5767
        %v5954 = vpack.c.b16 %v5770, %v5769
        %v5955 = vpack.c.b16 %v5772, %v5771
        %v5956 = vpack.c.b16 %v5774, %v5773
        %v5957 = vpack.c.b16 %v5776, %v5775
        %v5958 = vpack.c.b16 %v5778, %v5777
        %v5959 = vpack.c.b16 %v5780, %v5779
        %v5960 = vpack.c.b16 %v5782, %v5781
        %v5961 = vpack.c.b16 %v5784, %v5783
        %v5962 = vpack.c.b16 %v5786, %v5785
        %v5963 = vpack.c.b16 %v5788, %v5787
        %v5964 = vpack.c.b16 %v5790, %v5789
        %v5965 = vpack.c.b16 %v5792, %v5791
        %v5966 = vpack.c.b16 %v5794, %v5793
        %v5967 = vpack.c.b16 %v5796, %v5795
        %v5968 = vpack.c.b16 %v5798, %v5797
        %v5969 = vpack.c.b16 %v5800, %v5799
        %v5970 = vpack.c.b16 %v5802, %v5801
        %v5971 = vpack.c.b16 %v5804, %v5803
        %v5972 = vpack.c.b16 %v5806, %v5805
        %v5973 = vpack.c.b16 %v5808, %v5807
        %v5974 = vpack.c.b16 %v5810, %v5809
        %v5975 = vpack.c.b16 %v5812, %v5811
        %v5976 = vpack.c.b16 %v5814, %v5813
        %v5977 = vpack.c.b16 %v5816, %v5815
        %v5978 = vpack.c.b16 %v5818, %v5817
        %v5979 = vpack.c.b16 %v5820, %v5819
        %v5980 = vpack.c.b16 %v5822, %v5821
        %v5981 = vpack.c.b16 %v5824, %v5823
        %v5982 = vpack.c.b16 %v5826, %v5825
        %v5983 = vpack.c.b16 %v5828, %v5827
        %v5984 = vpack.c.b16 %v5830, %v5829
        %v5985 = vpack.c.b16 %v5832, %v5831
        %v5986 = vpack.c.b16 %v5834, %v5833
        %v5987 = vpack.c.b16 %v5836, %v5835
        %v5988 = vpack.c.b16 %v5838, %v5837
        %v5989 = vpack.c.b16 %v5840, %v5839
        %v5990 = vpack.c.b16 %v5842, %v5841
        %v5991 = vpack.c.b16 %v5844, %v5843
        %v5992 = vpack.c.b16 %v5846, %v5845
        %v5993 = vpack.c.b16 %v5848, %v5847
        %v5994 = vpack.c.b16 %v5850, %v5849
        %6139 = vmatprep.subr.bf16.mxu0 0
        %6140 = vmatpush1.bf16.msra.mxu0 %v5851
        %6141 = vmatprep.subr.bf16.mxu0 0
        %6142 = vmatpush1.bf16.msra.mxu0 %v5852
        %6143 = vmatprep.subr.bf16.mxu0 0
        %6144 = vmatpush1.bf16.msra.mxu0 %v5853
        %6145 = vmatprep.subr.bf16.mxu0 0
        %6146 = vmatpush1.bf16.msra.mxu0 %v5854
        %6147 = vmatprep.subr.bf16.mxu0 0
        %6148 = vmatpush1.bf16.msra.mxu0 %v5855
        %6149 = vmatprep.subr.bf16.mxu0 0
        %6150 = vmatpush1.bf16.msra.mxu0 %v5856
        %6151 = vmatprep.subr.bf16.mxu0 0
        %6152 = vmatpush1.bf16.msra.mxu0 %v5857
        %6153 = vmatprep.subr.bf16.mxu0 0
        %6154 = vmatpush1.bf16.msra.mxu0 %v5858
        %6155 = vmatprep.subr.bf16.mxu0 0
        %6156 = vmatpush1.bf16.msra.mxu0 %v5859
        %6157 = vmatprep.subr.bf16.mxu0 0
        %6158 = vmatpush1.bf16.msra.mxu0 %v5860
        %6159 = vmatprep.subr.bf16.mxu0 0
        %6160 = vmatpush1.bf16.msra.mxu0 %v5861
        %6161 = vmatprep.subr.bf16.mxu0 0
        %6162 = vmatpush1.bf16.msra.mxu0 %v5862
        %6163 = vmatprep.subr.bf16.mxu0 0
        %6164 = vmatpush1.bf16.msra.mxu0 %v5863
        %6165 = vmatprep.subr.bf16.mxu0 0
        %6166 = vmatpush1.bf16.msra.mxu0 %v5864
        %6167 = vmatprep.subr.bf16.mxu0 0
        %6168 = vmatpush1.bf16.msra.mxu0 %v5865
        %6169 = vmatprep.subr.bf16.mxu0 0
        %6170 = vmatpush1.bf16.msra.mxu0 %v5866
        %6171 = vmatprep.mubr.bf16.mxu0 %v4934
        %6172 = vmatmul.mubr.bf16.gmra.mrb[0].mxu0 %v4933
        %v6173 = vpop.f32.mrb[0].mxu0
        %v6174 = vadd.f32 %v5274, %v6173
        %v6175 = vpop.f32.mrb[0].mxu0
        %v6176 = vpop.f32.mrb[0].mxu0
        %v6177 = vpop.f32.mrb[0].mxu0
        %6178 = vdwg.mxu0
        %6179 = vmatprep.subr.bf16.mxu0 0
        %6180 = vmatpush1.bf16.msra.mxu0 %v5867
        %6181 = vmatprep.subr.bf16.mxu0 0
        %6182 = vmatpush1.bf16.msra.mxu0 %v5868
        %6183 = vmatprep.subr.bf16.mxu0 0
        %6184 = vmatpush1.bf16.msra.mxu0 %v5869
        %6185 = vmatprep.subr.bf16.mxu0 0
        %6186 = vmatpush1.bf16.msra.mxu0 %v5870
        %6187 = vmatprep.subr.bf16.mxu0 0
        %6188 = vmatpush1.bf16.msra.mxu0 %v5871
        %6189 = vmatprep.subr.bf16.mxu0 0
        %6190 = vmatpush1.bf16.msra.mxu0 %v5872
        %6191 = vmatprep.subr.bf16.mxu0 0
        %6192 = vmatpush1.bf16.msra.mxu0 %v5873
        %6193 = vmatprep.subr.bf16.mxu0 0
        %6194 = vmatpush1.bf16.msra.mxu0 %v5874
        %6195 = vmatprep.subr.bf16.mxu0 0
        %6196 = vmatpush1.bf16.msra.mxu0 %v5875
        %6197 = vmatprep.subr.bf16.mxu0 0
        %6198 = vmatpush1.bf16.msra.mxu0 %v5876
        %6199 = vmatprep.subr.bf16.mxu0 0
        %6200 = vmatpush1.bf16.msra.mxu0 %v5877
        %6201 = vmatprep.subr.bf16.mxu0 0
        %6202 = vmatpush1.bf16.msra.mxu0 %v5878
        %6203 = vmatprep.subr.bf16.mxu0 0
        %6204 = vmatpush1.bf16.msra.mxu0 %v5879
        %6205 = vmatprep.subr.bf16.mxu0 0
        %6206 = vmatpush1.bf16.msra.mxu0 %v5880
        %6207 = vmatprep.subr.bf16.mxu0 0
        %6208 = vmatpush1.bf16.msra.mxu0 %v5881
        %6209 = vmatprep.subr.bf16.mxu0 0
        %6210 = vmatpush1.bf16.msra.mxu0 %v5882
        %6211 = vmatprep.mubr.bf16.mxu0 %v4940
        %6212 = vmatmul.mubr.bf16.gmra.mrb[0].mxu0 %v4939
        %v6213 = vpop.f32.mrb[0].mxu0
        %v6214 = vadd.f32 %v6174, %v6213
        %v6215 = vpop.f32.mrb[0].mxu0
        %v6216 = vpop.f32.mrb[0].mxu0
        %v6217 = vpop.f32.mrb[0].mxu0
        %6218 = vdwg.mxu0
        %6219 = vmatprep.subr.bf16.mxu0 0
        %6220 = vmatpush1.bf16.msra.mxu0 %v5883
        %6221 = vmatprep.subr.bf16.mxu0 0
        %6222 = vmatpush1.bf16.msra.mxu0 %v5884
        %6223 = vmatprep.subr.bf16.mxu0 0
        %6224 = vmatpush1.bf16.msra.mxu0 %v5885
        %6225 = vmatprep.subr.bf16.mxu0 0
        %6226 = vmatpush1.bf16.msra.mxu0 %v5886
        %6227 = vmatprep.subr.bf16.mxu0 0
        %6228 = vmatpush1.bf16.msra.mxu0 %v5887
        %6229 = vmatprep.subr.bf16.mxu0 0
        %6230 = vmatpush1.bf16.msra.mxu0 %v5888
        %6231 = vmatprep.subr.bf16.mxu0 0
        %6232 = vmatpush1.bf16.msra.mxu0 %v5889
        %6233 = vmatprep.subr.bf16.mxu0 0
        %6234 = vmatpush1.bf16.msra.mxu0 %v5890
        %6235 = vmatprep.subr.bf16.mxu0 0
        %6236 = vmatpush1.bf16.msra.mxu0 %v5891
        %6237 = vmatprep.subr.bf16.mxu0 0
        %6238 = vmatpush1.bf16.msra.mxu0 %v5892
        %6239 = vmatprep.subr.bf16.mxu0 0
        %6240 = vmatpush1.bf16.msra.mxu0 %v5893
        %6241 = vmatprep.subr.bf16.mxu0 0
        %6242 = vmatpush1.bf16.msra.mxu0 %v5894
        %6243 = vmatprep.subr.bf16.mxu0 0
        %6244 = vmatpush1.bf16.msra.mxu0 %v5895
        %6245 = vmatprep.subr.bf16.mxu0 0
        %6246 = vmatpush1.bf16.msra.mxu0 %v5896
        %6247 = vmatprep.subr.bf16.mxu0 0
        %6248 = vmatpush1.bf16.msra.mxu0 %v5897
        %6249 = vmatprep.subr.bf16.mxu0 0
        %6250 = vmatpush1.bf16.msra.mxu0 %v5898
        %6251 = vmatprep.mubr.bf16.mxu0 %v4946
        %6252 = vmatmul.mubr.bf16.gmra.mrb[0].mxu0 %v4945
        %v6253 = vpop.f32.mrb[0].mxu0
        %v6254 = vadd.f32 %v6214, %v6253
        %v6255 = vpop.f32.mrb[0].mxu0
        %v6256 = vpop.f32.mrb[0].mxu0
        %v6257 = vpop.f32.mrb[0].mxu0
        %6258 = vdwg.mxu0
        %6259 = vmatprep.subr.bf16.mxu0 0
        %6260 = vmatpush1.bf16.msra.mxu0 %v5899
        %6261 = vmatprep.subr.bf16.mxu0 0
        %6262 = vmatpush1.bf16.msra.mxu0 %v5900
        %6263 = vmatprep.subr.bf16.mxu0 0
        %6264 = vmatpush1.bf16.msra.mxu0 %v5901
        %6265 = vmatprep.subr.bf16.mxu0 0
        %6266 = vmatpush1.bf16.msra.mxu0 %v5902
        %6267 = vmatprep.subr.bf16.mxu0 0
        %6268 = vmatpush1.bf16.msra.mxu0 %v5903
        %6269 = vmatprep.subr.bf16.mxu0 0
        %6270 = vmatpush1.bf16.msra.mxu0 %v5904
        %6271 = vmatprep.subr.bf16.mxu0 0
        %6272 = vmatpush1.bf16.msra.mxu0 %v5905
        %6273 = vmatprep.subr.bf16.mxu0 0
        %6274 = vmatpush1.bf16.msra.mxu0 %v5906
        %6275 = vmatprep.subr.bf16.mxu0 0
        %6276 = vmatpush1.bf16.msra.mxu0 %v5907
        %6277 = vmatprep.subr.bf16.mxu0 0
        %6278 = vmatpush1.bf16.msra.mxu0 %v5908
        %6279 = vmatprep.subr.bf16.mxu0 0
        %6280 = vmatpush1.bf16.msra.mxu0 %v5909
        %6281 = vmatprep.subr.bf16.mxu0 0
        %6282 = vmatpush1.bf16.msra.mxu0 %v5910
        %6283 = vmatprep.subr.bf16.mxu0 0
        %6284 = vmatpush1.bf16.msra.mxu0 %v5911
        %6285 = vmatprep.subr.bf16.mxu0 0
        %6286 = vmatpush1.bf16.msra.mxu0 %v5912
        %6287 = vmatprep.subr.bf16.mxu0 0
        %6288 = vmatpush1.bf16.msra.mxu0 %v5913
        %6289 = vmatprep.subr.bf16.mxu0 0
        %6290 = vmatpush1.bf16.msra.mxu0 %v5914
        %6291 = vmatprep.mubr.bf16.mxu0 %v4952
        %6292 = vmatmul.mubr.bf16.gmra.mrb[0].mxu0 %v4951
        %v6293 = vpop.f32.mrb[0].mxu0
        %v6294 = vadd.f32 %v6254, %v6293
        %v6295 = vpop.f32.mrb[0].mxu0
        %v6296 = vpop.f32.mrb[0].mxu0
        %v6297 = vpop.f32.mrb[0].mxu0
        %6298 = vdwg.mxu0
        %6299 = vmatprep.subr.bf16.mxu0 0
        %6300 = vmatpush1.bf16.msra.mxu0 %v5915
        %6301 = vmatprep.subr.bf16.mxu0 0
        %6302 = vmatpush1.bf16.msra.mxu0 %v5916
        %6303 = vmatprep.subr.bf16.mxu0 0
        %6304 = vmatpush1.bf16.msra.mxu0 %v5917
        %6305 = vmatprep.subr.bf16.mxu0 0
        %6306 = vmatpush1.bf16.msra.mxu0 %v5918
        %6307 = vmatprep.subr.bf16.mxu0 0
        %6308 = vmatpush1.bf16.msra.mxu0 %v5919
        %6309 = vmatprep.subr.bf16.mxu0 0
        %6310 = vmatpush1.bf16.msra.mxu0 %v5920
        %6311 = vmatprep.subr.bf16.mxu0 0
        %6312 = vmatpush1.bf16.msra.mxu0 %v5921
        %6313 = vmatprep.subr.bf16.mxu0 0
        %6314 = vmatpush1.bf16.msra.mxu0 %v5922
        %6315 = vmatprep.subr.bf16.mxu0 0
        %6316 = vmatpush1.bf16.msra.mxu0 %v5923
        %6317 = vmatprep.subr.bf16.mxu0 0
        %6318 = vmatpush1.bf16.msra.mxu0 %v5924
        %6319 = vmatprep.subr.bf16.mxu0 0
        %6320 = vmatpush1.bf16.msra.mxu0 %v5925
        %6321 = vmatprep.subr.bf16.mxu0 0
        %6322 = vmatpush1.bf16.msra.mxu0 %v5926
        %6323 = vmatprep.subr.bf16.mxu0 0
        %6324 = vmatpush1.bf16.msra.mxu0 %v5927
        %6325 = vmatprep.subr.bf16.mxu0 0
        %6326 = vmatpush1.bf16.msra.mxu0 %v5928
        %6327 = vmatprep.subr.bf16.mxu0 0
        %6328 = vmatpush1.bf16.msra.mxu0 %v5929
        %6329 = vmatprep.subr.bf16.mxu0 0
        %6330 = vmatpush1.bf16.msra.mxu0 %v5930
        %6331 = vmatprep.mubr.bf16.mxu0 %v4958
        %6332 = vmatmul.mubr.bf16.gmra.mrb[0].mxu0 %v4957
        %v6333 = vpop.f32.mrb[0].mxu0
        %v6334 = vadd.f32 %v6294, %v6333
        %v6335 = vpop.f32.mrb[0].mxu0
        %v6336 = vpop.f32.mrb[0].mxu0
        %v6337 = vpop.f32.mrb[0].mxu0
        %6338 = vdwg.mxu0
        %6339 = vmatprep.subr.bf16.mxu0 0
        %6340 = vmatpush1.bf16.msra.mxu0 %v5931
        %6341 = vmatprep.subr.bf16.mxu0 0
        %6342 = vmatpush1.bf16.msra.mxu0 %v5932
        %6343 = vmatprep.subr.bf16.mxu0 0
        %6344 = vmatpush1.bf16.msra.mxu0 %v5933
        %6345 = vmatprep.subr.bf16.mxu0 0
        %6346 = vmatpush1.bf16.msra.mxu0 %v5934
        %6347 = vmatprep.subr.bf16.mxu0 0
        %6348 = vmatpush1.bf16.msra.mxu0 %v5935
        %6349 = vmatprep.subr.bf16.mxu0 0
        %6350 = vmatpush1.bf16.msra.mxu0 %v5936
        %6351 = vmatprep.subr.bf16.mxu0 0
        %6352 = vmatpush1.bf16.msra.mxu0 %v5937
        %6353 = vmatprep.subr.bf16.mxu0 0
        %6354 = vmatpush1.bf16.msra.mxu0 %v5938
        %6355 = vmatprep.subr.bf16.mxu0 0
        %6356 = vmatpush1.bf16.msra.mxu0 %v5939
        %6357 = vmatprep.subr.bf16.mxu0 0
        %6358 = vmatpush1.bf16.msra.mxu0 %v5940
        %6359 = vmatprep.subr.bf16.mxu0 0
        %6360 = vmatpush1.bf16.msra.mxu0 %v5941
        %6361 = vmatprep.subr.bf16.mxu0 0
        %6362 = vmatpush1.bf16.msra.mxu0 %v5942
        %6363 = vmatprep.subr.bf16.mxu0 0
        %6364 = vmatpush1.bf16.msra.mxu0 %v5943
        %6365 = vmatprep.subr.bf16.mxu0 0
        %6366 = vmatpush1.bf16.msra.mxu0 %v5944
        %6367 = vmatprep.subr.bf16.mxu0 0
        %6368 = vmatpush1.bf16.msra.mxu0 %v5945
        %6369 = vmatprep.subr.bf16.mxu0 0
        %6370 = vmatpush1.bf16.msra.mxu0 %v5946
        %6371 = vmatprep.mubr.bf16.mxu0 %v4964
        %6372 = vmatmul.mubr.bf16.gmra.mrb[0].mxu0 %v4963
        %v6373 = vpop.f32.mrb[0].mxu0
        %v6374 = vadd.f32 %v6334, %v6373
        %v6375 = vpop.f32.mrb[0].mxu0
        %v6376 = vpop.f32.mrb[0].mxu0
        %v6377 = vpop.f32.mrb[0].mxu0
        %6378 = vdwg.mxu0
        %6379 = vmatprep.subr.bf16.mxu0 0
        %6380 = vmatpush1.bf16.msra.mxu0 %v5947
        %6381 = vmatprep.subr.bf16.mxu0 0
        %6382 = vmatpush1.bf16.msra.mxu0 %v5948
        %6383 = vmatprep.subr.bf16.mxu0 0
        %6384 = vmatpush1.bf16.msra.mxu0 %v5949
        %6385 = vmatprep.subr.bf16.mxu0 0
        %6386 = vmatpush1.bf16.msra.mxu0 %v5950
        %6387 = vmatprep.subr.bf16.mxu0 0
        %6388 = vmatpush1.bf16.msra.mxu0 %v5951
        %6389 = vmatprep.subr.bf16.mxu0 0
        %6390 = vmatpush1.bf16.msra.mxu0 %v5952
        %6391 = vmatprep.subr.bf16.mxu0 0
        %6392 = vmatpush1.bf16.msra.mxu0 %v5953
        %6393 = vmatprep.subr.bf16.mxu0 0
        %6394 = vmatpush1.bf16.msra.mxu0 %v5954
        %6395 = vmatprep.subr.bf16.mxu0 0
        %6396 = vmatpush1.bf16.msra.mxu0 %v5955
        %6397 = vmatprep.subr.bf16.mxu0 0
        %6398 = vmatpush1.bf16.msra.mxu0 %v5956
        %6399 = vmatprep.subr.bf16.mxu0 0
        %6400 = vmatpush1.bf16.msra.mxu0 %v5957
        %6401 = vmatprep.subr.bf16.mxu0 0
        %6402 = vmatpush1.bf16.msra.mxu0 %v5958
        %6403 = vmatprep.subr.bf16.mxu0 0
        %6404 = vmatpush1.bf16.msra.mxu0 %v5959
        %6405 = vmatprep.subr.bf16.mxu0 0
        %6406 = vmatpush1.bf16.msra.mxu0 %v5960
        %6407 = vmatprep.subr.bf16.mxu0 0
        %6408 = vmatpush1.bf16.msra.mxu0 %v5961
        %6409 = vmatprep.subr.bf16.mxu0 0
        %6410 = vmatpush1.bf16.msra.mxu0 %v5962
        %6411 = vmatprep.mubr.bf16.mxu0 %v4970
        %6412 = vmatmul.mubr.bf16.gmra.mrb[0].mxu0 %v4969
        %v6413 = vpop.f32.mrb[0].mxu0
        %v6414 = vadd.f32 %v6374, %v6413
        %v6415 = vpop.f32.mrb[0].mxu0
        %v6416 = vpop.f32.mrb[0].mxu0
        %v6417 = vpop.f32.mrb[0].mxu0
        %6418 = vdwg.mxu0
        %6419 = vmatprep.subr.bf16.mxu0 0
        %6420 = vmatpush1.bf16.msra.mxu0 %v5963
        %6421 = vmatprep.subr.bf16.mxu0 0
        %6422 = vmatpush1.bf16.msra.mxu0 %v5964
        %6423 = vmatprep.subr.bf16.mxu0 0
        %6424 = vmatpush1.bf16.msra.mxu0 %v5965
        %6425 = vmatprep.subr.bf16.mxu0 0
        %6426 = vmatpush1.bf16.msra.mxu0 %v5966
        %6427 = vmatprep.subr.bf16.mxu0 0
        %6428 = vmatpush1.bf16.msra.mxu0 %v5967
        %6429 = vmatprep.subr.bf16.mxu0 0
        %6430 = vmatpush1.bf16.msra.mxu0 %v5968
        %6431 = vmatprep.subr.bf16.mxu0 0
        %6432 = vmatpush1.bf16.msra.mxu0 %v5969
        %6433 = vmatprep.subr.bf16.mxu0 0
        %6434 = vmatpush1.bf16.msra.mxu0 %v5970
        %6435 = vmatprep.subr.bf16.mxu0 0
        %6436 = vmatpush1.bf16.msra.mxu0 %v5971
        %6437 = vmatprep.subr.bf16.mxu0 0
        %6438 = vmatpush1.bf16.msra.mxu0 %v5972
        %6439 = vmatprep.subr.bf16.mxu0 0
        %6440 = vmatpush1.bf16.msra.mxu0 %v5973
        %6441 = vmatprep.subr.bf16.mxu0 0
        %6442 = vmatpush1.bf16.msra.mxu0 %v5974
        %6443 = vmatprep.subr.bf16.mxu0 0
        %6444 = vmatpush1.bf16.msra.mxu0 %v5975
        %6445 = vmatprep.subr.bf16.mxu0 0
        %6446 = vmatpush1.bf16.msra.mxu0 %v5976
        %6447 = vmatprep.subr.bf16.mxu0 0
        %6448 = vmatpush1.bf16.msra.mxu0 %v5977
        %6449 = vmatprep.subr.bf16.mxu0 0
        %6450 = vmatpush1.bf16.msra.mxu0 %v5978
        %6451 = vmatprep.mubr.bf16.mxu0 %v4976
        %6452 = vmatmul.mubr.bf16.gmra.mrb[0].mxu0 %v4975
        %v6453 = vpop.f32.mrb[0].mxu0
        %v6454 = vadd.f32 %v6414, %v6453
        %v6455 = vpop.f32.mrb[0].mxu0
        %v6456 = vpop.f32.mrb[0].mxu0
        %v6457 = vpop.f32.mrb[0].mxu0
        %6458 = vdwg.mxu0
        %6459 = vmatprep.subr.bf16.mxu0 0
        %6460 = vmatpush1.bf16.msra.mxu0 %v5979
        %6461 = vmatprep.subr.bf16.mxu0 0
        %6462 = vmatpush1.bf16.msra.mxu0 %v5980
        %6463 = vmatprep.subr.bf16.mxu0 0
        %6464 = vmatpush1.bf16.msra.mxu0 %v5981
        %6465 = vmatprep.subr.bf16.mxu0 0
        %6466 = vmatpush1.bf16.msra.mxu0 %v5982
        %6467 = vmatprep.subr.bf16.mxu0 0
        %6468 = vmatpush1.bf16.msra.mxu0 %v5983
        %6469 = vmatprep.subr.bf16.mxu0 0
        %6470 = vmatpush1.bf16.msra.mxu0 %v5984
        %6471 = vmatprep.subr.bf16.mxu0 0
        %6472 = vmatpush1.bf16.msra.mxu0 %v5985
        %6473 = vmatprep.subr.bf16.mxu0 0
        %6474 = vmatpush1.bf16.msra.mxu0 %v5986
        %6475 = vmatprep.subr.bf16.mxu0 0
        %6476 = vmatpush1.bf16.msra.mxu0 %v5987
        %6477 = vmatprep.subr.bf16.mxu0 0
        %6478 = vmatpush1.bf16.msra.mxu0 %v5988
        %6479 = vmatprep.subr.bf16.mxu0 0
        %6480 = vmatpush1.bf16.msra.mxu0 %v5989
        %6481 = vmatprep.subr.bf16.mxu0 0
        %6482 = vmatpush1.bf16.msra.mxu0 %v5990
        %6483 = vmatprep.subr.bf16.mxu0 0
        %6484 = vmatpush1.bf16.msra.mxu0 %v5991
        %6485 = vmatprep.subr.bf16.mxu0 0
        %6486 = vmatpush1.bf16.msra.mxu0 %v5992
        %6487 = vmatprep.subr.bf16.mxu0 0
        %6488 = vmatpush1.bf16.msra.mxu0 %v5993
        %6489 = vmatprep.subr.bf16.mxu0 0
        %6490 = vmatpush1.bf16.msra.mxu0 %v5994
        %6491 = vmatprep.mubr.bf16.mxu0 %v4982
        %6492 = vmatmul.mubr.bf16.gmra.mrb[0].mxu0 %v4981
        %v6493 = vpop.f32.mrb[0].mxu0
        %v6494 = vadd.f32 %v6454, %v6493
        %v6495 = vpop.f32.mrb[0].mxu0
        %v6496 = vpop.f32.mrb[0].mxu0
        %v6497 = vpop.f32.mrb[0].mxu0
        %6498 = vdwg.mxu0
        %6499 = vst [vmem:[%s515] sm:$0xff] %v6494
        %p6500 = scmp.lt.s32.totalorder %s27, 1
        %s6501 = scalar_select %p6500, %s27, 1
        %s6502 = smul.addr %s6501, 8
        %s6503 = scalar_lea.vmem %s12, %s6502
        // Predicated region
        $region97: #{forward.1} parent=67 // pred_check
          %p6504 = pneg %p302
        $region98: #{forward.1} parent=67 // pred_check_branch
          %6506 = sbr.rel (%p6504) target = $region100
        $region99: #{forward.1} parent=67 // pred_region
          _
        $region100: #{forward.1} parent=67 // pred_fallthru
          _
      $region68: #{forward.1} parent=5 // pred_fallthru
        _
      %p6507 = scmp.le.s32.totalorder 2, %s22
      // Predicated region
      $region101: #{forward.1} parent=5 // pred_check
        %p6508 = pneg %p6507
      $region102: #{forward.1} parent=5 // pred_check_branch
        %6510 = sbr.rel (%p6508) target = $region104
      $region103: #{forward.1} parent=5 // pred_region
        %s6511 = ssub.s32 %s22, 2
        // Predicated region
        $region105: #{forward.1} parent=103 // pred_check
          %p6512 = pneg %p308
        $region106: #{forward.1} parent=103 // pred_check_branch
          %6514 = sbr.rel (%p6512) target = $region108
        $region107: #{forward.1} parent=103 // pred_region
          %p6515 = scmp.lt.s32.totalorder %s28, 1
          %s6516 = scalar_select %p6515, %s28, 1
          %s6517 = smul.addr %s6516, 8
          %s6518 = scalar_lea.vmem %s12, %s6517
        $region108: #{forward.1} parent=103 // pred_fallthru
          _
      $region104: #{forward.1} parent=5 // pred_fallthru
        _
    $region6: #{forward.1} parent=1 // loop_footer
      %s26 = sadd.s32 1, %s22
    $region7: #{forward.1} parent=1 // loop_footer_branch
      %21 = sbr.rel target = $region3
    $region8: #{forward.1} parent=1 // loop_exit
      _
    %6519 = vsyncpa [#allocation3], 1
    %s6520 = scalar_lea.sflag [#allocation3], 1
    %6521 = vsyncpa %s6520, 1
    %6522 = vsyncpa [#allocation5], 1
    %6523 = vsyncpa [#allocation8], 1
    %6524 = vsyncpa [#allocation11], 1

</llo_original>
